<compile_context>
chip_gen: v7x
topology: tpu7x:2x2x1
jax: 0.10.0
libtpu: 0.0.40
codegen_flags: <defaults>
</compile_context>

<pallas_src>
import functools

import jax
import jax.numpy as jnp
from jax.experimental import pallas as pl
from jax.experimental.pallas import tpu as pltpu


# ----------------------------- config ---------------------------------------
CONFIG = dict(
    hidden_size=32,
    intermediate_size=64,
    num_hidden_layers=2,
    num_attention_heads=4,
    num_channels=4,
    image_size=16,
    patch_size=8,
    layer_norm_eps=1e-6,
)


# --------------------------- in-kernel helpers -------------------------------
def _layernorm(x, gamma, beta, eps):
    mu = jnp.mean(x, axis=-1, keepdims=True)
    var = jnp.mean((x - mu) ** 2, axis=-1, keepdims=True)
    return (x - mu) * jax.lax.rsqrt(var + eps) * gamma + beta


def _gelu_tanh(x):
    # gelu_pytorch_tanh approximation
    c = 0.7978845608028654  # sqrt(2/pi)
    return 0.5 * x * (1.0 + jnp.tanh(c * (x + 0.044715 * x * x * x)))


# ------------------------------ fused kernel ---------------------------------
def fused_vit_kernel(patches_ref, convw_ref, convb_ref, pos_ref, mask_ref,
                     ln1g_ref, ln1b_ref,
                     wq_ref, bq_ref, wk_ref, bk_ref, wv_ref, bv_ref,
                     wo_ref, bo_ref,
                     ln2g_ref, ln2b_ref,
                     w1_ref, b1_ref, w2_ref, b2_ref,
                     plng_ref, plnb_ref,
                     o_ref,
                     *, num_layers, num_heads, batch, seq, eps):
    BS = batch * seq

    # ---- patch embedding:  patches @ W + b + pos  -> (BS, D) ----
    x = jnp.dot(patches_ref[...], convw_ref[...],
                preferred_element_type=jnp.float32)
    x = x + convb_ref[...] + pos_ref[...]

    attn_mask = mask_ref[...]                       # (BS, BS) block-diagonal

    for l in range(num_layers):                     # static, unrolled
        # ---------------- self-attention ----------------
        h = _layernorm(x, ln1g_ref[l], ln1b_ref[l], eps)           # (BS, D)
        hb = jnp.broadcast_to(h[None], (num_heads, BS, h.shape[-1]))

        # per-head projections; 1/sqrt(head_dim) already folded into wq/bq.
        q = jnp.einsum("hsd,hde->hse", hb, wq_ref[l],
                       preferred_element_type=jnp.float32) + bq_ref[l]
        k = jnp.einsum("hsd,hde->hse", hb, wk_ref[l],
                       preferred_element_type=jnp.float32) + bk_ref[l]
        v = jnp.einsum("hsd,hde->hse", hb, wv_ref[l],
                       preferred_element_type=jnp.float32) + bv_ref[l]

        s = jnp.einsum("hqe,hke->hqk", q, k,
                       preferred_element_type=jnp.float32) + attn_mask
        s = s - jnp.max(s, axis=-1, keepdims=True)
        p = jnp.exp(s)
        p = p * pl.reciprocal(jnp.sum(p, axis=-1, keepdims=True), approx=True)

        ctx = jnp.einsum("hqk,hke->hqe", p, v,
                         preferred_element_type=jnp.float32)       # (H, BS, hd)
        attn = jnp.sum(
            jnp.einsum("hqe,hed->hqd", ctx, wo_ref[l],
                       preferred_element_type=jnp.float32), axis=0)  # (BS, D)
        x = x + attn + bo_ref[l]

        # ---------------- MLP ----------------
        h2 = _layernorm(x, ln2g_ref[l], ln2b_ref[l], eps)
        h2 = jnp.dot(h2, w1_ref[l],
                     preferred_element_type=jnp.float32) + b1_ref[l]
        h2 = _gelu_tanh(h2)
        h2 = jnp.dot(h2, w2_ref[l],
                     preferred_element_type=jnp.float32) + b2_ref[l]
        x = x + h2

    # ---- post layernorm ----
    o_ref[...] = _layernorm(x, plng_ref[...], plnb_ref[...], eps)


# ------------------------------ wrapper ---------------------------------------
def siglip_vision_transformer(pixel_values, packed, cfg):
    B, C, Himg, Wimg = pixel_values.shape
    P = cfg["patch_size"]
    D = cfg["hidden_size"]
    Hn = cfg["num_attention_heads"]
    L = cfg["num_hidden_layers"]
    Hp, Wp = Himg // P, Wimg // P
    S = Hp * Wp
    K = C * P * P
    BS = B * S

    # glue: non-overlapping patch extraction == stride-P "valid" conv im2col
    patches = pixel_values.reshape(B, C, Hp, P, Wp, P)
    patches = patches.transpose(0, 2, 4, 1, 3, 5).reshape(BS, K)
    pos = jnp.tile(packed["pos_emb"], (B, 1))                       # (BS, D)

    # additive block-diagonal mask: a row only attends within its own batch
    # element (both batch elements are packed into the BS rows).
    seg = jnp.repeat(jnp.arange(B, dtype=jnp.int32), S)             # (BS,)
    attn_mask = jnp.where(seg[:, None] == seg[None, :],
                          0.0, -1e30).astype(jnp.float32)           # (BS, BS)

    kern = functools.partial(
        fused_vit_kernel,
        num_layers=L, num_heads=Hn, batch=B, seq=S,
        eps=cfg["layer_norm_eps"])

    args = (patches, packed["conv_w"], packed["conv_b"], pos, attn_mask,
            packed["ln1_g"], packed["ln1_b"],
            packed["wq"], packed["bq"], packed["wk"], packed["bk"],
            packed["wv"], packed["bv"], packed["wo"], packed["bo"],
            packed["ln2_g"], packed["ln2_b"],
            packed["w1"], packed["b1"], packed["w2"], packed["b2"],
            packed["post_ln_g"], packed["post_ln_b"])

    vmem = pl.BlockSpec(memory_space=pltpu.MemorySpace.VMEM)
    out = pl.pallas_call(
        kern,
        out_shape=jax.ShapeDtypeStruct((BS, D), jnp.float32),
        in_specs=[vmem] * len(args),
        out_specs=vmem,
    )(*args)
    # (B*S, D) -> (B, S, D): row-major compatible, free reshape outside kernel.
    return out.reshape(B, S, D)


# ------------------------------ params ---------------------------------------
def init_params(key, cfg):
    """PyTorch-layout parameters (as the nn.Module state_dict would hold)."""
    D = cfg["hidden_size"]
    I = cfg["intermediate_size"]
    C = cfg["num_channels"]
    P = cfg["patch_size"]
    N = (cfg["image_size"] // P) ** 2

    def nrm(k, shape, scale=0.02):
        return (scale * jax.random.normal(k, shape)).astype(jnp.float32)

    keys = jax.random.split(key, 2 + 6 * cfg["num_hidden_layers"])
    ki = iter(keys)
    params = {
        "conv_w": nrm(next(ki), (D, C, P, P)),   # Conv2d weight (out, in, kh, kw)
        "conv_b": jnp.zeros((D,), jnp.float32),
        "pos_emb": nrm(next(ki), (N, D)),
        "post_ln_g": jnp.ones((D,), jnp.float32),
        "post_ln_b": jnp.zeros((D,), jnp.float32),
        "layers": [],
    }
    for _ in range(cfg["num_hidden_layers"]):
        lp = {
            "ln1_g": jnp.ones((D,), jnp.float32),
            "ln1_b": jnp.zeros((D,), jnp.float32),
            # PyTorch nn.Linear layout: (out_features, in_features)
            "wq": nrm(next(ki), (D, D)), "bq": jnp.zeros((D,), jnp.float32),
            "wk": nrm(next(ki), (D, D)), "bk": jnp.zeros((D,), jnp.float32),
            "wv": nrm(next(ki), (D, D)), "bv": jnp.zeros((D,), jnp.float32),
            "wo": nrm(next(ki), (D, D)), "bo": jnp.zeros((D,), jnp.float32),
            "ln2_g": jnp.ones((D,), jnp.float32),
            "ln2_b": jnp.zeros((D,), jnp.float32),
            "w1": nrm(next(ki), (I, D)), "b1": jnp.zeros((I,), jnp.float32),
            "w2": nrm(next(ki), (D, I)), "b2": jnp.zeros((D,), jnp.float32),
        }
        params["layers"].append(lp)
    return params


def pack_params(params, cfg):
    """One-time conversion to kernel layout: (in, out) matmul weights,
    per-head-split attention weights with 1/sqrt(head_dim) folded into q,
    2-D biases, and stacking across layers."""
    D = cfg["hidden_size"]
    H = cfg["num_attention_heads"]
    hd = D // H
    scale = hd ** -0.5
    C = cfg["num_channels"]
    P = cfg["patch_size"]
    K = C * P * P
    lys = params["layers"]

    def head_split_w(w):      # torch (D_out, D_in) -> (H, D_in, hd)
        return jnp.transpose(w.T.reshape(D, H, hd), (1, 0, 2))

    def head_split_b(b):      # (D,) -> (H, 1, hd)
        return b.reshape(H, 1, hd)

    packed = {
        "conv_w": params["conv_w"].reshape(D, K).T,          # (K, D)
        "conv_b": params["conv_b"].reshape(1, D),
        "pos_emb": params["pos_emb"],                        # (N, D)
        "post_ln_g": params["post_ln_g"].reshape(1, D),
        "post_ln_b": params["post_ln_b"].reshape(1, D),
        "ln1_g": jnp.stack([l["ln1_g"].reshape(1, D) for l in lys]),
        "ln1_b": jnp.stack([l["ln1_b"].reshape(1, D) for l in lys]),
        "wq": jnp.stack([head_split_w(l["wq"]) * scale for l in lys]),
        "bq": jnp.stack([head_split_b(l["bq"]) * scale for l in lys]),
        "wk": jnp.stack([head_split_w(l["wk"]) for l in lys]),
        "bk": jnp.stack([head_split_b(l["bk"]) for l in lys]),
        "wv": jnp.stack([head_split_w(l["wv"]) for l in lys]),
        "bv": jnp.stack([head_split_b(l["bv"]) for l in lys]),
        "wo": jnp.stack([l["wo"].T.reshape(H, hd, D) for l in lys]),
        "bo": jnp.stack([l["bo"].reshape(1, D) for l in lys]),
        "ln2_g": jnp.stack([l["ln2_g"].reshape(1, D) for l in lys]),
        "ln2_b": jnp.stack([l["ln2_b"].reshape(1, D) for l in lys]),
        "w1": jnp.stack([l["w1"].T for l in lys]),           # (L, D, I)
        "b1": jnp.stack([l["b1"].reshape(1, -1) for l in lys]),
        "w2": jnp.stack([l["w2"].T for l in lys]),           # (L, I, D)
        "b2": jnp.stack([l["b2"].reshape(1, D) for l in lys]),
    }
    return packed


# -------------------------------- main ----------------------------------------
if __name__ == "__main__":
    cfg = CONFIG
    key = jax.random.PRNGKey(0)
    pkey, xkey = jax.random.split(key)

    params = init_params(pkey, cfg)
    packed = pack_params(params, cfg)        # one-time weight layout prep

    B = 2
    pixel_values = jax.random.normal(
        xkey, (B, cfg["num_channels"], cfg["image_size"], cfg["image_size"]),
        dtype=jnp.float32)

    fwd = jax.jit(lambda pv, pk: siglip_vision_transformer(pv, pk, cfg))
    out = fwd(pixel_values, packed)
    out = jax.block_until_ready(out)

    N = (cfg["image_size"] // cfg["patch_size"]) ** 2
    assert out.shape == (B, N, cfg["hidden_size"]), out.shape
    assert jnp.all(jnp.isfinite(out))
    print("KERNEL_OK")
</pallas_src>

<mosaic_0001>
module attributes {stable_mosaic.version = 11 : i64} {
  func.func @fused_vit_kernel(%arg0: memref<8x256xf32, #tpu.memory_space<vmem>>, %arg1: memref<256x32xf32, #tpu.memory_space<vmem>>, %arg2: memref<1x32xf32, #tpu.memory_space<vmem>>, %arg3: memref<8x32xf32, #tpu.memory_space<vmem>>, %arg4: memref<8x8xf32, #tpu.memory_space<vmem>>, %arg5: memref<2x1x32xf32, #tpu.memory_space<vmem>>, %arg6: memref<2x1x32xf32, #tpu.memory_space<vmem>>, %arg7: memref<2x4x32x8xf32, #tpu.memory_space<vmem>>, %arg8: memref<2x4x1x8xf32, #tpu.memory_space<vmem>>, %arg9: memref<2x4x32x8xf32, #tpu.memory_space<vmem>>, %arg10: memref<2x4x1x8xf32, #tpu.memory_space<vmem>>, %arg11: memref<2x4x32x8xf32, #tpu.memory_space<vmem>>, %arg12: memref<2x4x1x8xf32, #tpu.memory_space<vmem>>, %arg13: memref<2x4x8x32xf32, #tpu.memory_space<vmem>>, %arg14: memref<2x1x32xf32, #tpu.memory_space<vmem>>, %arg15: memref<2x1x32xf32, #tpu.memory_space<vmem>>, %arg16: memref<2x1x32xf32, #tpu.memory_space<vmem>>, %arg17: memref<2x32x64xf32, #tpu.memory_space<vmem>>, %arg18: memref<2x1x64xf32, #tpu.memory_space<vmem>>, %arg19: memref<2x64x32xf32, #tpu.memory_space<vmem>>, %arg20: memref<2x1x32xf32, #tpu.memory_space<vmem>>, %arg21: memref<1x32xf32, #tpu.memory_space<vmem>>, %arg22: memref<1x32xf32, #tpu.memory_space<vmem>>, %arg23: memref<8x32xf32, #tpu.memory_space<vmem>>) attributes {dimension_semantics = [], scalar_prefetch = 0 : i64, scratch_operands = 0 : i64, tpu.core_type = #tpu.core_type<tc>} {
    %c0 = arith.constant 0 : index
    %c0_0 = arith.constant 0 : index
    %0 = vector.load %arg0[%c0, %c0_0] : memref<8x256xf32, #tpu.memory_space<vmem>>, vector<8x256xf32>
    %c0_1 = arith.constant 0 : index
    %c0_2 = arith.constant 0 : index
    %1 = vector.load %arg1[%c0_1, %c0_2] : memref<256x32xf32, #tpu.memory_space<vmem>>, vector<256x32xf32>
    %cst = arith.constant dense<0.000000e+00> : vector<8x32xf32>
    %2 = tpu.matmul %0, %1, %cst {dimension_numbers = #tpu.dot_dimension_numbers<[1], [0], [0], [1], [0, 0, 1, 1], [], []>} : vector<8x256xf32>, vector<256x32xf32>, vector<8x32xf32> -> vector<8x32xf32>
    %c0_3 = arith.constant 0 : index
    %c0_4 = arith.constant 0 : index
    %3 = vector.load %arg2[%c0_3, %c0_4] : memref<1x32xf32, #tpu.memory_space<vmem>>, vector<1x32xf32>
    %4 = vector.broadcast %3 : vector<1x32xf32> to vector<8x32xf32>
    %5 = arith.addf %2, %4 : vector<8x32xf32>
    %c0_5 = arith.constant 0 : index
    %c0_6 = arith.constant 0 : index
    %6 = vector.load %arg3[%c0_5, %c0_6] : memref<8x32xf32, #tpu.memory_space<vmem>>, vector<8x32xf32>
    %7 = arith.addf %5, %6 : vector<8x32xf32>
    %c0_7 = arith.constant 0 : index
    %c0_8 = arith.constant 0 : index
    %8 = vector.load %arg4[%c0_7, %c0_8] : memref<8x8xf32, #tpu.memory_space<vmem>>, vector<8x8xf32>
    %c0_9 = arith.constant 0 : index
    %c0_10 = arith.constant 0 : index
    %c0_11 = arith.constant 0 : index
    %9 = vector.load %arg5[%c0_9, %c0_10, %c0_11] : memref<2x1x32xf32, #tpu.memory_space<vmem>>, vector<1x1x32xf32>
    %10 = vector.shape_cast %9 : vector<1x1x32xf32> to vector<1x32xf32>
    %c0_12 = arith.constant 0 : index
    %c0_13 = arith.constant 0 : index
    %c0_14 = arith.constant 0 : index
    %11 = vector.load %arg6[%c0_12, %c0_13, %c0_14] : memref<2x1x32xf32, #tpu.memory_space<vmem>>, vector<1x1x32xf32>
    %12 = vector.shape_cast %11 : vector<1x1x32xf32> to vector<1x32xf32>
    %cst_15 = arith.constant dense<0.000000e+00> : vector<8xf32>
    %13 = vector.multi_reduction <add>, %7, %cst_15 [1] : vector<8x32xf32> to vector<8xf32>
    %14 = vector.shape_cast %13 : vector<8xf32> to vector<8x1xf32>
    %cst_16 = arith.constant 3.200000e+01 : f32
    %15 = vector.broadcast %cst_16 : f32 to vector<8x1xf32>
    %16 = arith.divf %14, %15 : vector<8x1xf32>
    %17 = vector.broadcast %16 : vector<8x1xf32> to vector<8x32xf32>
    %18 = arith.subf %7, %17 : vector<8x32xf32>
    %19 = arith.mulf %18, %18 : vector<8x32xf32>
    %cst_17 = arith.constant dense<0.000000e+00> : vector<8xf32>
    %20 = vector.multi_reduction <add>, %19, %cst_17 [1] : vector<8x32xf32> to vector<8xf32>
    %21 = vector.shape_cast %20 : vector<8xf32> to vector<8x1xf32>
    %cst_18 = arith.constant 3.200000e+01 : f32
    %22 = vector.broadcast %cst_18 : f32 to vector<8x1xf32>
    %23 = arith.divf %21, %22 : vector<8x1xf32>
    %24 = vector.broadcast %16 : vector<8x1xf32> to vector<8x32xf32>
    %25 = arith.subf %7, %24 : vector<8x32xf32>
    %cst_19 = arith.constant 9.99999997E-7 : f32
    %26 = vector.broadcast %cst_19 : f32 to vector<8x1xf32>
    %27 = arith.addf %23, %26 : vector<8x1xf32>
    %28 = math.rsqrt %27 : vector<8x1xf32>
    %29 = vector.broadcast %28 : vector<8x1xf32> to vector<8x32xf32>
    %30 = arith.mulf %25, %29 : vector<8x32xf32>
    %31 = vector.broadcast %10 : vector<1x32xf32> to vector<8x32xf32>
    %32 = arith.mulf %30, %31 : vector<8x32xf32>
    %33 = vector.broadcast %12 : vector<1x32xf32> to vector<8x32xf32>
    %34 = arith.addf %32, %33 : vector<8x32xf32>
    %35 = vector.shape_cast %34 : vector<8x32xf32> to vector<1x8x32xf32>
    %36 = vector.shape_cast %35 : vector<1x8x32xf32> to vector<1x8x32xf32>
    %37 = vector.broadcast %36 : vector<1x8x32xf32> to vector<4x8x32xf32>
    %c0_20 = arith.constant 0 : index
    %c0_21 = arith.constant 0 : index
    %c0_22 = arith.constant 0 : index
    %c0_23 = arith.constant 0 : index
    %38 = vector.load %arg7[%c0_20, %c0_21, %c0_22, %c0_23] : memref<2x4x32x8xf32, #tpu.memory_space<vmem>>, vector<1x4x32x8xf32>
    %39 = vector.shape_cast %38 : vector<1x4x32x8xf32> to vector<4x32x8xf32>
    "tpu.trace_start"() <{level = 10 : i32, message = "hsd,hde->hse"}> : () -> ()
    %cst_24 = arith.constant dense<0.000000e+00> : vector<4x8x8xf32>
    %40 = tpu.matmul %37, %39, %cst_24 {dimension_numbers = #tpu.dot_dimension_numbers<[2], [1], [1], [2], [0, 0, 0, 1, 1, 2], [0], [0]>} : vector<4x8x32xf32>, vector<4x32x8xf32>, vector<4x8x8xf32> -> vector<4x8x8xf32>
    "tpu.trace_stop"() : () -> ()
    %c0_25 = arith.constant 0 : index
    %c0_26 = arith.constant 0 : index
    %c0_27 = arith.constant 0 : index
    %c0_28 = arith.constant 0 : index
    %41 = vector.load %arg8[%c0_25, %c0_26, %c0_27, %c0_28] : memref<2x4x1x8xf32, #tpu.memory_space<vmem>>, vector<1x4x1x8xf32>
    %42 = vector.shape_cast %41 : vector<1x4x1x8xf32> to vector<4x1x8xf32>
    %43 = vector.broadcast %42 : vector<4x1x8xf32> to vector<4x8x8xf32>
    %44 = arith.addf %40, %43 : vector<4x8x8xf32>
    %c0_29 = arith.constant 0 : index
    %c0_30 = arith.constant 0 : index
    %c0_31 = arith.constant 0 : index
    %c0_32 = arith.constant 0 : index
    %45 = vector.load %arg9[%c0_29, %c0_30, %c0_31, %c0_32] : memref<2x4x32x8xf32, #tpu.memory_space<vmem>>, vector<1x4x32x8xf32>
    %46 = vector.shape_cast %45 : vector<1x4x32x8xf32> to vector<4x32x8xf32>
    "tpu.trace_start"() <{level = 10 : i32, message = "hsd,hde->hse"}> : () -> ()
    %cst_33 = arith.constant dense<0.000000e+00> : vector<4x8x8xf32>
    %47 = tpu.matmul %37, %46, %cst_33 {dimension_numbers = #tpu.dot_dimension_numbers<[2], [1], [1], [2], [0, 0, 0, 1, 1, 2], [0], [0]>} : vector<4x8x32xf32>, vector<4x32x8xf32>, vector<4x8x8xf32> -> vector<4x8x8xf32>
    "tpu.trace_stop"() : () -> ()
    %c0_34 = arith.constant 0 : index
    %c0_35 = arith.constant 0 : index
    %c0_36 = arith.constant 0 : index
    %c0_37 = arith.constant 0 : index
    %48 = vector.load %arg10[%c0_34, %c0_35, %c0_36, %c0_37] : memref<2x4x1x8xf32, #tpu.memory_space<vmem>>, vector<1x4x1x8xf32>
    %49 = vector.shape_cast %48 : vector<1x4x1x8xf32> to vector<4x1x8xf32>
    %50 = vector.broadcast %49 : vector<4x1x8xf32> to vector<4x8x8xf32>
    %51 = arith.addf %47, %50 : vector<4x8x8xf32>
    %c0_38 = arith.constant 0 : index
    %c0_39 = arith.constant 0 : index
    %c0_40 = arith.constant 0 : index
    %c0_41 = arith.constant 0 : index
    %52 = vector.load %arg11[%c0_38, %c0_39, %c0_40, %c0_41] : memref<2x4x32x8xf32, #tpu.memory_space<vmem>>, vector<1x4x32x8xf32>
    %53 = vector.shape_cast %52 : vector<1x4x32x8xf32> to vector<4x32x8xf32>
    "tpu.trace_start"() <{level = 10 : i32, message = "hsd,hde->hse"}> : () -> ()
    %cst_42 = arith.constant dense<0.000000e+00> : vector<4x8x8xf32>
    %54 = tpu.matmul %37, %53, %cst_42 {dimension_numbers = #tpu.dot_dimension_numbers<[2], [1], [1], [2], [0, 0, 0, 1, 1, 2], [0], [0]>} : vector<4x8x32xf32>, vector<4x32x8xf32>, vector<4x8x8xf32> -> vector<4x8x8xf32>
    "tpu.trace_stop"() : () -> ()
    %c0_43 = arith.constant 0 : index
    %c0_44 = arith.constant 0 : index
    %c0_45 = arith.constant 0 : index
    %c0_46 = arith.constant 0 : index
    %55 = vector.load %arg12[%c0_43, %c0_44, %c0_45, %c0_46] : memref<2x4x1x8xf32, #tpu.memory_space<vmem>>, vector<1x4x1x8xf32>
    %56 = vector.shape_cast %55 : vector<1x4x1x8xf32> to vector<4x1x8xf32>
    %57 = vector.broadcast %56 : vector<4x1x8xf32> to vector<4x8x8xf32>
    %58 = arith.addf %54, %57 : vector<4x8x8xf32>
    "tpu.trace_start"() <{level = 10 : i32, message = "hqe,hke->hqk"}> : () -> ()
    %cst_47 = arith.constant dense<0.000000e+00> : vector<4x8x8xf32>
    %59 = tpu.matmul %44, %51, %cst_47 {dimension_numbers = #tpu.dot_dimension_numbers<[2], [2], [1], [1], [0, 0, 0, 1, 1, 1], [0], [0]>} : vector<4x8x8xf32>, vector<4x8x8xf32>, vector<4x8x8xf32> -> vector<4x8x8xf32>
    "tpu.trace_stop"() : () -> ()
    %60 = vector.shape_cast %8 : vector<8x8xf32> to vector<1x8x8xf32>
    %61 = vector.broadcast %60 : vector<1x8x8xf32> to vector<4x8x8xf32>
    %62 = arith.addf %59, %61 : vector<4x8x8xf32>
    %cst_48 = arith.constant dense<0xFF800000> : vector<4x8xf32>
    %63 = vector.multi_reduction <maximumf>, %62, %cst_48 [2] : vector<4x8x8xf32> to vector<4x8xf32>
    %64 = vector.shape_cast %63 : vector<4x8xf32> to vector<4x8x1xf32>
    %65 = vector.broadcast %64 : vector<4x8x1xf32> to vector<4x8x8xf32>
    %66 = arith.subf %62, %65 : vector<4x8x8xf32>
    %67 = math.exp %66 : vector<4x8x8xf32>
    %cst_49 = arith.constant dense<0.000000e+00> : vector<4x8xf32>
    %68 = vector.multi_reduction <add>, %67, %cst_49 [2] : vector<4x8x8xf32> to vector<4x8xf32>
    %69 = vector.shape_cast %68 : vector<4x8xf32> to vector<4x8x1xf32>
    %70 = tpu.reciprocal %69 {approx = true} : vector<4x8x1xf32> -> vector<4x8x1xf32>
    %71 = vector.broadcast %70 : vector<4x8x1xf32> to vector<4x8x8xf32>
    %72 = arith.mulf %67, %71 : vector<4x8x8xf32>
    "tpu.trace_start"() <{level = 10 : i32, message = "hqk,hke->hqe"}> : () -> ()
    %cst_50 = arith.constant dense<0.000000e+00> : vector<4x8x8xf32>
    %73 = tpu.matmul %72, %58, %cst_50 {dimension_numbers = #tpu.dot_dimension_numbers<[2], [1], [1], [2], [0, 0, 0, 1, 1, 2], [0], [0]>} : vector<4x8x8xf32>, vector<4x8x8xf32>, vector<4x8x8xf32> -> vector<4x8x8xf32>
    "tpu.trace_stop"() : () -> ()
    %c0_51 = arith.constant 0 : index
    %c0_52 = arith.constant 0 : index
    %c0_53 = arith.constant 0 : index
    %c0_54 = arith.constant 0 : index
    %74 = vector.load %arg13[%c0_51, %c0_52, %c0_53, %c0_54] : memref<2x4x8x32xf32, #tpu.memory_space<vmem>>, vector<1x4x8x32xf32>
    %75 = vector.shape_cast %74 : vector<1x4x8x32xf32> to vector<4x8x32xf32>
    "tpu.trace_start"() <{level = 10 : i32, message = "hqe,hed->hqd"}> : () -> ()
    %cst_55 = arith.constant dense<0.000000e+00> : vector<4x8x32xf32>
    %76 = tpu.matmul %73, %75, %cst_55 {dimension_numbers = #tpu.dot_dimension_numbers<[2], [1], [1], [2], [0, 0, 0, 1, 1, 2], [0], [0]>} : vector<4x8x8xf32>, vector<4x8x32xf32>, vector<4x8x32xf32> -> vector<4x8x32xf32>
    "tpu.trace_stop"() : () -> ()
    %cst_56 = arith.constant dense<0.000000e+00> : vector<8x32xf32>
    %77 = vector.multi_reduction <add>, %76, %cst_56 [0] : vector<4x8x32xf32> to vector<8x32xf32>
    %78 = arith.addf %7, %77 : vector<8x32xf32>
    %c0_57 = arith.constant 0 : index
    %c0_58 = arith.constant 0 : index
    %c0_59 = arith.constant 0 : index
    %79 = vector.load %arg14[%c0_57, %c0_58, %c0_59] : memref<2x1x32xf32, #tpu.memory_space<vmem>>, vector<1x1x32xf32>
    %80 = vector.shape_cast %79 : vector<1x1x32xf32> to vector<1x32xf32>
    %81 = vector.broadcast %80 : vector<1x32xf32> to vector<8x32xf32>
    %82 = arith.addf %78, %81 : vector<8x32xf32>
    %c0_60 = arith.constant 0 : index
    %c0_61 = arith.constant 0 : index
    %c0_62 = arith.constant 0 : index
    %83 = vector.load %arg15[%c0_60, %c0_61, %c0_62] : memref<2x1x32xf32, #tpu.memory_space<vmem>>, vector<1x1x32xf32>
    %84 = vector.shape_cast %83 : vector<1x1x32xf32> to vector<1x32xf32>
    %c0_63 = arith.constant 0 : index
    %c0_64 = arith.constant 0 : index
    %c0_65 = arith.constant 0 : index
    %85 = vector.load %arg16[%c0_63, %c0_64, %c0_65] : memref<2x1x32xf32, #tpu.memory_space<vmem>>, vector<1x1x32xf32>
    %86 = vector.shape_cast %85 : vector<1x1x32xf32> to vector<1x32xf32>
    %cst_66 = arith.constant dense<0.000000e+00> : vector<8xf32>
    %87 = vector.multi_reduction <add>, %82, %cst_66 [1] : vector<8x32xf32> to vector<8xf32>
    %88 = vector.shape_cast %87 : vector<8xf32> to vector<8x1xf32>
    %cst_67 = arith.constant 3.200000e+01 : f32
    %89 = vector.broadcast %cst_67 : f32 to vector<8x1xf32>
    %90 = arith.divf %88, %89 : vector<8x1xf32>
    %91 = vector.broadcast %90 : vector<8x1xf32> to vector<8x32xf32>
    %92 = arith.subf %82, %91 : vector<8x32xf32>
    %93 = arith.mulf %92, %92 : vector<8x32xf32>
    %cst_68 = arith.constant dense<0.000000e+00> : vector<8xf32>
    %94 = vector.multi_reduction <add>, %93, %cst_68 [1] : vector<8x32xf32> to vector<8xf32>
    %95 = vector.shape_cast %94 : vector<8xf32> to vector<8x1xf32>
    %cst_69 = arith.constant 3.200000e+01 : f32
    %96 = vector.broadcast %cst_69 : f32 to vector<8x1xf32>
    %97 = arith.divf %95, %96 : vector<8x1xf32>
    %98 = vector.broadcast %90 : vector<8x1xf32> to vector<8x32xf32>
    %99 = arith.subf %82, %98 : vector<8x32xf32>
    %cst_70 = arith.constant 9.99999997E-7 : f32
    %100 = vector.broadcast %cst_70 : f32 to vector<8x1xf32>
    %101 = arith.addf %97, %100 : vector<8x1xf32>
    %102 = math.rsqrt %101 : vector<8x1xf32>
    %103 = vector.broadcast %102 : vector<8x1xf32> to vector<8x32xf32>
    %104 = arith.mulf %99, %103 : vector<8x32xf32>
    %105 = vector.broadcast %84 : vector<1x32xf32> to vector<8x32xf32>
    %106 = arith.mulf %104, %105 : vector<8x32xf32>
    %107 = vector.broadcast %86 : vector<1x32xf32> to vector<8x32xf32>
    %108 = arith.addf %106, %107 : vector<8x32xf32>
    %c0_71 = arith.constant 0 : index
    %c0_72 = arith.constant 0 : index
    %c0_73 = arith.constant 0 : index
    %109 = vector.load %arg17[%c0_71, %c0_72, %c0_73] : memref<2x32x64xf32, #tpu.memory_space<vmem>>, vector<1x32x64xf32>
    %110 = vector.shape_cast %109 : vector<1x32x64xf32> to vector<32x64xf32>
    %cst_74 = arith.constant dense<0.000000e+00> : vector<8x64xf32>
    %111 = tpu.matmul %108, %110, %cst_74 {dimension_numbers = #tpu.dot_dimension_numbers<[1], [0], [0], [1], [0, 0, 1, 1], [], []>} : vector<8x32xf32>, vector<32x64xf32>, vector<8x64xf32> -> vector<8x64xf32>
    %c0_75 = arith.constant 0 : index
    %c0_76 = arith.constant 0 : index
    %c0_77 = arith.constant 0 : index
    %112 = vector.load %arg18[%c0_75, %c0_76, %c0_77] : memref<2x1x64xf32, #tpu.memory_space<vmem>>, vector<1x1x64xf32>
    %113 = vector.shape_cast %112 : vector<1x1x64xf32> to vector<1x64xf32>
    %114 = vector.broadcast %113 : vector<1x64xf32> to vector<8x64xf32>
    %115 = arith.addf %111, %114 : vector<8x64xf32>
    %cst_78 = arith.constant 5.000000e-01 : f32
    %116 = vector.broadcast %cst_78 : f32 to vector<8x64xf32>
    %117 = arith.mulf %116, %115 : vector<8x64xf32>
    %cst_79 = arith.constant 4.471500e-02 : f32
    %118 = vector.broadcast %cst_79 : f32 to vector<8x64xf32>
    %119 = arith.mulf %118, %115 : vector<8x64xf32>
    %120 = arith.mulf %119, %115 : vector<8x64xf32>
    %121 = arith.mulf %120, %115 : vector<8x64xf32>
    %122 = arith.addf %115, %121 : vector<8x64xf32>
    %cst_80 = arith.constant 0.797884583 : f32
    %123 = vector.broadcast %cst_80 : f32 to vector<8x64xf32>
    %124 = arith.mulf %123, %122 : vector<8x64xf32>
    %125 = math.tanh %124 : vector<8x64xf32>
    %cst_81 = arith.constant 1.000000e+00 : f32
    %126 = vector.broadcast %cst_81 : f32 to vector<8x64xf32>
    %127 = arith.addf %126, %125 : vector<8x64xf32>
    %128 = arith.mulf %117, %127 : vector<8x64xf32>
    %c0_82 = arith.constant 0 : index
    %c0_83 = arith.constant 0 : index
    %c0_84 = arith.constant 0 : index
    %129 = vector.load %arg19[%c0_82, %c0_83, %c0_84] : memref<2x64x32xf32, #tpu.memory_space<vmem>>, vector<1x64x32xf32>
    %130 = vector.shape_cast %129 : vector<1x64x32xf32> to vector<64x32xf32>
    %cst_85 = arith.constant dense<0.000000e+00> : vector<8x32xf32>
    %131 = tpu.matmul %128, %130, %cst_85 {dimension_numbers = #tpu.dot_dimension_numbers<[1], [0], [0], [1], [0, 0, 1, 1], [], []>} : vector<8x64xf32>, vector<64x32xf32>, vector<8x32xf32> -> vector<8x32xf32>
    %c0_86 = arith.constant 0 : index
    %c0_87 = arith.constant 0 : index
    %c0_88 = arith.constant 0 : index
    %132 = vector.load %arg20[%c0_86, %c0_87, %c0_88] : memref<2x1x32xf32, #tpu.memory_space<vmem>>, vector<1x1x32xf32>
    %133 = vector.shape_cast %132 : vector<1x1x32xf32> to vector<1x32xf32>
    %134 = vector.broadcast %133 : vector<1x32xf32> to vector<8x32xf32>
    %135 = arith.addf %131, %134 : vector<8x32xf32>
    %136 = arith.addf %82, %135 : vector<8x32xf32>
    %c1 = arith.constant 1 : index
    %c0_89 = arith.constant 0 : index
    %c0_90 = arith.constant 0 : index
    %137 = vector.load %arg5[%c1, %c0_89, %c0_90] : memref<2x1x32xf32, #tpu.memory_space<vmem>>, vector<1x1x32xf32>
    %138 = vector.shape_cast %137 : vector<1x1x32xf32> to vector<1x32xf32>
    %c1_91 = arith.constant 1 : index
    %c0_92 = arith.constant 0 : index
    %c0_93 = arith.constant 0 : index
    %139 = vector.load %arg6[%c1_91, %c0_92, %c0_93] : memref<2x1x32xf32, #tpu.memory_space<vmem>>, vector<1x1x32xf32>
    %140 = vector.shape_cast %139 : vector<1x1x32xf32> to vector<1x32xf32>
    %cst_94 = arith.constant dense<0.000000e+00> : vector<8xf32>
    %141 = vector.multi_reduction <add>, %136, %cst_94 [1] : vector<8x32xf32> to vector<8xf32>
    %142 = vector.shape_cast %141 : vector<8xf32> to vector<8x1xf32>
    %cst_95 = arith.constant 3.200000e+01 : f32
    %143 = vector.broadcast %cst_95 : f32 to vector<8x1xf32>
    %144 = arith.divf %142, %143 : vector<8x1xf32>
    %145 = vector.broadcast %144 : vector<8x1xf32> to vector<8x32xf32>
    %146 = arith.subf %136, %145 : vector<8x32xf32>
    %147 = arith.mulf %146, %146 : vector<8x32xf32>
    %cst_96 = arith.constant dense<0.000000e+00> : vector<8xf32>
    %148 = vector.multi_reduction <add>, %147, %cst_96 [1] : vector<8x32xf32> to vector<8xf32>
    %149 = vector.shape_cast %148 : vector<8xf32> to vector<8x1xf32>
    %cst_97 = arith.constant 3.200000e+01 : f32
    %150 = vector.broadcast %cst_97 : f32 to vector<8x1xf32>
    %151 = arith.divf %149, %150 : vector<8x1xf32>
    %152 = vector.broadcast %144 : vector<8x1xf32> to vector<8x32xf32>
    %153 = arith.subf %136, %152 : vector<8x32xf32>
    %cst_98 = arith.constant 9.99999997E-7 : f32
    %154 = vector.broadcast %cst_98 : f32 to vector<8x1xf32>
    %155 = arith.addf %151, %154 : vector<8x1xf32>
    %156 = math.rsqrt %155 : vector<8x1xf32>
    %157 = vector.broadcast %156 : vector<8x1xf32> to vector<8x32xf32>
    %158 = arith.mulf %153, %157 : vector<8x32xf32>
    %159 = vector.broadcast %138 : vector<1x32xf32> to vector<8x32xf32>
    %160 = arith.mulf %158, %159 : vector<8x32xf32>
    %161 = vector.broadcast %140 : vector<1x32xf32> to vector<8x32xf32>
    %162 = arith.addf %160, %161 : vector<8x32xf32>
    %163 = vector.shape_cast %162 : vector<8x32xf32> to vector<1x8x32xf32>
    %164 = vector.shape_cast %163 : vector<1x8x32xf32> to vector<1x8x32xf32>
    %165 = vector.broadcast %164 : vector<1x8x32xf32> to vector<4x8x32xf32>
    %c1_99 = arith.constant 1 : index
    %c0_100 = arith.constant 0 : index
    %c0_101 = arith.constant 0 : index
    %c0_102 = arith.constant 0 : index
    %166 = vector.load %arg7[%c1_99, %c0_100, %c0_101, %c0_102] : memref<2x4x32x8xf32, #tpu.memory_space<vmem>>, vector<1x4x32x8xf32>
    %167 = vector.shape_cast %166 : vector<1x4x32x8xf32> to vector<4x32x8xf32>
    "tpu.trace_start"() <{level = 10 : i32, message = "hsd,hde->hse"}> : () -> ()
    %cst_103 = arith.constant dense<0.000000e+00> : vector<4x8x8xf32>
    %168 = tpu.matmul %165, %167, %cst_103 {dimension_numbers = #tpu.dot_dimension_numbers<[2], [1], [1], [2], [0, 0, 0, 1, 1, 2], [0], [0]>} : vector<4x8x32xf32>, vector<4x32x8xf32>, vector<4x8x8xf32> -> vector<4x8x8xf32>
    "tpu.trace_stop"() : () -> ()
    %c1_104 = arith.constant 1 : index
    %c0_105 = arith.constant 0 : index
    %c0_106 = arith.constant 0 : index
    %c0_107 = arith.constant 0 : index
    %169 = vector.load %arg8[%c1_104, %c0_105, %c0_106, %c0_107] : memref<2x4x1x8xf32, #tpu.memory_space<vmem>>, vector<1x4x1x8xf32>
    %170 = vector.shape_cast %169 : vector<1x4x1x8xf32> to vector<4x1x8xf32>
    %171 = vector.broadcast %170 : vector<4x1x8xf32> to vector<4x8x8xf32>
    %172 = arith.addf %168, %171 : vector<4x8x8xf32>
    %c1_108 = arith.constant 1 : index
    %c0_109 = arith.constant 0 : index
    %c0_110 = arith.constant 0 : index
    %c0_111 = arith.constant 0 : index
    %173 = vector.load %arg9[%c1_108, %c0_109, %c0_110, %c0_111] : memref<2x4x32x8xf32, #tpu.memory_space<vmem>>, vector<1x4x32x8xf32>
    %174 = vector.shape_cast %173 : vector<1x4x32x8xf32> to vector<4x32x8xf32>
    "tpu.trace_start"() <{level = 10 : i32, message = "hsd,hde->hse"}> : () -> ()
    %cst_112 = arith.constant dense<0.000000e+00> : vector<4x8x8xf32>
    %175 = tpu.matmul %165, %174, %cst_112 {dimension_numbers = #tpu.dot_dimension_numbers<[2], [1], [1], [2], [0, 0, 0, 1, 1, 2], [0], [0]>} : vector<4x8x32xf32>, vector<4x32x8xf32>, vector<4x8x8xf32> -> vector<4x8x8xf32>
    "tpu.trace_stop"() : () -> ()
    %c1_113 = arith.constant 1 : index
    %c0_114 = arith.constant 0 : index
    %c0_115 = arith.constant 0 : index
    %c0_116 = arith.constant 0 : index
    %176 = vector.load %arg10[%c1_113, %c0_114, %c0_115, %c0_116] : memref<2x4x1x8xf32, #tpu.memory_space<vmem>>, vector<1x4x1x8xf32>
    %177 = vector.shape_cast %176 : vector<1x4x1x8xf32> to vector<4x1x8xf32>
    %178 = vector.broadcast %177 : vector<4x1x8xf32> to vector<4x8x8xf32>
    %179 = arith.addf %175, %178 : vector<4x8x8xf32>
    %c1_117 = arith.constant 1 : index
    %c0_118 = arith.constant 0 : index
    %c0_119 = arith.constant 0 : index
    %c0_120 = arith.constant 0 : index
    %180 = vector.load %arg11[%c1_117, %c0_118, %c0_119, %c0_120] : memref<2x4x32x8xf32, #tpu.memory_space<vmem>>, vector<1x4x32x8xf32>
    %181 = vector.shape_cast %180 : vector<1x4x32x8xf32> to vector<4x32x8xf32>
    "tpu.trace_start"() <{level = 10 : i32, message = "hsd,hde->hse"}> : () -> ()
    %cst_121 = arith.constant dense<0.000000e+00> : vector<4x8x8xf32>
    %182 = tpu.matmul %165, %181, %cst_121 {dimension_numbers = #tpu.dot_dimension_numbers<[2], [1], [1], [2], [0, 0, 0, 1, 1, 2], [0], [0]>} : vector<4x8x32xf32>, vector<4x32x8xf32>, vector<4x8x8xf32> -> vector<4x8x8xf32>
    "tpu.trace_stop"() : () -> ()
    %c1_122 = arith.constant 1 : index
    %c0_123 = arith.constant 0 : index
    %c0_124 = arith.constant 0 : index
    %c0_125 = arith.constant 0 : index
    %183 = vector.load %arg12[%c1_122, %c0_123, %c0_124, %c0_125] : memref<2x4x1x8xf32, #tpu.memory_space<vmem>>, vector<1x4x1x8xf32>
    %184 = vector.shape_cast %183 : vector<1x4x1x8xf32> to vector<4x1x8xf32>
    %185 = vector.broadcast %184 : vector<4x1x8xf32> to vector<4x8x8xf32>
    %186 = arith.addf %182, %185 : vector<4x8x8xf32>
    "tpu.trace_start"() <{level = 10 : i32, message = "hqe,hke->hqk"}> : () -> ()
    %cst_126 = arith.constant dense<0.000000e+00> : vector<4x8x8xf32>
    %187 = tpu.matmul %172, %179, %cst_126 {dimension_numbers = #tpu.dot_dimension_numbers<[2], [2], [1], [1], [0, 0, 0, 1, 1, 1], [0], [0]>} : vector<4x8x8xf32>, vector<4x8x8xf32>, vector<4x8x8xf32> -> vector<4x8x8xf32>
    "tpu.trace_stop"() : () -> ()
    %188 = vector.shape_cast %8 : vector<8x8xf32> to vector<1x8x8xf32>
    %189 = vector.broadcast %188 : vector<1x8x8xf32> to vector<4x8x8xf32>
    %190 = arith.addf %187, %189 : vector<4x8x8xf32>
    %cst_127 = arith.constant dense<0xFF800000> : vector<4x8xf32>
    %191 = vector.multi_reduction <maximumf>, %190, %cst_127 [2] : vector<4x8x8xf32> to vector<4x8xf32>
    %192 = vector.shape_cast %191 : vector<4x8xf32> to vector<4x8x1xf32>
    %193 = vector.broadcast %192 : vector<4x8x1xf32> to vector<4x8x8xf32>
    %194 = arith.subf %190, %193 : vector<4x8x8xf32>
    %195 = math.exp %194 : vector<4x8x8xf32>
    %cst_128 = arith.constant dense<0.000000e+00> : vector<4x8xf32>
    %196 = vector.multi_reduction <add>, %195, %cst_128 [2] : vector<4x8x8xf32> to vector<4x8xf32>
    %197 = vector.shape_cast %196 : vector<4x8xf32> to vector<4x8x1xf32>
    %198 = tpu.reciprocal %197 {approx = true} : vector<4x8x1xf32> -> vector<4x8x1xf32>
    %199 = vector.broadcast %198 : vector<4x8x1xf32> to vector<4x8x8xf32>
    %200 = arith.mulf %195, %199 : vector<4x8x8xf32>
    "tpu.trace_start"() <{level = 10 : i32, message = "hqk,hke->hqe"}> : () -> ()
    %cst_129 = arith.constant dense<0.000000e+00> : vector<4x8x8xf32>
    %201 = tpu.matmul %200, %186, %cst_129 {dimension_numbers = #tpu.dot_dimension_numbers<[2], [1], [1], [2], [0, 0, 0, 1, 1, 2], [0], [0]>} : vector<4x8x8xf32>, vector<4x8x8xf32>, vector<4x8x8xf32> -> vector<4x8x8xf32>
    "tpu.trace_stop"() : () -> ()
    %c1_130 = arith.constant 1 : index
    %c0_131 = arith.constant 0 : index
    %c0_132 = arith.constant 0 : index
    %c0_133 = arith.constant 0 : index
    %202 = vector.load %arg13[%c1_130, %c0_131, %c0_132, %c0_133] : memref<2x4x8x32xf32, #tpu.memory_space<vmem>>, vector<1x4x8x32xf32>
    %203 = vector.shape_cast %202 : vector<1x4x8x32xf32> to vector<4x8x32xf32>
    "tpu.trace_start"() <{level = 10 : i32, message = "hqe,hed->hqd"}> : () -> ()
    %cst_134 = arith.constant dense<0.000000e+00> : vector<4x8x32xf32>
    %204 = tpu.matmul %201, %203, %cst_134 {dimension_numbers = #tpu.dot_dimension_numbers<[2], [1], [1], [2], [0, 0, 0, 1, 1, 2], [0], [0]>} : vector<4x8x8xf32>, vector<4x8x32xf32>, vector<4x8x32xf32> -> vector<4x8x32xf32>
    "tpu.trace_stop"() : () -> ()
    %cst_135 = arith.constant dense<0.000000e+00> : vector<8x32xf32>
    %205 = vector.multi_reduction <add>, %204, %cst_135 [0] : vector<4x8x32xf32> to vector<8x32xf32>
    %206 = arith.addf %136, %205 : vector<8x32xf32>
    %c1_136 = arith.constant 1 : index
    %c0_137 = arith.constant 0 : index
    %c0_138 = arith.constant 0 : index
    %207 = vector.load %arg14[%c1_136, %c0_137, %c0_138] : memref<2x1x32xf32, #tpu.memory_space<vmem>>, vector<1x1x32xf32>
    %208 = vector.shape_cast %207 : vector<1x1x32xf32> to vector<1x32xf32>
    %209 = vector.broadcast %208 : vector<1x32xf32> to vector<8x32xf32>
    %210 = arith.addf %206, %209 : vector<8x32xf32>
    %c1_139 = arith.constant 1 : index
    %c0_140 = arith.constant 0 : index
    %c0_141 = arith.constant 0 : index
    %211 = vector.load %arg15[%c1_139, %c0_140, %c0_141] : memref<2x1x32xf32, #tpu.memory_space<vmem>>, vector<1x1x32xf32>
    %212 = vector.shape_cast %211 : vector<1x1x32xf32> to vector<1x32xf32>
    %c1_142 = arith.constant 1 : index
    %c0_143 = arith.constant 0 : index
    %c0_144 = arith.constant 0 : index
    %213 = vector.load %arg16[%c1_142, %c0_143, %c0_144] : memref<2x1x32xf32, #tpu.memory_space<vmem>>, vector<1x1x32xf32>
    %214 = vector.shape_cast %213 : vector<1x1x32xf32> to vector<1x32xf32>
    %cst_145 = arith.constant dense<0.000000e+00> : vector<8xf32>
    %215 = vector.multi_reduction <add>, %210, %cst_145 [1] : vector<8x32xf32> to vector<8xf32>
    %216 = vector.shape_cast %215 : vector<8xf32> to vector<8x1xf32>
    %cst_146 = arith.constant 3.200000e+01 : f32
    %217 = vector.broadcast %cst_146 : f32 to vector<8x1xf32>
    %218 = arith.divf %216, %217 : vector<8x1xf32>
    %219 = vector.broadcast %218 : vector<8x1xf32> to vector<8x32xf32>
    %220 = arith.subf %210, %219 : vector<8x32xf32>
    %221 = arith.mulf %220, %220 : vector<8x32xf32>
    %cst_147 = arith.constant dense<0.000000e+00> : vector<8xf32>
    %222 = vector.multi_reduction <add>, %221, %cst_147 [1] : vector<8x32xf32> to vector<8xf32>
    %223 = vector.shape_cast %222 : vector<8xf32> to vector<8x1xf32>
    %cst_148 = arith.constant 3.200000e+01 : f32
    %224 = vector.broadcast %cst_148 : f32 to vector<8x1xf32>
    %225 = arith.divf %223, %224 : vector<8x1xf32>
    %226 = vector.broadcast %218 : vector<8x1xf32> to vector<8x32xf32>
    %227 = arith.subf %210, %226 : vector<8x32xf32>
    %cst_149 = arith.constant 9.99999997E-7 : f32
    %228 = vector.broadcast %cst_149 : f32 to vector<8x1xf32>
    %229 = arith.addf %225, %228 : vector<8x1xf32>
    %230 = math.rsqrt %229 : vector<8x1xf32>
    %231 = vector.broadcast %230 : vector<8x1xf32> to vector<8x32xf32>
    %232 = arith.mulf %227, %231 : vector<8x32xf32>
    %233 = vector.broadcast %212 : vector<1x32xf32> to vector<8x32xf32>
    %234 = arith.mulf %232, %233 : vector<8x32xf32>
    %235 = vector.broadcast %214 : vector<1x32xf32> to vector<8x32xf32>
    %236 = arith.addf %234, %235 : vector<8x32xf32>
    %c1_150 = arith.constant 1 : index
    %c0_151 = arith.constant 0 : index
    %c0_152 = arith.constant 0 : index
    %237 = vector.load %arg17[%c1_150, %c0_151, %c0_152] : memref<2x32x64xf32, #tpu.memory_space<vmem>>, vector<1x32x64xf32>
    %238 = vector.shape_cast %237 : vector<1x32x64xf32> to vector<32x64xf32>
    %cst_153 = arith.constant dense<0.000000e+00> : vector<8x64xf32>
    %239 = tpu.matmul %236, %238, %cst_153 {dimension_numbers = #tpu.dot_dimension_numbers<[1], [0], [0], [1], [0, 0, 1, 1], [], []>} : vector<8x32xf32>, vector<32x64xf32>, vector<8x64xf32> -> vector<8x64xf32>
    %c1_154 = arith.constant 1 : index
    %c0_155 = arith.constant 0 : index
    %c0_156 = arith.constant 0 : index
    %240 = vector.load %arg18[%c1_154, %c0_155, %c0_156] : memref<2x1x64xf32, #tpu.memory_space<vmem>>, vector<1x1x64xf32>
    %241 = vector.shape_cast %240 : vector<1x1x64xf32> to vector<1x64xf32>
    %242 = vector.broadcast %241 : vector<1x64xf32> to vector<8x64xf32>
    %243 = arith.addf %239, %242 : vector<8x64xf32>
    %cst_157 = arith.constant 5.000000e-01 : f32
    %244 = vector.broadcast %cst_157 : f32 to vector<8x64xf32>
    %245 = arith.mulf %244, %243 : vector<8x64xf32>
    %cst_158 = arith.constant 4.471500e-02 : f32
    %246 = vector.broadcast %cst_158 : f32 to vector<8x64xf32>
    %247 = arith.mulf %246, %243 : vector<8x64xf32>
    %248 = arith.mulf %247, %243 : vector<8x64xf32>
    %249 = arith.mulf %248, %243 : vector<8x64xf32>
    %250 = arith.addf %243, %249 : vector<8x64xf32>
    %cst_159 = arith.constant 0.797884583 : f32
    %251 = vector.broadcast %cst_159 : f32 to vector<8x64xf32>
    %252 = arith.mulf %251, %250 : vector<8x64xf32>
    %253 = math.tanh %252 : vector<8x64xf32>
    %cst_160 = arith.constant 1.000000e+00 : f32
    %254 = vector.broadcast %cst_160 : f32 to vector<8x64xf32>
    %255 = arith.addf %254, %253 : vector<8x64xf32>
    %256 = arith.mulf %245, %255 : vector<8x64xf32>
    %c1_161 = arith.constant 1 : index
    %c0_162 = arith.constant 0 : index
    %c0_163 = arith.constant 0 : index
    %257 = vector.load %arg19[%c1_161, %c0_162, %c0_163] : memref<2x64x32xf32, #tpu.memory_space<vmem>>, vector<1x64x32xf32>
    %258 = vector.shape_cast %257 : vector<1x64x32xf32> to vector<64x32xf32>
    %cst_164 = arith.constant dense<0.000000e+00> : vector<8x32xf32>
    %259 = tpu.matmul %256, %258, %cst_164 {dimension_numbers = #tpu.dot_dimension_numbers<[1], [0], [0], [1], [0, 0, 1, 1], [], []>} : vector<8x64xf32>, vector<64x32xf32>, vector<8x32xf32> -> vector<8x32xf32>
    %c1_165 = arith.constant 1 : index
    %c0_166 = arith.constant 0 : index
    %c0_167 = arith.constant 0 : index
    %260 = vector.load %arg20[%c1_165, %c0_166, %c0_167] : memref<2x1x32xf32, #tpu.memory_space<vmem>>, vector<1x1x32xf32>
    %261 = vector.shape_cast %260 : vector<1x1x32xf32> to vector<1x32xf32>
    %262 = vector.broadcast %261 : vector<1x32xf32> to vector<8x32xf32>
    %263 = arith.addf %259, %262 : vector<8x32xf32>
    %264 = arith.addf %210, %263 : vector<8x32xf32>
    %c0_168 = arith.constant 0 : index
    %c0_169 = arith.constant 0 : index
    %265 = vector.load %arg21[%c0_168, %c0_169] : memref<1x32xf32, #tpu.memory_space<vmem>>, vector<1x32xf32>
    %c0_170 = arith.constant 0 : index
    %c0_171 = arith.constant 0 : index
    %266 = vector.load %arg22[%c0_170, %c0_171] : memref<1x32xf32, #tpu.memory_space<vmem>>, vector<1x32xf32>
    %cst_172 = arith.constant dense<0.000000e+00> : vector<8xf32>
    %267 = vector.multi_reduction <add>, %264, %cst_172 [1] : vector<8x32xf32> to vector<8xf32>
    %268 = vector.shape_cast %267 : vector<8xf32> to vector<8x1xf32>
    %cst_173 = arith.constant 3.200000e+01 : f32
    %269 = vector.broadcast %cst_173 : f32 to vector<8x1xf32>
    %270 = arith.divf %268, %269 : vector<8x1xf32>
    %271 = vector.broadcast %270 : vector<8x1xf32> to vector<8x32xf32>
    %272 = arith.subf %264, %271 : vector<8x32xf32>
    %273 = arith.mulf %272, %272 : vector<8x32xf32>
    %cst_174 = arith.constant dense<0.000000e+00> : vector<8xf32>
    %274 = vector.multi_reduction <add>, %273, %cst_174 [1] : vector<8x32xf32> to vector<8xf32>
    %275 = vector.shape_cast %274 : vector<8xf32> to vector<8x1xf32>
    %cst_175 = arith.constant 3.200000e+01 : f32
    %276 = vector.broadcast %cst_175 : f32 to vector<8x1xf32>
    %277 = arith.divf %275, %276 : vector<8x1xf32>
    %278 = vector.broadcast %270 : vector<8x1xf32> to vector<8x32xf32>
    %279 = arith.subf %264, %278 : vector<8x32xf32>
    %cst_176 = arith.constant 9.99999997E-7 : f32
    %280 = vector.broadcast %cst_176 : f32 to vector<8x1xf32>
    %281 = arith.addf %277, %280 : vector<8x1xf32>
    %282 = math.rsqrt %281 : vector<8x1xf32>
    %283 = vector.broadcast %282 : vector<8x1xf32> to vector<8x32xf32>
    %284 = arith.mulf %279, %283 : vector<8x32xf32>
    %285 = vector.broadcast %265 : vector<1x32xf32> to vector<8x32xf32>
    %286 = arith.mulf %284, %285 : vector<8x32xf32>
    %287 = vector.broadcast %266 : vector<1x32xf32> to vector<8x32xf32>
    %288 = arith.addf %286, %287 : vector<8x32xf32>
    %c0_177 = arith.constant 0 : index
    %c0_178 = arith.constant 0 : index
    %289 = vector.load %arg23[%c0_177, %c0_178] : memref<8x32xf32, #tpu.memory_space<vmem>>, vector<8x32xf32>
    tpu.vector_store %arg23[%c0_177, %c0_178], %288 {strides = array<i32>} : memref<8x32xf32, #tpu.memory_space<vmem>>, vector<8x32xf32>,
    return
  }
}

</mosaic_0001>

<llo_original>
// kernel: eq.8
$region0: #{eq.8}
  %s0 = inlined_call_operand.vmem [shape: s32[2,4], index: 0, kind: input, shape index: {}]
  %s1 = inlined_call_operand.vmem [shape: s32[8], index: 1, kind: output, shape index: {}]
  $region1: #{eq.8} parent=0
    #allocation0 [shape = 'u8[4096]{0}', space=vmem, size = 0x1000, scoped, tag = 'scoped mem for output reshape']
    #allocation1 [shape = 'u8[4096]{0}', space=vmem, size = 0x1000, scoped, tag = 'scoped mem for input reshape']
    %s3 = sshllo.u32 0, 2
    %v4 = vld [vmem:[%s0] sm:%s3]
    %5 = vst [vmem:[#allocation1] sm:%s3] %v4
    %v6 = vld [vmem:[#allocation1] sm:$0x1]
    %vm7 = vcmask 31744
    %8 = vst.msk [vmem:[#allocation0] sm:$0x1] %vm7, %v6
    %s9 = scalar_lea.vmem [#allocation1], 1
    %v10 = vld [vmem:[%s9] sm:$0x1]
    %11 = vrot.lane.b32.xlu0 %v10, 4
    %v12 = vpop.permute.xlu0 %11
    %vm13 = vcmask 64544
    %14 = vst.msk [vmem:[#allocation0] sm:$0x1] %vm13, %v12
    %s16 = sshllo.u32 0, 1
    %v18 = vld [vmem:[#allocation0] sm:%s16]
    %s19 = sshllo.u32 0, 1
    %20 = vst [vmem:[%s1] sm:%s19] %v18

// kernel: _lambda_.1
$region0: #{_lambda_.1}
  #allocation0 [shape = 'u32[]', space=smem, size = 0x4, offset = 0x4, fixed_abs, tag = 'smem constant byte address 0x4 - core index']
  #allocation1 [shape = 'u32[144,128]{1,0:T(1,128)}', space=vmem, size = 0x12000, scoped, tag = 'internal scratch']
  %s0 = inlined_call_operand.vmem [shape: f32[8,256], index: 0, kind: input, shape index: {}]
  %s1 = inlined_call_operand.vmem [shape: f32[256,32], index: 1, kind: input, shape index: {}]
  %s2 = inlined_call_operand.vmem [shape: f32[1,32], index: 2, kind: input, shape index: {}]
  %s3 = inlined_call_operand.vmem [shape: f32[8,32], index: 3, kind: input, shape index: {}]
  %s4 = inlined_call_operand.vmem [shape: f32[8,8], index: 4, kind: input, shape index: {}]
  %s5 = inlined_call_operand.vmem [shape: f32[2,1,32], index: 5, kind: input, shape index: {}]
  %s6 = inlined_call_operand.vmem [shape: f32[2,1,32], index: 6, kind: input, shape index: {}]
  %s7 = inlined_call_operand.vmem [shape: f32[2,4,32,8], index: 7, kind: input, shape index: {}]
  %s8 = inlined_call_operand.vmem [shape: f32[2,4,1,8], index: 8, kind: input, shape index: {}]
  %s9 = inlined_call_operand.vmem [shape: f32[2,4,32,8], index: 9, kind: input, shape index: {}]
  %s10 = inlined_call_operand.vmem [shape: f32[2,4,1,8], index: 10, kind: input, shape index: {}]
  %s11 = inlined_call_operand.vmem [shape: f32[2,4,32,8], index: 11, kind: input, shape index: {}]
  %s12 = inlined_call_operand.vmem [shape: f32[2,4,1,8], index: 12, kind: input, shape index: {}]
  %s13 = inlined_call_operand.vmem [shape: f32[2,4,8,32], index: 13, kind: input, shape index: {}]
  %s14 = inlined_call_operand.vmem [shape: f32[2,1,32], index: 14, kind: input, shape index: {}]
  %s15 = inlined_call_operand.vmem [shape: f32[2,1,32], index: 15, kind: input, shape index: {}]
  %s16 = inlined_call_operand.vmem [shape: f32[2,1,32], index: 16, kind: input, shape index: {}]
  %s17 = inlined_call_operand.vmem [shape: f32[2,32,64], index: 17, kind: input, shape index: {}]
  %s18 = inlined_call_operand.vmem [shape: f32[2,1,64], index: 18, kind: input, shape index: {}]
  %s19 = inlined_call_operand.vmem [shape: f32[2,64,32], index: 19, kind: input, shape index: {}]
  %s20 = inlined_call_operand.vmem [shape: f32[2,1,32], index: 20, kind: input, shape index: {}]
  %s21 = inlined_call_operand.vmem [shape: f32[1,32], index: 21, kind: input, shape index: {}]
  %s22 = inlined_call_operand.vmem [shape: f32[1,32], index: 22, kind: input, shape index: {}]
  %s23 = inlined_call_operand.hbm [shape: f32[8,32], index: 23, kind: output, shape index: {}]
  %s24 = sld [smem:[#allocation0]]
  $region102: #{_lambda_.1} parent=0
    _
  %s26 = ssub.s32 1, %s24
  %s27 = scalar_select 0, %s26, %s24
  $region1: #{_lambda_.1} parent=0
    #allocation2 [shape = 'u8[4096]{0}', space=vmem, size = 0x1000, scoped, tag = 'output window, operand 0, single buffered']
    #allocation3 [shape = 's32[1]{0}', space=sflag, size = 0x4, scoped, tag = 'scoped memory for _lambda_.1']
    %28 = vsyncpa [#allocation3], 0
    // Predicated region
    $region2: #{_lambda_.1} parent=1 // pred_check
      _
    $region3: #{_lambda_.1} parent=1 // pred_check_branch
      %30 = sbr.rel (0) target = $region5
    $region4: #{_lambda_.1} parent=1 // pred_region
      _
    $region5: #{_lambda_.1} parent=1 // pred_fallthru
      _
    // Predicated region
    $region6: #{_lambda_.1} parent=1 // pred_check
      _
    $region7: #{_lambda_.1} parent=1 // pred_check_branch
      %32 = sbr.rel (0) target = $region9
    $region8: #{_lambda_.1} parent=1 // pred_region
      _
    $region9: #{_lambda_.1} parent=1 // pred_fallthru
      _
    // Predicated region
    $region10: #{_lambda_.1} parent=1 // pred_check
      _
    $region11: #{_lambda_.1} parent=1 // pred_check_branch
      %34 = sbr.rel (0) target = $region13
    $region12: #{_lambda_.1} parent=1 // pred_region
      _
    $region13: #{_lambda_.1} parent=1 // pred_fallthru
      _
    // Predicated region
    $region14: #{_lambda_.1} parent=1 // pred_check
      _
    $region15: #{_lambda_.1} parent=1 // pred_check_branch
      %36 = sbr.rel (0) target = $region17
    $region16: #{_lambda_.1} parent=1 // pred_region
      _
    $region17: #{_lambda_.1} parent=1 // pred_fallthru
      _
    // Predicated region
    $region18: #{_lambda_.1} parent=1 // pred_check
      _
    $region19: #{_lambda_.1} parent=1 // pred_check_branch
      %38 = sbr.rel (0) target = $region21
    $region20: #{_lambda_.1} parent=1 // pred_region
      _
    $region21: #{_lambda_.1} parent=1 // pred_fallthru
      _
    // Predicated region
    $region22: #{_lambda_.1} parent=1 // pred_check
      _
    $region23: #{_lambda_.1} parent=1 // pred_check_branch
      %40 = sbr.rel (0) target = $region25
    $region24: #{_lambda_.1} parent=1 // pred_region
      _
    $region25: #{_lambda_.1} parent=1 // pred_fallthru
      _
    // Predicated region
    $region26: #{_lambda_.1} parent=1 // pred_check
      _
    $region27: #{_lambda_.1} parent=1 // pred_check_branch
      %42 = sbr.rel (0) target = $region29
    $region28: #{_lambda_.1} parent=1 // pred_region
      _
    $region29: #{_lambda_.1} parent=1 // pred_fallthru
      _
    // Predicated region
    $region30: #{_lambda_.1} parent=1 // pred_check
      _
    $region31: #{_lambda_.1} parent=1 // pred_check_branch
      %44 = sbr.rel (0) target = $region33
    $region32: #{_lambda_.1} parent=1 // pred_region
      _
    $region33: #{_lambda_.1} parent=1 // pred_fallthru
      _
    // Predicated region
    $region34: #{_lambda_.1} parent=1 // pred_check
      _
    $region35: #{_lambda_.1} parent=1 // pred_check_branch
      %46 = sbr.rel (0) target = $region37
    $region36: #{_lambda_.1} parent=1 // pred_region
      _
    $region37: #{_lambda_.1} parent=1 // pred_fallthru
      _
    // Predicated region
    $region38: #{_lambda_.1} parent=1 // pred_check
      _
    $region39: #{_lambda_.1} parent=1 // pred_check_branch
      %48 = sbr.rel (0) target = $region41
    $region40: #{_lambda_.1} parent=1 // pred_region
      _
    $region41: #{_lambda_.1} parent=1 // pred_fallthru
      _
    // Predicated region
    $region42: #{_lambda_.1} parent=1 // pred_check
      _
    $region43: #{_lambda_.1} parent=1 // pred_check_branch
      %50 = sbr.rel (0) target = $region45
    $region44: #{_lambda_.1} parent=1 // pred_region
      _
    $region45: #{_lambda_.1} parent=1 // pred_fallthru
      _
    // Predicated region
    $region46: #{_lambda_.1} parent=1 // pred_check
      _
    $region47: #{_lambda_.1} parent=1 // pred_check_branch
      %52 = sbr.rel (0) target = $region49
    $region48: #{_lambda_.1} parent=1 // pred_region
      _
    $region49: #{_lambda_.1} parent=1 // pred_fallthru
      _
    // Predicated region
    $region50: #{_lambda_.1} parent=1 // pred_check
      _
    $region51: #{_lambda_.1} parent=1 // pred_check_branch
      %54 = sbr.rel (0) target = $region53
    $region52: #{_lambda_.1} parent=1 // pred_region
      _
    $region53: #{_lambda_.1} parent=1 // pred_fallthru
      _
    // Predicated region
    $region54: #{_lambda_.1} parent=1 // pred_check
      _
    $region55: #{_lambda_.1} parent=1 // pred_check_branch
      %56 = sbr.rel (0) target = $region57
    $region56: #{_lambda_.1} parent=1 // pred_region
      _
    $region57: #{_lambda_.1} parent=1 // pred_fallthru
      _
    // Predicated region
    $region58: #{_lambda_.1} parent=1 // pred_check
      _
    $region59: #{_lambda_.1} parent=1 // pred_check_branch
      %58 = sbr.rel (0) target = $region61
    $region60: #{_lambda_.1} parent=1 // pred_region
      _
    $region61: #{_lambda_.1} parent=1 // pred_fallthru
      _
    // Predicated region
    $region62: #{_lambda_.1} parent=1 // pred_check
      _
    $region63: #{_lambda_.1} parent=1 // pred_check_branch
      %60 = sbr.rel (0) target = $region65
    $region64: #{_lambda_.1} parent=1 // pred_region
      _
    $region65: #{_lambda_.1} parent=1 // pred_fallthru
      _
    // Predicated region
    $region66: #{_lambda_.1} parent=1 // pred_check
      _
    $region67: #{_lambda_.1} parent=1 // pred_check_branch
      %62 = sbr.rel (0) target = $region69
    $region68: #{_lambda_.1} parent=1 // pred_region
      _
    $region69: #{_lambda_.1} parent=1 // pred_fallthru
      _
    // Predicated region
    $region70: #{_lambda_.1} parent=1 // pred_check
      _
    $region71: #{_lambda_.1} parent=1 // pred_check_branch
      %64 = sbr.rel (0) target = $region73
    $region72: #{_lambda_.1} parent=1 // pred_region
      _
    $region73: #{_lambda_.1} parent=1 // pred_fallthru
      _
    // Predicated region
    $region74: #{_lambda_.1} parent=1 // pred_check
      _
    $region75: #{_lambda_.1} parent=1 // pred_check_branch
      %66 = sbr.rel (0) target = $region77
    $region76: #{_lambda_.1} parent=1 // pred_region
      _
    $region77: #{_lambda_.1} parent=1 // pred_fallthru
      _
    // Predicated region
    $region78: #{_lambda_.1} parent=1 // pred_check
      _
    $region79: #{_lambda_.1} parent=1 // pred_check_branch
      %68 = sbr.rel (0) target = $region81
    $region80: #{_lambda_.1} parent=1 // pred_region
      _
    $region81: #{_lambda_.1} parent=1 // pred_fallthru
      _
    // Predicated region
    $region82: #{_lambda_.1} parent=1 // pred_check
      _
    $region83: #{_lambda_.1} parent=1 // pred_check_branch
      %70 = sbr.rel (0) target = $region85
    $region84: #{_lambda_.1} parent=1 // pred_region
      _
    $region85: #{_lambda_.1} parent=1 // pred_fallthru
      _
    // Predicated region
    $region86: #{_lambda_.1} parent=1 // pred_check
      _
    $region87: #{_lambda_.1} parent=1 // pred_check_branch
      %72 = sbr.rel (0) target = $region89
    $region88: #{_lambda_.1} parent=1 // pred_region
      _
    $region89: #{_lambda_.1} parent=1 // pred_fallthru
      _
    // Predicated region
    $region90: #{_lambda_.1} parent=1 // pred_check
      _
    $region91: #{_lambda_.1} parent=1 // pred_check_branch
      %74 = sbr.rel (0) target = $region93
    $region92: #{_lambda_.1} parent=1 // pred_region
      _
    $region93: #{_lambda_.1} parent=1 // pred_fallthru
      _
    %v75 = vld [vmem:[%s0] sm:$0xff]
    %v76 = vld [vmem:[%s0 + $0x8] sm:$0xff]
    %v77 = vld [vmem:[%s1] sm:$0xff]
    %v78 = vld [vmem:[%s1 + $0x8] sm:$0xff]
    %v79 = vld [vmem:[%s1 + $0x10] sm:$0xff]
    %v80 = vld [vmem:[%s1 + $0x18] sm:$0xff]
    %v81 = vld [vmem:[%s1 + $0x20] sm:$0xff]
    %v82 = vld [vmem:[%s1 + $0x28] sm:$0xff]
    %v83 = vld [vmem:[%s1 + $0x30] sm:$0xff]
    %v84 = vld [vmem:[%s1 + $0x38] sm:$0xff]
    %v85 = vld [vmem:[%s1 + $0x40] sm:$0xff]
    %v86 = vld [vmem:[%s1 + $0x48] sm:$0xff]
    %v87 = vld [vmem:[%s1 + $0x50] sm:$0xff]
    %v88 = vld [vmem:[%s1 + $0x58] sm:$0xff]
    %v89 = vld [vmem:[%s1 + $0x60] sm:$0xff]
    %v90 = vld [vmem:[%s1 + $0x68] sm:$0xff]
    %v91 = vld [vmem:[%s1 + $0x70] sm:$0xff]
    %v92 = vld [vmem:[%s1 + $0x78] sm:$0xff]
    %v93 = vld [vmem:[%s1 + $0x80] sm:$0xff]
    %v94 = vld [vmem:[%s1 + $0x88] sm:$0xff]
    %v95 = vld [vmem:[%s1 + $0x90] sm:$0xff]
    %v96 = vld [vmem:[%s1 + $0x98] sm:$0xff]
    %v97 = vld [vmem:[%s1 + $0xa0] sm:$0xff]
    %v98 = vld [vmem:[%s1 + $0xa8] sm:$0xff]
    %v99 = vld [vmem:[%s1 + $0xb0] sm:$0xff]
    %v100 = vld [vmem:[%s1 + $0xb8] sm:$0xff]
    %v101 = vld [vmem:[%s1 + $0xc0] sm:$0xff]
    %v102 = vld [vmem:[%s1 + $0xc8] sm:$0xff]
    %v103 = vld [vmem:[%s1 + $0xd0] sm:$0xff]
    %v104 = vld [vmem:[%s1 + $0xd8] sm:$0xff]
    %v105 = vld [vmem:[%s1 + $0xe0] sm:$0xff]
    %v106 = vld [vmem:[%s1 + $0xe8] sm:$0xff]
    %v107 = vld [vmem:[%s1 + $0xf0] sm:$0xff]
    %v108 = vld [vmem:[%s1 + $0xf8] sm:$0xff]
    %v109 = vld [vmem:[%s2] sm:$0x1]
    %v111 = vlaneseq
    %v112 = vshrl.u32 %v111, 7
    %v113 = vsub.s32 0, %v112
    %v114 = vrot.slane %v109, %v113
    %116 = vmatprep.subr.mxu0 0.0
    %117 = vmatpush1.msra.mxu0 %v77
    %118 = vmatprep.subr.mxu0 0.0
    %119 = vmatpush1.msra.mxu0 %v78
    %120 = vmatprep.subr.mxu0 0.0
    %121 = vmatpush1.msra.mxu0 %v79
    %122 = vmatprep.subr.mxu0 0.0
    %123 = vmatpush1.msra.mxu0 %v80
    %124 = vmatprep.subr.mxu0 0.0
    %125 = vmatpush1.msra.mxu0 %v81
    %126 = vmatprep.subr.mxu0 0.0
    %127 = vmatpush1.msra.mxu0 %v82
    %128 = vmatprep.subr.mxu0 0.0
    %129 = vmatpush1.msra.mxu0 %v83
    %130 = vmatprep.subr.mxu0 0.0
    %131 = vmatpush1.msra.mxu0 %v84
    %132 = vmatprep.subr.mxu0 0.0
    %133 = vmatpush1.msra.mxu0 %v85
    %134 = vmatprep.subr.mxu0 0.0
    %135 = vmatpush1.msra.mxu0 %v86
    %136 = vmatprep.subr.mxu0 0.0
    %137 = vmatpush1.msra.mxu0 %v87
    %138 = vmatprep.subr.mxu0 0.0
    %139 = vmatpush1.msra.mxu0 %v88
    %140 = vmatprep.subr.mxu0 0.0
    %141 = vmatpush1.msra.mxu0 %v89
    %142 = vmatprep.subr.mxu0 0.0
    %143 = vmatpush1.msra.mxu0 %v90
    %144 = vmatprep.subr.mxu0 0.0
    %145 = vmatpush1.msra.mxu0 %v91
    %146 = vmatprep.subr.mxu0 0.0
    %147 = vmatpush1.msra.mxu0 %v92
    %148 = vmatprep.subr.mxu0 0.0
    %149 = vmatpush1.msra.mxu0 %v93
    %150 = vmatprep.subr.mxu0 0.0
    %151 = vmatpush1.msra.mxu0 %v94
    %152 = vmatprep.subr.mxu0 0.0
    %153 = vmatpush1.msra.mxu0 %v95
    %154 = vmatprep.subr.mxu0 0.0
    %155 = vmatpush1.msra.mxu0 %v96
    %156 = vmatprep.subr.mxu0 0.0
    %157 = vmatpush1.msra.mxu0 %v97
    %158 = vmatprep.subr.mxu0 0.0
    %159 = vmatpush1.msra.mxu0 %v98
    %160 = vmatprep.subr.mxu0 0.0
    %161 = vmatpush1.msra.mxu0 %v99
    %162 = vmatprep.subr.mxu0 0.0
    %163 = vmatpush1.msra.mxu0 %v100
    %164 = vmatprep.subr.mxu0 0.0
    %165 = vmatpush1.msra.mxu0 %v101
    %166 = vmatprep.subr.mxu0 0.0
    %167 = vmatpush1.msra.mxu0 %v102
    %168 = vmatprep.subr.mxu0 0.0
    %169 = vmatpush1.msra.mxu0 %v103
    %170 = vmatprep.subr.mxu0 0.0
    %171 = vmatpush1.msra.mxu0 %v104
    %172 = vmatprep.subr.mxu0 0.0
    %173 = vmatpush1.msra.mxu0 %v105
    %174 = vmatprep.subr.mxu0 0.0
    %175 = vmatpush1.msra.mxu0 %v106
    %176 = vmatprep.subr.mxu0 0.0
    %177 = vmatpush1.msra.mxu0 %v107
    %178 = vmatprep.subr.mxu0 0.0
    %179 = vmatpush1.msra.mxu0 %v108
    %180 = vmatprep.mubr.f32.mxu0 %v76
    %181 = vmatmul.mubr.f32.gmra.mrb[0].mxu0 %v75
    %v182 = vpop.f32.mrb[0].mxu0
    %v183 = vadd.f32 %v114, %v182
    %v184 = vpop.f32.mrb[0].mxu0
    %185 = vdwg.mxu0
    %v186 = vld [vmem:[%s3] sm:$0xff]
    %v187 = vadd.f32 %v183, %v186
    %v188 = vld [vmem:[%s4] sm:$0xff]
    %v189 = vld [vmem:[%s5] sm:$0x1]
    %v190 = vld [vmem:[%s6] sm:$0x1]
    %vm191 = vcmask 261120
    %v192 = vsel %vm191, %v187, 0.0
    %193 = vadd.xlane.f32.xlu0 %v192
    %v194 = vpop.xlane.xlu0 %193
    %v195 = vrcp.pop 32.0
    %v196 = vmul.f32 %v194, %v195
    %v197 = vsub.f32 %v187, %v196
    %v198 = vmul.f32 %v197, %v197
    %v199 = vsel %vm191, %v198, 0.0
    %200 = vadd.xlane.f32.xlu0 %v199
    %v201 = vpop.xlane.xlu0 %200
    %v202 = vmul.f32 %v201, %v195
    %v203 = vadd.f32 %v202, 1e-06
    %v204 = vrsqrt.pop %v203
    %v205 = vmul.f32 %v197, %v204
    %v207 = vlaneseq
    %v208 = vshrl.u32 %v207, 7
    %v209 = vsub.s32 0, %v208
    %v210 = vrot.slane %v189, %v209
    %v212 = vmul.f32 %v205, %v210
    %v214 = vlaneseq
    %v215 = vshrl.u32 %v214, 7
    %v216 = vsub.s32 0, %v215
    %v217 = vrot.slane %v190, %v216
    %v219 = vadd.f32 %v212, %v217
    %v220 = vld [vmem:[%s7] sm:$0xff]
    %v221 = vld [vmem:[%s7 + $0x8] sm:$0xff]
    %v222 = vld [vmem:[%s7 + $0x10] sm:$0xff]
    %v223 = vld [vmem:[%s7 + $0x18] sm:$0xff]
    %v224 = vld [vmem:[%s7 + $0x20] sm:$0xff]
    %v225 = vld [vmem:[%s7 + $0x28] sm:$0xff]
    %v226 = vld [vmem:[%s7 + $0x30] sm:$0xff]
    %v227 = vld [vmem:[%s7 + $0x38] sm:$0xff]
    %v228 = vld [vmem:[%s7 + $0x40] sm:$0xff]
    %v229 = vld [vmem:[%s7 + $0x48] sm:$0xff]
    %v230 = vld [vmem:[%s7 + $0x50] sm:$0xff]
    %v231 = vld [vmem:[%s7 + $0x58] sm:$0xff]
    %v232 = vld [vmem:[%s7 + $0x60] sm:$0xff]
    %v233 = vld [vmem:[%s7 + $0x68] sm:$0xff]
    %v234 = vld [vmem:[%s7 + $0x70] sm:$0xff]
    %v235 = vld [vmem:[%s7 + $0x78] sm:$0xff]
    %v236 = vld [vmem:[%s8] sm:$0x1]
    %v237 = vld [vmem:[%s8 + $0x1] sm:$0x1]
    %v238 = vld [vmem:[%s8 + $0x2] sm:$0x1]
    %v239 = vld [vmem:[%s8 + $0x3] sm:$0x1]
    %v244 = vlaneseq
    %v245 = vshrl.u32 %v244, 7
    %v246 = vsub.s32 0, %v245
    %v247 = vrot.slane %v236, %v246
    %v248 = vlaneseq
    %v249 = vshrl.u32 %v248, 7
    %v250 = vsub.s32 0, %v249
    %v251 = vrot.slane %v237, %v250
    %v252 = vlaneseq
    %v253 = vshrl.u32 %v252, 7
    %v254 = vsub.s32 0, %v253
    %v255 = vrot.slane %v238, %v254
    %v256 = vlaneseq
    %v257 = vshrl.u32 %v256, 7
    %v258 = vsub.s32 0, %v257
    %v259 = vrot.slane %v239, %v258
    %v265 = vsel %vm191, %v219, 0
    %267 = vmatprep.subr.mxu0 0.0
    %268 = vmatpush1.msra.mxu0 %v220
    %269 = vmatprep.subr.mxu0 0.0
    %270 = vmatpush1.msra.mxu0 %v221
    %271 = vmatprep.subr.mxu0 0.0
    %272 = vmatpush1.msra.mxu0 %v222
    %273 = vmatprep.subr.mxu0 0.0
    %274 = vmatpush1.msra.mxu0 %v223
    %275 = vmatprep.subr.mxu0 0.0
    %276 = vmatpush1.msra.mxu0 0.0
    %277 = vmatprep.subr.mxu0 0.0
    %278 = vmatpush1.msra.mxu0 0.0
    %279 = vmatprep.subr.mxu0 0.0
    %280 = vmatpush1.msra.mxu0 0.0
    %281 = vmatprep.subr.mxu0 0.0
    %282 = vmatpush1.msra.mxu0 0.0
    %283 = vmatprep.subr.mxu0 0.0
    %284 = vmatpush1.msra.mxu0 0.0
    %285 = vmatprep.subr.mxu0 0.0
    %286 = vmatpush1.msra.mxu0 0.0
    %287 = vmatprep.subr.mxu0 0.0
    %288 = vmatpush1.msra.mxu0 0.0
    %289 = vmatprep.subr.mxu0 0.0
    %290 = vmatpush1.msra.mxu0 0.0
    %291 = vmatprep.subr.mxu0 0.0
    %292 = vmatpush1.msra.mxu0 0.0
    %293 = vmatprep.subr.mxu0 0.0
    %294 = vmatpush1.msra.mxu0 0.0
    %295 = vmatprep.subr.mxu0 0.0
    %296 = vmatpush1.msra.mxu0 0.0
    %297 = vmatprep.subr.mxu0 0.0
    %298 = vmatpush1.msra.mxu0 0.0
    %299 = vmatprep.subr.mxu0 0.0
    %300 = vmatpush1.msra.mxu0 0.0
    %301 = vmatprep.subr.mxu0 0.0
    %302 = vmatpush1.msra.mxu0 0.0
    %303 = vmatprep.subr.mxu0 0.0
    %304 = vmatpush1.msra.mxu0 0.0
    %305 = vmatprep.subr.mxu0 0.0
    %306 = vmatpush1.msra.mxu0 0.0
    %307 = vmatprep.subr.mxu0 0.0
    %308 = vmatpush1.msra.mxu0 0.0
    %309 = vmatprep.subr.mxu0 0.0
    %310 = vmatpush1.msra.mxu0 0.0
    %311 = vmatprep.subr.mxu0 0.0
    %312 = vmatpush1.msra.mxu0 0.0
    %313 = vmatprep.subr.mxu0 0.0
    %314 = vmatpush1.msra.mxu0 0.0
    %315 = vmatprep.subr.mxu0 0.0
    %316 = vmatpush1.msra.mxu0 0.0
    %317 = vmatprep.subr.mxu0 0.0
    %318 = vmatpush1.msra.mxu0 0.0
    %319 = vmatprep.subr.mxu0 0.0
    %320 = vmatpush1.msra.mxu0 0.0
    %321 = vmatprep.subr.mxu0 0.0
    %322 = vmatpush1.msra.mxu0 0.0
    %323 = vmatprep.subr.mxu0 0.0
    %324 = vmatpush1.msra.mxu0 0.0
    %325 = vmatprep.subr.mxu0 0.0
    %326 = vmatpush1.msra.mxu0 0.0
    %327 = vmatprep.subr.mxu0 0.0
    %328 = vmatpush1.msra.mxu0 0.0
    %329 = vmatprep.subr.mxu0 0.0
    %330 = vmatpush1.msra.mxu0 0.0
    %331 = vmatprep.mubr.f32.mxu0 0.0
    %332 = vmatmul.mubr.f32.gmra.mrb[0].mxu0 %v265
    %v333 = vpop.f32.mrb[0].mxu0
    %v334 = vadd.f32 %v247, %v333
    %v335 = vpop.f32.mrb[0].mxu0
    %336 = vdwg.mxu0
    %337 = vmatprep.subr.mxu0 0.0
    %338 = vmatpush1.msra.mxu0 %v224
    %339 = vmatprep.subr.mxu0 0.0
    %340 = vmatpush1.msra.mxu0 %v225
    %341 = vmatprep.subr.mxu0 0.0
    %342 = vmatpush1.msra.mxu0 %v226
    %343 = vmatprep.subr.mxu0 0.0
    %344 = vmatpush1.msra.mxu0 %v227
    %345 = vmatprep.subr.mxu0 0.0
    %346 = vmatpush1.msra.mxu0 0.0
    %347 = vmatprep.subr.mxu0 0.0
    %348 = vmatpush1.msra.mxu0 0.0
    %349 = vmatprep.subr.mxu0 0.0
    %350 = vmatpush1.msra.mxu0 0.0
    %351 = vmatprep.subr.mxu0 0.0
    %352 = vmatpush1.msra.mxu0 0.0
    %353 = vmatprep.subr.mxu0 0.0
    %354 = vmatpush1.msra.mxu0 0.0
    %355 = vmatprep.subr.mxu0 0.0
    %356 = vmatpush1.msra.mxu0 0.0
    %357 = vmatprep.subr.mxu0 0.0
    %358 = vmatpush1.msra.mxu0 0.0
    %359 = vmatprep.subr.mxu0 0.0
    %360 = vmatpush1.msra.mxu0 0.0
    %361 = vmatprep.subr.mxu0 0.0
    %362 = vmatpush1.msra.mxu0 0.0
    %363 = vmatprep.subr.mxu0 0.0
    %364 = vmatpush1.msra.mxu0 0.0
    %365 = vmatprep.subr.mxu0 0.0
    %366 = vmatpush1.msra.mxu0 0.0
    %367 = vmatprep.subr.mxu0 0.0
    %368 = vmatpush1.msra.mxu0 0.0
    %369 = vmatprep.subr.mxu0 0.0
    %370 = vmatpush1.msra.mxu0 0.0
    %371 = vmatprep.subr.mxu0 0.0
    %372 = vmatpush1.msra.mxu0 0.0
    %373 = vmatprep.subr.mxu0 0.0
    %374 = vmatpush1.msra.mxu0 0.0
    %375 = vmatprep.subr.mxu0 0.0
    %376 = vmatpush1.msra.mxu0 0.0
    %377 = vmatprep.subr.mxu0 0.0
    %378 = vmatpush1.msra.mxu0 0.0
    %379 = vmatprep.subr.mxu0 0.0
    %380 = vmatpush1.msra.mxu0 0.0
    %381 = vmatprep.subr.mxu0 0.0
    %382 = vmatpush1.msra.mxu0 0.0
    %383 = vmatprep.subr.mxu0 0.0
    %384 = vmatpush1.msra.mxu0 0.0
    %385 = vmatprep.subr.mxu0 0.0
    %386 = vmatpush1.msra.mxu0 0.0
    %387 = vmatprep.subr.mxu0 0.0
    %388 = vmatpush1.msra.mxu0 0.0
    %389 = vmatprep.subr.mxu0 0.0
    %390 = vmatpush1.msra.mxu0 0.0
    %391 = vmatprep.subr.mxu0 0.0
    %392 = vmatpush1.msra.mxu0 0.0
    %393 = vmatprep.subr.mxu0 0.0
    %394 = vmatpush1.msra.mxu0 0.0
    %395 = vmatprep.subr.mxu0 0.0
    %396 = vmatpush1.msra.mxu0 0.0
    %397 = vmatprep.subr.mxu0 0.0
    %398 = vmatpush1.msra.mxu0 0.0
    %399 = vmatprep.subr.mxu0 0.0
    %400 = vmatpush1.msra.mxu0 0.0
    %401 = vmatprep.mubr.f32.mxu0 0.0
    %402 = vmatmul.mubr.f32.gmra.mrb[0].mxu0 %v265
    %v403 = vpop.f32.mrb[0].mxu0
    %v404 = vadd.f32 %v251, %v403
    %v405 = vpop.f32.mrb[0].mxu0
    %406 = vdwg.mxu0
    %407 = vmatprep.subr.mxu0 0.0
    %408 = vmatpush1.msra.mxu0 %v228
    %409 = vmatprep.subr.mxu0 0.0
    %410 = vmatpush1.msra.mxu0 %v229
    %411 = vmatprep.subr.mxu0 0.0
    %412 = vmatpush1.msra.mxu0 %v230
    %413 = vmatprep.subr.mxu0 0.0
    %414 = vmatpush1.msra.mxu0 %v231
    %415 = vmatprep.subr.mxu0 0.0
    %416 = vmatpush1.msra.mxu0 0.0
    %417 = vmatprep.subr.mxu0 0.0
    %418 = vmatpush1.msra.mxu0 0.0
    %419 = vmatprep.subr.mxu0 0.0
    %420 = vmatpush1.msra.mxu0 0.0
    %421 = vmatprep.subr.mxu0 0.0
    %422 = vmatpush1.msra.mxu0 0.0
    %423 = vmatprep.subr.mxu0 0.0
    %424 = vmatpush1.msra.mxu0 0.0
    %425 = vmatprep.subr.mxu0 0.0
    %426 = vmatpush1.msra.mxu0 0.0
    %427 = vmatprep.subr.mxu0 0.0
    %428 = vmatpush1.msra.mxu0 0.0
    %429 = vmatprep.subr.mxu0 0.0
    %430 = vmatpush1.msra.mxu0 0.0
    %431 = vmatprep.subr.mxu0 0.0
    %432 = vmatpush1.msra.mxu0 0.0
    %433 = vmatprep.subr.mxu0 0.0
    %434 = vmatpush1.msra.mxu0 0.0
    %435 = vmatprep.subr.mxu0 0.0
    %436 = vmatpush1.msra.mxu0 0.0
    %437 = vmatprep.subr.mxu0 0.0
    %438 = vmatpush1.msra.mxu0 0.0
    %439 = vmatprep.subr.mxu0 0.0
    %440 = vmatpush1.msra.mxu0 0.0
    %441 = vmatprep.subr.mxu0 0.0
    %442 = vmatpush1.msra.mxu0 0.0
    %443 = vmatprep.subr.mxu0 0.0
    %444 = vmatpush1.msra.mxu0 0.0
    %445 = vmatprep.subr.mxu0 0.0
    %446 = vmatpush1.msra.mxu0 0.0
    %447 = vmatprep.subr.mxu0 0.0
    %448 = vmatpush1.msra.mxu0 0.0
    %449 = vmatprep.subr.mxu0 0.0
    %450 = vmatpush1.msra.mxu0 0.0
    %451 = vmatprep.subr.mxu0 0.0
    %452 = vmatpush1.msra.mxu0 0.0
    %453 = vmatprep.subr.mxu0 0.0
    %454 = vmatpush1.msra.mxu0 0.0
    %455 = vmatprep.subr.mxu0 0.0
    %456 = vmatpush1.msra.mxu0 0.0
    %457 = vmatprep.subr.mxu0 0.0
    %458 = vmatpush1.msra.mxu0 0.0
    %459 = vmatprep.subr.mxu0 0.0
    %460 = vmatpush1.msra.mxu0 0.0
    %461 = vmatprep.subr.mxu0 0.0
    %462 = vmatpush1.msra.mxu0 0.0
    %463 = vmatprep.subr.mxu0 0.0
    %464 = vmatpush1.msra.mxu0 0.0
    %465 = vmatprep.subr.mxu0 0.0
    %466 = vmatpush1.msra.mxu0 0.0
    %467 = vmatprep.subr.mxu0 0.0
    %468 = vmatpush1.msra.mxu0 0.0
    %469 = vmatprep.subr.mxu0 0.0
    %470 = vmatpush1.msra.mxu0 0.0
    %471 = vmatprep.mubr.f32.mxu0 0.0
    %472 = vmatmul.mubr.f32.gmra.mrb[0].mxu0 %v265
    %v473 = vpop.f32.mrb[0].mxu0
    %v474 = vadd.f32 %v255, %v473
    %v475 = vpop.f32.mrb[0].mxu0
    %476 = vdwg.mxu0
    %477 = vmatprep.subr.mxu0 0.0
    %478 = vmatpush1.msra.mxu0 %v232
    %479 = vmatprep.subr.mxu0 0.0
    %480 = vmatpush1.msra.mxu0 %v233
    %481 = vmatprep.subr.mxu0 0.0
    %482 = vmatpush1.msra.mxu0 %v234
    %483 = vmatprep.subr.mxu0 0.0
    %484 = vmatpush1.msra.mxu0 %v235
    %485 = vmatprep.subr.mxu0 0.0
    %486 = vmatpush1.msra.mxu0 0.0
    %487 = vmatprep.subr.mxu0 0.0
    %488 = vmatpush1.msra.mxu0 0.0
    %489 = vmatprep.subr.mxu0 0.0
    %490 = vmatpush1.msra.mxu0 0.0
    %491 = vmatprep.subr.mxu0 0.0
    %492 = vmatpush1.msra.mxu0 0.0
    %493 = vmatprep.subr.mxu0 0.0
    %494 = vmatpush1.msra.mxu0 0.0
    %495 = vmatprep.subr.mxu0 0.0
    %496 = vmatpush1.msra.mxu0 0.0
    %497 = vmatprep.subr.mxu0 0.0
    %498 = vmatpush1.msra.mxu0 0.0
    %499 = vmatprep.subr.mxu0 0.0
    %500 = vmatpush1.msra.mxu0 0.0
    %501 = vmatprep.subr.mxu0 0.0
    %502 = vmatpush1.msra.mxu0 0.0
    %503 = vmatprep.subr.mxu0 0.0
    %504 = vmatpush1.msra.mxu0 0.0
    %505 = vmatprep.subr.mxu0 0.0
    %506 = vmatpush1.msra.mxu0 0.0
    %507 = vmatprep.subr.mxu0 0.0
    %508 = vmatpush1.msra.mxu0 0.0
    %509 = vmatprep.subr.mxu0 0.0
    %510 = vmatpush1.msra.mxu0 0.0
    %511 = vmatprep.subr.mxu0 0.0
    %512 = vmatpush1.msra.mxu0 0.0
    %513 = vmatprep.subr.mxu0 0.0
    %514 = vmatpush1.msra.mxu0 0.0
    %515 = vmatprep.subr.mxu0 0.0
    %516 = vmatpush1.msra.mxu0 0.0
    %517 = vmatprep.subr.mxu0 0.0
    %518 = vmatpush1.msra.mxu0 0.0
    %519 = vmatprep.subr.mxu0 0.0
    %520 = vmatpush1.msra.mxu0 0.0
    %521 = vmatprep.subr.mxu0 0.0
    %522 = vmatpush1.msra.mxu0 0.0
    %523 = vmatprep.subr.mxu0 0.0
    %524 = vmatpush1.msra.mxu0 0.0
    %525 = vmatprep.subr.mxu0 0.0
    %526 = vmatpush1.msra.mxu0 0.0
    %527 = vmatprep.subr.mxu0 0.0
    %528 = vmatpush1.msra.mxu0 0.0
    %529 = vmatprep.subr.mxu0 0.0
    %530 = vmatpush1.msra.mxu0 0.0
    %531 = vmatprep.subr.mxu0 0.0
    %532 = vmatpush1.msra.mxu0 0.0
    %533 = vmatprep.subr.mxu0 0.0
    %534 = vmatpush1.msra.mxu0 0.0
    %535 = vmatprep.subr.mxu0 0.0
    %536 = vmatpush1.msra.mxu0 0.0
    %537 = vmatprep.subr.mxu0 0.0
    %538 = vmatpush1.msra.mxu0 0.0
    %539 = vmatprep.subr.mxu0 0.0
    %540 = vmatpush1.msra.mxu0 0.0
    %541 = vmatprep.mubr.f32.mxu0 0.0
    %542 = vmatmul.mubr.f32.gmra.mrb[0].mxu0 %v265
    %v543 = vpop.f32.mrb[0].mxu0
    %v544 = vadd.f32 %v259, %v543
    %v545 = vpop.f32.mrb[0].mxu0
    %546 = vdwg.mxu0
    %v547 = vld [vmem:[%s9] sm:$0xff]
    %v548 = vld [vmem:[%s9 + $0x8] sm:$0xff]
    %v549 = vld [vmem:[%s9 + $0x10] sm:$0xff]
    %v550 = vld [vmem:[%s9 + $0x18] sm:$0xff]
    %v551 = vld [vmem:[%s9 + $0x20] sm:$0xff]
    %v552 = vld [vmem:[%s9 + $0x28] sm:$0xff]
    %v553 = vld [vmem:[%s9 + $0x30] sm:$0xff]
    %v554 = vld [vmem:[%s9 + $0x38] sm:$0xff]
    %v555 = vld [vmem:[%s9 + $0x40] sm:$0xff]
    %v556 = vld [vmem:[%s9 + $0x48] sm:$0xff]
    %v557 = vld [vmem:[%s9 + $0x50] sm:$0xff]
    %v558 = vld [vmem:[%s9 + $0x58] sm:$0xff]
    %v559 = vld [vmem:[%s9 + $0x60] sm:$0xff]
    %v560 = vld [vmem:[%s9 + $0x68] sm:$0xff]
    %v561 = vld [vmem:[%s9 + $0x70] sm:$0xff]
    %v562 = vld [vmem:[%s9 + $0x78] sm:$0xff]
    %v563 = vld [vmem:[%s10] sm:$0x1]
    %v564 = vld [vmem:[%s10 + $0x1] sm:$0x1]
    %v565 = vld [vmem:[%s10 + $0x2] sm:$0x1]
    %v566 = vld [vmem:[%s10 + $0x3] sm:$0x1]
    %v571 = vlaneseq
    %v572 = vshrl.u32 %v571, 7
    %v573 = vsub.s32 0, %v572
    %v574 = vrot.slane %v563, %v573
    %v575 = vlaneseq
    %v576 = vshrl.u32 %v575, 7
    %v577 = vsub.s32 0, %v576
    %v578 = vrot.slane %v564, %v577
    %v579 = vlaneseq
    %v580 = vshrl.u32 %v579, 7
    %v581 = vsub.s32 0, %v580
    %v582 = vrot.slane %v565, %v581
    %v583 = vlaneseq
    %v584 = vshrl.u32 %v583, 7
    %v585 = vsub.s32 0, %v584
    %v586 = vrot.slane %v566, %v585
    %591 = vmatprep.subr.mxu0 0.0
    %592 = vmatpush1.msra.mxu0 %v547
    %593 = vmatprep.subr.mxu0 0.0
    %594 = vmatpush1.msra.mxu0 %v548
    %595 = vmatprep.subr.mxu0 0.0
    %596 = vmatpush1.msra.mxu0 %v549
    %597 = vmatprep.subr.mxu0 0.0
    %598 = vmatpush1.msra.mxu0 %v550
    %599 = vmatprep.subr.mxu0 0.0
    %600 = vmatpush1.msra.mxu0 0.0
    %601 = vmatprep.subr.mxu0 0.0
    %602 = vmatpush1.msra.mxu0 0.0
    %603 = vmatprep.subr.mxu0 0.0
    %604 = vmatpush1.msra.mxu0 0.0
    %605 = vmatprep.subr.mxu0 0.0
    %606 = vmatpush1.msra.mxu0 0.0
    %607 = vmatprep.subr.mxu0 0.0
    %608 = vmatpush1.msra.mxu0 0.0
    %609 = vmatprep.subr.mxu0 0.0
    %610 = vmatpush1.msra.mxu0 0.0
    %611 = vmatprep.subr.mxu0 0.0
    %612 = vmatpush1.msra.mxu0 0.0
    %613 = vmatprep.subr.mxu0 0.0
    %614 = vmatpush1.msra.mxu0 0.0
    %615 = vmatprep.subr.mxu0 0.0
    %616 = vmatpush1.msra.mxu0 0.0
    %617 = vmatprep.subr.mxu0 0.0
    %618 = vmatpush1.msra.mxu0 0.0
    %619 = vmatprep.subr.mxu0 0.0
    %620 = vmatpush1.msra.mxu0 0.0
    %621 = vmatprep.subr.mxu0 0.0
    %622 = vmatpush1.msra.mxu0 0.0
    %623 = vmatprep.subr.mxu0 0.0
    %624 = vmatpush1.msra.mxu0 0.0
    %625 = vmatprep.subr.mxu0 0.0
    %626 = vmatpush1.msra.mxu0 0.0
    %627 = vmatprep.subr.mxu0 0.0
    %628 = vmatpush1.msra.mxu0 0.0
    %629 = vmatprep.subr.mxu0 0.0
    %630 = vmatpush1.msra.mxu0 0.0
    %631 = vmatprep.subr.mxu0 0.0
    %632 = vmatpush1.msra.mxu0 0.0
    %633 = vmatprep.subr.mxu0 0.0
    %634 = vmatpush1.msra.mxu0 0.0
    %635 = vmatprep.subr.mxu0 0.0
    %636 = vmatpush1.msra.mxu0 0.0
    %637 = vmatprep.subr.mxu0 0.0
    %638 = vmatpush1.msra.mxu0 0.0
    %639 = vmatprep.subr.mxu0 0.0
    %640 = vmatpush1.msra.mxu0 0.0
    %641 = vmatprep.subr.mxu0 0.0
    %642 = vmatpush1.msra.mxu0 0.0
    %643 = vmatprep.subr.mxu0 0.0
    %644 = vmatpush1.msra.mxu0 0.0
    %645 = vmatprep.subr.mxu0 0.0
    %646 = vmatpush1.msra.mxu0 0.0
    %647 = vmatprep.subr.mxu0 0.0
    %648 = vmatpush1.msra.mxu0 0.0
    %649 = vmatprep.subr.mxu0 0.0
    %650 = vmatpush1.msra.mxu0 0.0
    %651 = vmatprep.subr.mxu0 0.0
    %652 = vmatpush1.msra.mxu0 0.0
    %653 = vmatprep.subr.mxu0 0.0
    %654 = vmatpush1.msra.mxu0 0.0
    %655 = vmatprep.mubr.f32.mxu0 0.0
    %656 = vmatmul.mubr.f32.gmra.mrb[0].mxu0 %v265
    %v657 = vpop.f32.mrb[0].mxu0
    %v658 = vadd.f32 %v574, %v657
    %v659 = vpop.f32.mrb[0].mxu0
    %660 = vdwg.mxu0
    %661 = vmatprep.subr.mxu0 0.0
    %662 = vmatpush1.msra.mxu0 %v551
    %663 = vmatprep.subr.mxu0 0.0
    %664 = vmatpush1.msra.mxu0 %v552
    %665 = vmatprep.subr.mxu0 0.0
    %666 = vmatpush1.msra.mxu0 %v553
    %667 = vmatprep.subr.mxu0 0.0
    %668 = vmatpush1.msra.mxu0 %v554
    %669 = vmatprep.subr.mxu0 0.0
    %670 = vmatpush1.msra.mxu0 0.0
    %671 = vmatprep.subr.mxu0 0.0
    %672 = vmatpush1.msra.mxu0 0.0
    %673 = vmatprep.subr.mxu0 0.0
    %674 = vmatpush1.msra.mxu0 0.0
    %675 = vmatprep.subr.mxu0 0.0
    %676 = vmatpush1.msra.mxu0 0.0
    %677 = vmatprep.subr.mxu0 0.0
    %678 = vmatpush1.msra.mxu0 0.0
    %679 = vmatprep.subr.mxu0 0.0
    %680 = vmatpush1.msra.mxu0 0.0
    %681 = vmatprep.subr.mxu0 0.0
    %682 = vmatpush1.msra.mxu0 0.0
    %683 = vmatprep.subr.mxu0 0.0
    %684 = vmatpush1.msra.mxu0 0.0
    %685 = vmatprep.subr.mxu0 0.0
    %686 = vmatpush1.msra.mxu0 0.0
    %687 = vmatprep.subr.mxu0 0.0
    %688 = vmatpush1.msra.mxu0 0.0
    %689 = vmatprep.subr.mxu0 0.0
    %690 = vmatpush1.msra.mxu0 0.0
    %691 = vmatprep.subr.mxu0 0.0
    %692 = vmatpush1.msra.mxu0 0.0
    %693 = vmatprep.subr.mxu0 0.0
    %694 = vmatpush1.msra.mxu0 0.0
    %695 = vmatprep.subr.mxu0 0.0
    %696 = vmatpush1.msra.mxu0 0.0
    %697 = vmatprep.subr.mxu0 0.0
    %698 = vmatpush1.msra.mxu0 0.0
    %699 = vmatprep.subr.mxu0 0.0
    %700 = vmatpush1.msra.mxu0 0.0
    %701 = vmatprep.subr.mxu0 0.0
    %702 = vmatpush1.msra.mxu0 0.0
    %703 = vmatprep.subr.mxu0 0.0
    %704 = vmatpush1.msra.mxu0 0.0
    %705 = vmatprep.subr.mxu0 0.0
    %706 = vmatpush1.msra.mxu0 0.0
    %707 = vmatprep.subr.mxu0 0.0
    %708 = vmatpush1.msra.mxu0 0.0
    %709 = vmatprep.subr.mxu0 0.0
    %710 = vmatpush1.msra.mxu0 0.0
    %711 = vmatprep.subr.mxu0 0.0
    %712 = vmatpush1.msra.mxu0 0.0
    %713 = vmatprep.subr.mxu0 0.0
    %714 = vmatpush1.msra.mxu0 0.0
    %715 = vmatprep.subr.mxu0 0.0
    %716 = vmatpush1.msra.mxu0 0.0
    %717 = vmatprep.subr.mxu0 0.0
    %718 = vmatpush1.msra.mxu0 0.0
    %719 = vmatprep.subr.mxu0 0.0
    %720 = vmatpush1.msra.mxu0 0.0
    %721 = vmatprep.subr.mxu0 0.0
    %722 = vmatpush1.msra.mxu0 0.0
    %723 = vmatprep.subr.mxu0 0.0
    %724 = vmatpush1.msra.mxu0 0.0
    %725 = vmatprep.mubr.f32.mxu0 0.0
    %726 = vmatmul.mubr.f32.gmra.mrb[0].mxu0 %v265
    %v727 = vpop.f32.mrb[0].mxu0
    %v728 = vadd.f32 %v578, %v727
    %v729 = vpop.f32.mrb[0].mxu0
    %730 = vdwg.mxu0
    %731 = vmatprep.subr.mxu0 0.0
    %732 = vmatpush1.msra.mxu0 %v555
    %733 = vmatprep.subr.mxu0 0.0
    %734 = vmatpush1.msra.mxu0 %v556
    %735 = vmatprep.subr.mxu0 0.0
    %736 = vmatpush1.msra.mxu0 %v557
    %737 = vmatprep.subr.mxu0 0.0
    %738 = vmatpush1.msra.mxu0 %v558
    %739 = vmatprep.subr.mxu0 0.0
    %740 = vmatpush1.msra.mxu0 0.0
    %741 = vmatprep.subr.mxu0 0.0
    %742 = vmatpush1.msra.mxu0 0.0
    %743 = vmatprep.subr.mxu0 0.0
    %744 = vmatpush1.msra.mxu0 0.0
    %745 = vmatprep.subr.mxu0 0.0
    %746 = vmatpush1.msra.mxu0 0.0
    %747 = vmatprep.subr.mxu0 0.0
    %748 = vmatpush1.msra.mxu0 0.0
    %749 = vmatprep.subr.mxu0 0.0
    %750 = vmatpush1.msra.mxu0 0.0
    %751 = vmatprep.subr.mxu0 0.0
    %752 = vmatpush1.msra.mxu0 0.0
    %753 = vmatprep.subr.mxu0 0.0
    %754 = vmatpush1.msra.mxu0 0.0
    %755 = vmatprep.subr.mxu0 0.0
    %756 = vmatpush1.msra.mxu0 0.0
    %757 = vmatprep.subr.mxu0 0.0
    %758 = vmatpush1.msra.mxu0 0.0
    %759 = vmatprep.subr.mxu0 0.0
    %760 = vmatpush1.msra.mxu0 0.0
    %761 = vmatprep.subr.mxu0 0.0
    %762 = vmatpush1.msra.mxu0 0.0
    %763 = vmatprep.subr.mxu0 0.0
    %764 = vmatpush1.msra.mxu0 0.0
    %765 = vmatprep.subr.mxu0 0.0
    %766 = vmatpush1.msra.mxu0 0.0
    %767 = vmatprep.subr.mxu0 0.0
    %768 = vmatpush1.msra.mxu0 0.0
    %769 = vmatprep.subr.mxu0 0.0
    %770 = vmatpush1.msra.mxu0 0.0
    %771 = vmatprep.subr.mxu0 0.0
    %772 = vmatpush1.msra.mxu0 0.0
    %773 = vmatprep.subr.mxu0 0.0
    %774 = vmatpush1.msra.mxu0 0.0
    %775 = vmatprep.subr.mxu0 0.0
    %776 = vmatpush1.msra.mxu0 0.0
    %777 = vmatprep.subr.mxu0 0.0
    %778 = vmatpush1.msra.mxu0 0.0
    %779 = vmatprep.subr.mxu0 0.0
    %780 = vmatpush1.msra.mxu0 0.0
    %781 = vmatprep.subr.mxu0 0.0
    %782 = vmatpush1.msra.mxu0 0.0
    %783 = vmatprep.subr.mxu0 0.0
    %784 = vmatpush1.msra.mxu0 0.0
    %785 = vmatprep.subr.mxu0 0.0
    %786 = vmatpush1.msra.mxu0 0.0
    %787 = vmatprep.subr.mxu0 0.0
    %788 = vmatpush1.msra.mxu0 0.0
    %789 = vmatprep.subr.mxu0 0.0
    %790 = vmatpush1.msra.mxu0 0.0
    %791 = vmatprep.subr.mxu0 0.0
    %792 = vmatpush1.msra.mxu0 0.0
    %793 = vmatprep.subr.mxu0 0.0
    %794 = vmatpush1.msra.mxu0 0.0
    %795 = vmatprep.mubr.f32.mxu0 0.0
    %796 = vmatmul.mubr.f32.gmra.mrb[0].mxu0 %v265
    %v797 = vpop.f32.mrb[0].mxu0
    %v798 = vadd.f32 %v582, %v797
    %v799 = vpop.f32.mrb[0].mxu0
    %800 = vdwg.mxu0
    %801 = vmatprep.subr.mxu0 0.0
    %802 = vmatpush1.msra.mxu0 %v559
    %803 = vmatprep.subr.mxu0 0.0
    %804 = vmatpush1.msra.mxu0 %v560
    %805 = vmatprep.subr.mxu0 0.0
    %806 = vmatpush1.msra.mxu0 %v561
    %807 = vmatprep.subr.mxu0 0.0
    %808 = vmatpush1.msra.mxu0 %v562
    %809 = vmatprep.subr.mxu0 0.0
    %810 = vmatpush1.msra.mxu0 0.0
    %811 = vmatprep.subr.mxu0 0.0
    %812 = vmatpush1.msra.mxu0 0.0
    %813 = vmatprep.subr.mxu0 0.0
    %814 = vmatpush1.msra.mxu0 0.0
    %815 = vmatprep.subr.mxu0 0.0
    %816 = vmatpush1.msra.mxu0 0.0
    %817 = vmatprep.subr.mxu0 0.0
    %818 = vmatpush1.msra.mxu0 0.0
    %819 = vmatprep.subr.mxu0 0.0
    %820 = vmatpush1.msra.mxu0 0.0
    %821 = vmatprep.subr.mxu0 0.0
    %822 = vmatpush1.msra.mxu0 0.0
    %823 = vmatprep.subr.mxu0 0.0
    %824 = vmatpush1.msra.mxu0 0.0
    %825 = vmatprep.subr.mxu0 0.0
    %826 = vmatpush1.msra.mxu0 0.0
    %827 = vmatprep.subr.mxu0 0.0
    %828 = vmatpush1.msra.mxu0 0.0
    %829 = vmatprep.subr.mxu0 0.0
    %830 = vmatpush1.msra.mxu0 0.0
    %831 = vmatprep.subr.mxu0 0.0
    %832 = vmatpush1.msra.mxu0 0.0
    %833 = vmatprep.subr.mxu0 0.0
    %834 = vmatpush1.msra.mxu0 0.0
    %835 = vmatprep.subr.mxu0 0.0
    %836 = vmatpush1.msra.mxu0 0.0
    %837 = vmatprep.subr.mxu0 0.0
    %838 = vmatpush1.msra.mxu0 0.0
    %839 = vmatprep.subr.mxu0 0.0
    %840 = vmatpush1.msra.mxu0 0.0
    %841 = vmatprep.subr.mxu0 0.0
    %842 = vmatpush1.msra.mxu0 0.0
    %843 = vmatprep.subr.mxu0 0.0
    %844 = vmatpush1.msra.mxu0 0.0
    %845 = vmatprep.subr.mxu0 0.0
    %846 = vmatpush1.msra.mxu0 0.0
    %847 = vmatprep.subr.mxu0 0.0
    %848 = vmatpush1.msra.mxu0 0.0
    %849 = vmatprep.subr.mxu0 0.0
    %850 = vmatpush1.msra.mxu0 0.0
    %851 = vmatprep.subr.mxu0 0.0
    %852 = vmatpush1.msra.mxu0 0.0
    %853 = vmatprep.subr.mxu0 0.0
    %854 = vmatpush1.msra.mxu0 0.0
    %855 = vmatprep.subr.mxu0 0.0
    %856 = vmatpush1.msra.mxu0 0.0
    %857 = vmatprep.subr.mxu0 0.0
    %858 = vmatpush1.msra.mxu0 0.0
    %859 = vmatprep.subr.mxu0 0.0
    %860 = vmatpush1.msra.mxu0 0.0
    %861 = vmatprep.subr.mxu0 0.0
    %862 = vmatpush1.msra.mxu0 0.0
    %863 = vmatprep.subr.mxu0 0.0
    %864 = vmatpush1.msra.mxu0 0.0
    %865 = vmatprep.mubr.f32.mxu0 0.0
    %866 = vmatmul.mubr.f32.gmra.mrb[0].mxu0 %v265
    %v867 = vpop.f32.mrb[0].mxu0
    %v868 = vadd.f32 %v586, %v867
    %v869 = vpop.f32.mrb[0].mxu0
    %870 = vdwg.mxu0
    %v871 = vld [vmem:[%s11] sm:$0xff]
    %v872 = vld [vmem:[%s11 + $0x8] sm:$0xff]
    %v873 = vld [vmem:[%s11 + $0x10] sm:$0xff]
    %v874 = vld [vmem:[%s11 + $0x18] sm:$0xff]
    %v875 = vld [vmem:[%s11 + $0x20] sm:$0xff]
    %v876 = vld [vmem:[%s11 + $0x28] sm:$0xff]
    %v877 = vld [vmem:[%s11 + $0x30] sm:$0xff]
    %v878 = vld [vmem:[%s11 + $0x38] sm:$0xff]
    %v879 = vld [vmem:[%s11 + $0x40] sm:$0xff]
    %v880 = vld [vmem:[%s11 + $0x48] sm:$0xff]
    %v881 = vld [vmem:[%s11 + $0x50] sm:$0xff]
    %v882 = vld [vmem:[%s11 + $0x58] sm:$0xff]
    %v883 = vld [vmem:[%s11 + $0x60] sm:$0xff]
    %v884 = vld [vmem:[%s11 + $0x68] sm:$0xff]
    %v885 = vld [vmem:[%s11 + $0x70] sm:$0xff]
    %v886 = vld [vmem:[%s11 + $0x78] sm:$0xff]
    %v887 = vld [vmem:[%s12] sm:$0x1]
    %v888 = vld [vmem:[%s12 + $0x1] sm:$0x1]
    %v889 = vld [vmem:[%s12 + $0x2] sm:$0x1]
    %v890 = vld [vmem:[%s12 + $0x3] sm:$0x1]
    %v895 = vlaneseq
    %v896 = vshrl.u32 %v895, 7
    %v897 = vsub.s32 0, %v896
    %v898 = vrot.slane %v887, %v897
    %v899 = vlaneseq
    %v900 = vshrl.u32 %v899, 7
    %v901 = vsub.s32 0, %v900
    %v902 = vrot.slane %v888, %v901
    %v903 = vlaneseq
    %v904 = vshrl.u32 %v903, 7
    %v905 = vsub.s32 0, %v904
    %v906 = vrot.slane %v889, %v905
    %v907 = vlaneseq
    %v908 = vshrl.u32 %v907, 7
    %v909 = vsub.s32 0, %v908
    %v910 = vrot.slane %v890, %v909
    %915 = vmatprep.subr.mxu0 0.0
    %916 = vmatpush1.msra.mxu0 %v871
    %917 = vmatprep.subr.mxu0 0.0
    %918 = vmatpush1.msra.mxu0 %v872
    %919 = vmatprep.subr.mxu0 0.0
    %920 = vmatpush1.msra.mxu0 %v873
    %921 = vmatprep.subr.mxu0 0.0
    %922 = vmatpush1.msra.mxu0 %v874
    %923 = vmatprep.subr.mxu0 0.0
    %924 = vmatpush1.msra.mxu0 0.0
    %925 = vmatprep.subr.mxu0 0.0
    %926 = vmatpush1.msra.mxu0 0.0
    %927 = vmatprep.subr.mxu0 0.0
    %928 = vmatpush1.msra.mxu0 0.0
    %929 = vmatprep.subr.mxu0 0.0
    %930 = vmatpush1.msra.mxu0 0.0
    %931 = vmatprep.subr.mxu0 0.0
    %932 = vmatpush1.msra.mxu0 0.0
    %933 = vmatprep.subr.mxu0 0.0
    %934 = vmatpush1.msra.mxu0 0.0
    %935 = vmatprep.subr.mxu0 0.0
    %936 = vmatpush1.msra.mxu0 0.0
    %937 = vmatprep.subr.mxu0 0.0
    %938 = vmatpush1.msra.mxu0 0.0
    %939 = vmatprep.subr.mxu0 0.0
    %940 = vmatpush1.msra.mxu0 0.0
    %941 = vmatprep.subr.mxu0 0.0
    %942 = vmatpush1.msra.mxu0 0.0
    %943 = vmatprep.subr.mxu0 0.0
    %944 = vmatpush1.msra.mxu0 0.0
    %945 = vmatprep.subr.mxu0 0.0
    %946 = vmatpush1.msra.mxu0 0.0
    %947 = vmatprep.subr.mxu0 0.0
    %948 = vmatpush1.msra.mxu0 0.0
    %949 = vmatprep.subr.mxu0 0.0
    %950 = vmatpush1.msra.mxu0 0.0
    %951 = vmatprep.subr.mxu0 0.0
    %952 = vmatpush1.msra.mxu0 0.0
    %953 = vmatprep.subr.mxu0 0.0
    %954 = vmatpush1.msra.mxu0 0.0
    %955 = vmatprep.subr.mxu0 0.0
    %956 = vmatpush1.msra.mxu0 0.0
    %957 = vmatprep.subr.mxu0 0.0
    %958 = vmatpush1.msra.mxu0 0.0
    %959 = vmatprep.subr.mxu0 0.0
    %960 = vmatpush1.msra.mxu0 0.0
    %961 = vmatprep.subr.mxu0 0.0
    %962 = vmatpush1.msra.mxu0 0.0
    %963 = vmatprep.subr.mxu0 0.0
    %964 = vmatpush1.msra.mxu0 0.0
    %965 = vmatprep.subr.mxu0 0.0
    %966 = vmatpush1.msra.mxu0 0.0
    %967 = vmatprep.subr.mxu0 0.0
    %968 = vmatpush1.msra.mxu0 0.0
    %969 = vmatprep.subr.mxu0 0.0
    %970 = vmatpush1.msra.mxu0 0.0
    %971 = vmatprep.subr.mxu0 0.0
    %972 = vmatpush1.msra.mxu0 0.0
    %973 = vmatprep.subr.mxu0 0.0
    %974 = vmatpush1.msra.mxu0 0.0
    %975 = vmatprep.subr.mxu0 0.0
    %976 = vmatpush1.msra.mxu0 0.0
    %977 = vmatprep.subr.mxu0 0.0
    %978 = vmatpush1.msra.mxu0 0.0
    %979 = vmatprep.mubr.f32.mxu0 0.0
    %980 = vmatmul.mubr.f32.gmra.mrb[0].mxu0 %v265
    %v981 = vpop.f32.mrb[0].mxu0
    %v982 = vadd.f32 %v898, %v981
    %v983 = vpop.f32.mrb[0].mxu0
    %984 = vdwg.mxu0
    %985 = vmatprep.subr.mxu0 0.0
    %986 = vmatpush1.msra.mxu0 %v875
    %987 = vmatprep.subr.mxu0 0.0
    %988 = vmatpush1.msra.mxu0 %v876
    %989 = vmatprep.subr.mxu0 0.0
    %990 = vmatpush1.msra.mxu0 %v877
    %991 = vmatprep.subr.mxu0 0.0
    %992 = vmatpush1.msra.mxu0 %v878
    %993 = vmatprep.subr.mxu0 0.0
    %994 = vmatpush1.msra.mxu0 0.0
    %995 = vmatprep.subr.mxu0 0.0
    %996 = vmatpush1.msra.mxu0 0.0
    %997 = vmatprep.subr.mxu0 0.0
    %998 = vmatpush1.msra.mxu0 0.0
    %999 = vmatprep.subr.mxu0 0.0
    %1000 = vmatpush1.msra.mxu0 0.0
    %1001 = vmatprep.subr.mxu0 0.0
    %1002 = vmatpush1.msra.mxu0 0.0
    %1003 = vmatprep.subr.mxu0 0.0
    %1004 = vmatpush1.msra.mxu0 0.0
    %1005 = vmatprep.subr.mxu0 0.0
    %1006 = vmatpush1.msra.mxu0 0.0
    %1007 = vmatprep.subr.mxu0 0.0
    %1008 = vmatpush1.msra.mxu0 0.0
    %1009 = vmatprep.subr.mxu0 0.0
    %1010 = vmatpush1.msra.mxu0 0.0
    %1011 = vmatprep.subr.mxu0 0.0
    %1012 = vmatpush1.msra.mxu0 0.0
    %1013 = vmatprep.subr.mxu0 0.0
    %1014 = vmatpush1.msra.mxu0 0.0
    %1015 = vmatprep.subr.mxu0 0.0
    %1016 = vmatpush1.msra.mxu0 0.0
    %1017 = vmatprep.subr.mxu0 0.0
    %1018 = vmatpush1.msra.mxu0 0.0
    %1019 = vmatprep.subr.mxu0 0.0
    %1020 = vmatpush1.msra.mxu0 0.0
    %1021 = vmatprep.subr.mxu0 0.0
    %1022 = vmatpush1.msra.mxu0 0.0
    %1023 = vmatprep.subr.mxu0 0.0
    %1024 = vmatpush1.msra.mxu0 0.0
    %1025 = vmatprep.subr.mxu0 0.0
    %1026 = vmatpush1.msra.mxu0 0.0
    %1027 = vmatprep.subr.mxu0 0.0
    %1028 = vmatpush1.msra.mxu0 0.0
    %1029 = vmatprep.subr.mxu0 0.0
    %1030 = vmatpush1.msra.mxu0 0.0
    %1031 = vmatprep.subr.mxu0 0.0
    %1032 = vmatpush1.msra.mxu0 0.0
    %1033 = vmatprep.subr.mxu0 0.0
    %1034 = vmatpush1.msra.mxu0 0.0
    %1035 = vmatprep.subr.mxu0 0.0
    %1036 = vmatpush1.msra.mxu0 0.0
    %1037 = vmatprep.subr.mxu0 0.0
    %1038 = vmatpush1.msra.mxu0 0.0
    %1039 = vmatprep.subr.mxu0 0.0
    %1040 = vmatpush1.msra.mxu0 0.0
    %1041 = vmatprep.subr.mxu0 0.0
    %1042 = vmatpush1.msra.mxu0 0.0
    %1043 = vmatprep.subr.mxu0 0.0
    %1044 = vmatpush1.msra.mxu0 0.0
    %1045 = vmatprep.subr.mxu0 0.0
    %1046 = vmatpush1.msra.mxu0 0.0
    %1047 = vmatprep.subr.mxu0 0.0
    %1048 = vmatpush1.msra.mxu0 0.0
    %1049 = vmatprep.mubr.f32.mxu0 0.0
    %1050 = vmatmul.mubr.f32.gmra.mrb[0].mxu0 %v265
    %v1051 = vpop.f32.mrb[0].mxu0
    %v1052 = vadd.f32 %v902, %v1051
    %v1053 = vpop.f32.mrb[0].mxu0
    %1054 = vdwg.mxu0
    %1055 = vmatprep.subr.mxu0 0.0
    %1056 = vmatpush1.msra.mxu0 %v879
    %1057 = vmatprep.subr.mxu0 0.0
    %1058 = vmatpush1.msra.mxu0 %v880
    %1059 = vmatprep.subr.mxu0 0.0
    %1060 = vmatpush1.msra.mxu0 %v881
    %1061 = vmatprep.subr.mxu0 0.0
    %1062 = vmatpush1.msra.mxu0 %v882
    %1063 = vmatprep.subr.mxu0 0.0
    %1064 = vmatpush1.msra.mxu0 0.0
    %1065 = vmatprep.subr.mxu0 0.0
    %1066 = vmatpush1.msra.mxu0 0.0
    %1067 = vmatprep.subr.mxu0 0.0
    %1068 = vmatpush1.msra.mxu0 0.0
    %1069 = vmatprep.subr.mxu0 0.0
    %1070 = vmatpush1.msra.mxu0 0.0
    %1071 = vmatprep.subr.mxu0 0.0
    %1072 = vmatpush1.msra.mxu0 0.0
    %1073 = vmatprep.subr.mxu0 0.0
    %1074 = vmatpush1.msra.mxu0 0.0
    %1075 = vmatprep.subr.mxu0 0.0
    %1076 = vmatpush1.msra.mxu0 0.0
    %1077 = vmatprep.subr.mxu0 0.0
    %1078 = vmatpush1.msra.mxu0 0.0
    %1079 = vmatprep.subr.mxu0 0.0
    %1080 = vmatpush1.msra.mxu0 0.0
    %1081 = vmatprep.subr.mxu0 0.0
    %1082 = vmatpush1.msra.mxu0 0.0
    %1083 = vmatprep.subr.mxu0 0.0
    %1084 = vmatpush1.msra.mxu0 0.0
    %1085 = vmatprep.subr.mxu0 0.0
    %1086 = vmatpush1.msra.mxu0 0.0
    %1087 = vmatprep.subr.mxu0 0.0
    %1088 = vmatpush1.msra.mxu0 0.0
    %1089 = vmatprep.subr.mxu0 0.0
    %1090 = vmatpush1.msra.mxu0 0.0
    %1091 = vmatprep.subr.mxu0 0.0
    %1092 = vmatpush1.msra.mxu0 0.0
    %1093 = vmatprep.subr.mxu0 0.0
    %1094 = vmatpush1.msra.mxu0 0.0
    %1095 = vmatprep.subr.mxu0 0.0
    %1096 = vmatpush1.msra.mxu0 0.0
    %1097 = vmatprep.subr.mxu0 0.0
    %1098 = vmatpush1.msra.mxu0 0.0
    %1099 = vmatprep.subr.mxu0 0.0
    %1100 = vmatpush1.msra.mxu0 0.0
    %1101 = vmatprep.subr.mxu0 0.0
    %1102 = vmatpush1.msra.mxu0 0.0
    %1103 = vmatprep.subr.mxu0 0.0
    %1104 = vmatpush1.msra.mxu0 0.0
    %1105 = vmatprep.subr.mxu0 0.0
    %1106 = vmatpush1.msra.mxu0 0.0
    %1107 = vmatprep.subr.mxu0 0.0
    %1108 = vmatpush1.msra.mxu0 0.0
    %1109 = vmatprep.subr.mxu0 0.0
    %1110 = vmatpush1.msra.mxu0 0.0
    %1111 = vmatprep.subr.mxu0 0.0
    %1112 = vmatpush1.msra.mxu0 0.0
    %1113 = vmatprep.subr.mxu0 0.0
    %1114 = vmatpush1.msra.mxu0 0.0
    %1115 = vmatprep.subr.mxu0 0.0
    %1116 = vmatpush1.msra.mxu0 0.0
    %1117 = vmatprep.subr.mxu0 0.0
    %1118 = vmatpush1.msra.mxu0 0.0
    %1119 = vmatprep.mubr.f32.mxu0 0.0
    %1120 = vmatmul.mubr.f32.gmra.mrb[0].mxu0 %v265
    %v1121 = vpop.f32.mrb[0].mxu0
    %v1122 = vadd.f32 %v906, %v1121
    %v1123 = vpop.f32.mrb[0].mxu0
    %1124 = vdwg.mxu0
    %1125 = vmatprep.subr.mxu0 0.0
    %1126 = vmatpush1.msra.mxu0 %v883
    %1127 = vmatprep.subr.mxu0 0.0
    %1128 = vmatpush1.msra.mxu0 %v884
    %1129 = vmatprep.subr.mxu0 0.0
    %1130 = vmatpush1.msra.mxu0 %v885
    %1131 = vmatprep.subr.mxu0 0.0
    %1132 = vmatpush1.msra.mxu0 %v886
    %1133 = vmatprep.subr.mxu0 0.0
    %1134 = vmatpush1.msra.mxu0 0.0
    %1135 = vmatprep.subr.mxu0 0.0
    %1136 = vmatpush1.msra.mxu0 0.0
    %1137 = vmatprep.subr.mxu0 0.0
    %1138 = vmatpush1.msra.mxu0 0.0
    %1139 = vmatprep.subr.mxu0 0.0
    %1140 = vmatpush1.msra.mxu0 0.0
    %1141 = vmatprep.subr.mxu0 0.0
    %1142 = vmatpush1.msra.mxu0 0.0
    %1143 = vmatprep.subr.mxu0 0.0
    %1144 = vmatpush1.msra.mxu0 0.0
    %1145 = vmatprep.subr.mxu0 0.0
    %1146 = vmatpush1.msra.mxu0 0.0
    %1147 = vmatprep.subr.mxu0 0.0
    %1148 = vmatpush1.msra.mxu0 0.0
    %1149 = vmatprep.subr.mxu0 0.0
    %1150 = vmatpush1.msra.mxu0 0.0
    %1151 = vmatprep.subr.mxu0 0.0
    %1152 = vmatpush1.msra.mxu0 0.0
    %1153 = vmatprep.subr.mxu0 0.0
    %1154 = vmatpush1.msra.mxu0 0.0
    %1155 = vmatprep.subr.mxu0 0.0
    %1156 = vmatpush1.msra.mxu0 0.0
    %1157 = vmatprep.subr.mxu0 0.0
    %1158 = vmatpush1.msra.mxu0 0.0
    %1159 = vmatprep.subr.mxu0 0.0
    %1160 = vmatpush1.msra.mxu0 0.0
    %1161 = vmatprep.subr.mxu0 0.0
    %1162 = vmatpush1.msra.mxu0 0.0
    %1163 = vmatprep.subr.mxu0 0.0
    %1164 = vmatpush1.msra.mxu0 0.0
    %1165 = vmatprep.subr.mxu0 0.0
    %1166 = vmatpush1.msra.mxu0 0.0
    %1167 = vmatprep.subr.mxu0 0.0
    %1168 = vmatpush1.msra.mxu0 0.0
    %1169 = vmatprep.subr.mxu0 0.0
    %1170 = vmatpush1.msra.mxu0 0.0
    %1171 = vmatprep.subr.mxu0 0.0
    %1172 = vmatpush1.msra.mxu0 0.0
    %1173 = vmatprep.subr.mxu0 0.0
    %1174 = vmatpush1.msra.mxu0 0.0
    %1175 = vmatprep.subr.mxu0 0.0
    %1176 = vmatpush1.msra.mxu0 0.0
    %1177 = vmatprep.subr.mxu0 0.0
    %1178 = vmatpush1.msra.mxu0 0.0
    %1179 = vmatprep.subr.mxu0 0.0
    %1180 = vmatpush1.msra.mxu0 0.0
    %1181 = vmatprep.subr.mxu0 0.0
    %1182 = vmatpush1.msra.mxu0 0.0
    %1183 = vmatprep.subr.mxu0 0.0
    %1184 = vmatpush1.msra.mxu0 0.0
    %1185 = vmatprep.subr.mxu0 0.0
    %1186 = vmatpush1.msra.mxu0 0.0
    %1187 = vmatprep.subr.mxu0 0.0
    %1188 = vmatpush1.msra.mxu0 0.0
    %1189 = vmatprep.mubr.f32.mxu0 0.0
    %1190 = vmatmul.mubr.f32.gmra.mrb[0].mxu0 %v265
    %v1191 = vpop.f32.mrb[0].mxu0
    %v1192 = vadd.f32 %v910, %v1191
    %v1193 = vpop.f32.mrb[0].mxu0
    %1194 = vdwg.mxu0
    %vm1195 = vcmask 64512
    %v1197 = vsel %vm1195, %v334, 0
    %v1200 = vsel %vm1195, %v658, 0
    %1202 = vmatprep.subr.mxu0 0.0
    %1203 = vmatpush1.xpose.msra.mxu0 %v1200
    %1204 = vmatprep.subr.mxu0 0.0
    %1205 = vmatpush1.xpose.msra.mxu0 0.0
    %1206 = vmatprep.subr.mxu0 0.0
    %1207 = vmatpush1.xpose.msra.mxu0 0.0
    %1208 = vmatprep.subr.mxu0 0.0
    %1209 = vmatpush1.xpose.msra.mxu0 0.0
    %1210 = vmatprep.subr.mxu0 0.0
    %1211 = vmatpush1.xpose.msra.mxu0 0.0
    %1212 = vmatprep.subr.mxu0 0.0
    %1213 = vmatpush1.xpose.msra.mxu0 0.0
    %1214 = vmatprep.subr.mxu0 0.0
    %1215 = vmatpush1.xpose.msra.mxu0 0.0
    %1216 = vmatprep.subr.mxu0 0.0
    %1217 = vmatpush1.xpose.msra.mxu0 0.0
    %1218 = vmatprep.subr.mxu0 0.0
    %1219 = vmatpush1.xpose.msra.mxu0 0.0
    %1220 = vmatprep.subr.mxu0 0.0
    %1221 = vmatpush1.xpose.msra.mxu0 0.0
    %1222 = vmatprep.subr.mxu0 0.0
    %1223 = vmatpush1.xpose.msra.mxu0 0.0
    %1224 = vmatprep.subr.mxu0 0.0
    %1225 = vmatpush1.xpose.msra.mxu0 0.0
    %1226 = vmatprep.subr.mxu0 0.0
    %1227 = vmatpush1.xpose.msra.mxu0 0.0
    %1228 = vmatprep.subr.mxu0 0.0
    %1229 = vmatpush1.xpose.msra.mxu0 0.0
    %1230 = vmatprep.subr.mxu0 0.0
    %1231 = vmatpush1.xpose.msra.mxu0 0.0
    %1232 = vmatprep.subr.mxu0 0.0
    %1233 = vmatpush1.xpose.msra.mxu0 0.0
    %1234 = vmatprep.subr.mxu0 0.0
    %1235 = vmatpush1.xpose.msra.mxu0 0.0
    %1236 = vmatprep.subr.mxu0 0.0
    %1237 = vmatpush1.xpose.msra.mxu0 0.0
    %1238 = vmatprep.subr.mxu0 0.0
    %1239 = vmatpush1.xpose.msra.mxu0 0.0
    %1240 = vmatprep.subr.mxu0 0.0
    %1241 = vmatpush1.xpose.msra.mxu0 0.0
    %1242 = vmatprep.subr.mxu0 0.0
    %1243 = vmatpush1.xpose.msra.mxu0 0.0
    %1244 = vmatprep.subr.mxu0 0.0
    %1245 = vmatpush1.xpose.msra.mxu0 0.0
    %1246 = vmatprep.subr.mxu0 0.0
    %1247 = vmatpush1.xpose.msra.mxu0 0.0
    %1248 = vmatprep.subr.mxu0 0.0
    %1249 = vmatpush1.xpose.msra.mxu0 0.0
    %1250 = vmatprep.subr.mxu0 0.0
    %1251 = vmatpush1.xpose.msra.mxu0 0.0
    %1252 = vmatprep.subr.mxu0 0.0
    %1253 = vmatpush1.xpose.msra.mxu0 0.0
    %1254 = vmatprep.subr.mxu0 0.0
    %1255 = vmatpush1.xpose.msra.mxu0 0.0
    %1256 = vmatprep.subr.mxu0 0.0
    %1257 = vmatpush1.xpose.msra.mxu0 0.0
    %1258 = vmatprep.subr.mxu0 0.0
    %1259 = vmatpush1.xpose.msra.mxu0 0.0
    %1260 = vmatprep.subr.mxu0 0.0
    %1261 = vmatpush1.xpose.msra.mxu0 0.0
    %1262 = vmatprep.subr.mxu0 0.0
    %1263 = vmatpush1.xpose.msra.mxu0 0.0
    %1264 = vmatprep.subr.mxu0 0.0
    %1265 = vmatpush1.xpose.msra.mxu0 0.0
    %1266 = vmatprep.mubr.f32.mxu0 0.0
    %1267 = vmatmul.mubr.f32.gmra.mrb[0].mxu0 %v1197
    %v1268 = vpop.f32.mrb[0].mxu0
    %v1269 = vadd.f32 %v188, %v1268
    %v1270 = vpop.f32.mrb[0].mxu0
    %1271 = vdwg.mxu0
    %v1273 = vsel %vm1195, %v404, 0
    %v1276 = vsel %vm1195, %v728, 0
    %1278 = vmatprep.subr.mxu0 0.0
    %1279 = vmatpush1.xpose.msra.mxu0 %v1276
    %1280 = vmatprep.subr.mxu0 0.0
    %1281 = vmatpush1.xpose.msra.mxu0 0.0
    %1282 = vmatprep.subr.mxu0 0.0
    %1283 = vmatpush1.xpose.msra.mxu0 0.0
    %1284 = vmatprep.subr.mxu0 0.0
    %1285 = vmatpush1.xpose.msra.mxu0 0.0
    %1286 = vmatprep.subr.mxu0 0.0
    %1287 = vmatpush1.xpose.msra.mxu0 0.0
    %1288 = vmatprep.subr.mxu0 0.0
    %1289 = vmatpush1.xpose.msra.mxu0 0.0
    %1290 = vmatprep.subr.mxu0 0.0
    %1291 = vmatpush1.xpose.msra.mxu0 0.0
    %1292 = vmatprep.subr.mxu0 0.0
    %1293 = vmatpush1.xpose.msra.mxu0 0.0
    %1294 = vmatprep.subr.mxu0 0.0
    %1295 = vmatpush1.xpose.msra.mxu0 0.0
    %1296 = vmatprep.subr.mxu0 0.0
    %1297 = vmatpush1.xpose.msra.mxu0 0.0
    %1298 = vmatprep.subr.mxu0 0.0
    %1299 = vmatpush1.xpose.msra.mxu0 0.0
    %1300 = vmatprep.subr.mxu0 0.0
    %1301 = vmatpush1.xpose.msra.mxu0 0.0
    %1302 = vmatprep.subr.mxu0 0.0
    %1303 = vmatpush1.xpose.msra.mxu0 0.0
    %1304 = vmatprep.subr.mxu0 0.0
    %1305 = vmatpush1.xpose.msra.mxu0 0.0
    %1306 = vmatprep.subr.mxu0 0.0
    %1307 = vmatpush1.xpose.msra.mxu0 0.0
    %1308 = vmatprep.subr.mxu0 0.0
    %1309 = vmatpush1.xpose.msra.mxu0 0.0
    %1310 = vmatprep.subr.mxu0 0.0
    %1311 = vmatpush1.xpose.msra.mxu0 0.0
    %1312 = vmatprep.subr.mxu0 0.0
    %1313 = vmatpush1.xpose.msra.mxu0 0.0
    %1314 = vmatprep.subr.mxu0 0.0
    %1315 = vmatpush1.xpose.msra.mxu0 0.0
    %1316 = vmatprep.subr.mxu0 0.0
    %1317 = vmatpush1.xpose.msra.mxu0 0.0
    %1318 = vmatprep.subr.mxu0 0.0
    %1319 = vmatpush1.xpose.msra.mxu0 0.0
    %1320 = vmatprep.subr.mxu0 0.0
    %1321 = vmatpush1.xpose.msra.mxu0 0.0
    %1322 = vmatprep.subr.mxu0 0.0
    %1323 = vmatpush1.xpose.msra.mxu0 0.0
    %1324 = vmatprep.subr.mxu0 0.0
    %1325 = vmatpush1.xpose.msra.mxu0 0.0
    %1326 = vmatprep.subr.mxu0 0.0
    %1327 = vmatpush1.xpose.msra.mxu0 0.0
    %1328 = vmatprep.subr.mxu0 0.0
    %1329 = vmatpush1.xpose.msra.mxu0 0.0
    %1330 = vmatprep.subr.mxu0 0.0
    %1331 = vmatpush1.xpose.msra.mxu0 0.0
    %1332 = vmatprep.subr.mxu0 0.0
    %1333 = vmatpush1.xpose.msra.mxu0 0.0
    %1334 = vmatprep.subr.mxu0 0.0
    %1335 = vmatpush1.xpose.msra.mxu0 0.0
    %1336 = vmatprep.subr.mxu0 0.0
    %1337 = vmatpush1.xpose.msra.mxu0 0.0
    %1338 = vmatprep.subr.mxu0 0.0
    %1339 = vmatpush1.xpose.msra.mxu0 0.0
    %1340 = vmatprep.subr.mxu0 0.0
    %1341 = vmatpush1.xpose.msra.mxu0 0.0
    %1342 = vmatprep.mubr.f32.mxu0 0.0
    %1343 = vmatmul.mubr.f32.gmra.mrb[0].mxu0 %v1273
    %v1344 = vpop.f32.mrb[0].mxu0
    %v1345 = vadd.f32 %v188, %v1344
    %v1346 = vpop.f32.mrb[0].mxu0
    %1347 = vdwg.mxu0
    %v1349 = vsel %vm1195, %v474, 0
    %v1352 = vsel %vm1195, %v798, 0
    %1354 = vmatprep.subr.mxu0 0.0
    %1355 = vmatpush1.xpose.msra.mxu0 %v1352
    %1356 = vmatprep.subr.mxu0 0.0
    %1357 = vmatpush1.xpose.msra.mxu0 0.0
    %1358 = vmatprep.subr.mxu0 0.0
    %1359 = vmatpush1.xpose.msra.mxu0 0.0
    %1360 = vmatprep.subr.mxu0 0.0
    %1361 = vmatpush1.xpose.msra.mxu0 0.0
    %1362 = vmatprep.subr.mxu0 0.0
    %1363 = vmatpush1.xpose.msra.mxu0 0.0
    %1364 = vmatprep.subr.mxu0 0.0
    %1365 = vmatpush1.xpose.msra.mxu0 0.0
    %1366 = vmatprep.subr.mxu0 0.0
    %1367 = vmatpush1.xpose.msra.mxu0 0.0
    %1368 = vmatprep.subr.mxu0 0.0
    %1369 = vmatpush1.xpose.msra.mxu0 0.0
    %1370 = vmatprep.subr.mxu0 0.0
    %1371 = vmatpush1.xpose.msra.mxu0 0.0
    %1372 = vmatprep.subr.mxu0 0.0
    %1373 = vmatpush1.xpose.msra.mxu0 0.0
    %1374 = vmatprep.subr.mxu0 0.0
    %1375 = vmatpush1.xpose.msra.mxu0 0.0
    %1376 = vmatprep.subr.mxu0 0.0
    %1377 = vmatpush1.xpose.msra.mxu0 0.0
    %1378 = vmatprep.subr.mxu0 0.0
    %1379 = vmatpush1.xpose.msra.mxu0 0.0
    %1380 = vmatprep.subr.mxu0 0.0
    %1381 = vmatpush1.xpose.msra.mxu0 0.0
    %1382 = vmatprep.subr.mxu0 0.0
    %1383 = vmatpush1.xpose.msra.mxu0 0.0
    %1384 = vmatprep.subr.mxu0 0.0
    %1385 = vmatpush1.xpose.msra.mxu0 0.0
    %1386 = vmatprep.subr.mxu0 0.0
    %1387 = vmatpush1.xpose.msra.mxu0 0.0
    %1388 = vmatprep.subr.mxu0 0.0
    %1389 = vmatpush1.xpose.msra.mxu0 0.0
    %1390 = vmatprep.subr.mxu0 0.0
    %1391 = vmatpush1.xpose.msra.mxu0 0.0
    %1392 = vmatprep.subr.mxu0 0.0
    %1393 = vmatpush1.xpose.msra.mxu0 0.0
    %1394 = vmatprep.subr.mxu0 0.0
    %1395 = vmatpush1.xpose.msra.mxu0 0.0
    %1396 = vmatprep.subr.mxu0 0.0
    %1397 = vmatpush1.xpose.msra.mxu0 0.0
    %1398 = vmatprep.subr.mxu0 0.0
    %1399 = vmatpush1.xpose.msra.mxu0 0.0
    %1400 = vmatprep.subr.mxu0 0.0
    %1401 = vmatpush1.xpose.msra.mxu0 0.0
    %1402 = vmatprep.subr.mxu0 0.0
    %1403 = vmatpush1.xpose.msra.mxu0 0.0
    %1404 = vmatprep.subr.mxu0 0.0
    %1405 = vmatpush1.xpose.msra.mxu0 0.0
    %1406 = vmatprep.subr.mxu0 0.0
    %1407 = vmatpush1.xpose.msra.mxu0 0.0
    %1408 = vmatprep.subr.mxu0 0.0
    %1409 = vmatpush1.xpose.msra.mxu0 0.0
    %1410 = vmatprep.subr.mxu0 0.0
    %1411 = vmatpush1.xpose.msra.mxu0 0.0
    %1412 = vmatprep.subr.mxu0 0.0
    %1413 = vmatpush1.xpose.msra.mxu0 0.0
    %1414 = vmatprep.subr.mxu0 0.0
    %1415 = vmatpush1.xpose.msra.mxu0 0.0
    %1416 = vmatprep.subr.mxu0 0.0
    %1417 = vmatpush1.xpose.msra.mxu0 0.0
    %1418 = vmatprep.mubr.f32.mxu0 0.0
    %1419 = vmatmul.mubr.f32.gmra.mrb[0].mxu0 %v1349
    %v1420 = vpop.f32.mrb[0].mxu0
    %v1421 = vadd.f32 %v188, %v1420
    %v1422 = vpop.f32.mrb[0].mxu0
    %1423 = vdwg.mxu0
    %v1425 = vsel %vm1195, %v544, 0
    %v1428 = vsel %vm1195, %v868, 0
    %1430 = vmatprep.subr.mxu0 0.0
    %1431 = vmatpush1.xpose.msra.mxu0 %v1428
    %1432 = vmatprep.subr.mxu0 0.0
    %1433 = vmatpush1.xpose.msra.mxu0 0.0
    %1434 = vmatprep.subr.mxu0 0.0
    %1435 = vmatpush1.xpose.msra.mxu0 0.0
    %1436 = vmatprep.subr.mxu0 0.0
    %1437 = vmatpush1.xpose.msra.mxu0 0.0
    %1438 = vmatprep.subr.mxu0 0.0
    %1439 = vmatpush1.xpose.msra.mxu0 0.0
    %1440 = vmatprep.subr.mxu0 0.0
    %1441 = vmatpush1.xpose.msra.mxu0 0.0
    %1442 = vmatprep.subr.mxu0 0.0
    %1443 = vmatpush1.xpose.msra.mxu0 0.0
    %1444 = vmatprep.subr.mxu0 0.0
    %1445 = vmatpush1.xpose.msra.mxu0 0.0
    %1446 = vmatprep.subr.mxu0 0.0
    %1447 = vmatpush1.xpose.msra.mxu0 0.0
    %1448 = vmatprep.subr.mxu0 0.0
    %1449 = vmatpush1.xpose.msra.mxu0 0.0
    %1450 = vmatprep.subr.mxu0 0.0
    %1451 = vmatpush1.xpose.msra.mxu0 0.0
    %1452 = vmatprep.subr.mxu0 0.0
    %1453 = vmatpush1.xpose.msra.mxu0 0.0
    %1454 = vmatprep.subr.mxu0 0.0
    %1455 = vmatpush1.xpose.msra.mxu0 0.0
    %1456 = vmatprep.subr.mxu0 0.0
    %1457 = vmatpush1.xpose.msra.mxu0 0.0
    %1458 = vmatprep.subr.mxu0 0.0
    %1459 = vmatpush1.xpose.msra.mxu0 0.0
    %1460 = vmatprep.subr.mxu0 0.0
    %1461 = vmatpush1.xpose.msra.mxu0 0.0
    %1462 = vmatprep.subr.mxu0 0.0
    %1463 = vmatpush1.xpose.msra.mxu0 0.0
    %1464 = vmatprep.subr.mxu0 0.0
    %1465 = vmatpush1.xpose.msra.mxu0 0.0
    %1466 = vmatprep.subr.mxu0 0.0
    %1467 = vmatpush1.xpose.msra.mxu0 0.0
    %1468 = vmatprep.subr.mxu0 0.0
    %1469 = vmatpush1.xpose.msra.mxu0 0.0
    %1470 = vmatprep.subr.mxu0 0.0
    %1471 = vmatpush1.xpose.msra.mxu0 0.0
    %1472 = vmatprep.subr.mxu0 0.0
    %1473 = vmatpush1.xpose.msra.mxu0 0.0
    %1474 = vmatprep.subr.mxu0 0.0
    %1475 = vmatpush1.xpose.msra.mxu0 0.0
    %1476 = vmatprep.subr.mxu0 0.0
    %1477 = vmatpush1.xpose.msra.mxu0 0.0
    %1478 = vmatprep.subr.mxu0 0.0
    %1479 = vmatpush1.xpose.msra.mxu0 0.0
    %1480 = vmatprep.subr.mxu0 0.0
    %1481 = vmatpush1.xpose.msra.mxu0 0.0
    %1482 = vmatprep.subr.mxu0 0.0
    %1483 = vmatpush1.xpose.msra.mxu0 0.0
    %1484 = vmatprep.subr.mxu0 0.0
    %1485 = vmatpush1.xpose.msra.mxu0 0.0
    %1486 = vmatprep.subr.mxu0 0.0
    %1487 = vmatpush1.xpose.msra.mxu0 0.0
    %1488 = vmatprep.subr.mxu0 0.0
    %1489 = vmatpush1.xpose.msra.mxu0 0.0
    %1490 = vmatprep.subr.mxu0 0.0
    %1491 = vmatpush1.xpose.msra.mxu0 0.0
    %1492 = vmatprep.subr.mxu0 0.0
    %1493 = vmatpush1.xpose.msra.mxu0 0.0
    %1494 = vmatprep.mubr.f32.mxu0 0.0
    %1495 = vmatmul.mubr.f32.gmra.mrb[0].mxu0 %v1425
    %v1496 = vpop.f32.mrb[0].mxu0
    %v1497 = vadd.f32 %v188, %v1496
    %v1498 = vpop.f32.mrb[0].mxu0
    %1499 = vdwg.mxu0
    %v1500 = vsel %vm1195, %v1269, -inf
    %1501 = vmax.xlane.f32.xlu0 %v1500
    %v1502 = vpop.xlane.xlu0 %1501
    %v1503 = vsel %vm1195, %v1345, -inf
    %1504 = vmax.xlane.f32.xlu0 %v1503
    %v1505 = vpop.xlane.xlu0 %1504
    %v1506 = vsel %vm1195, %v1421, -inf
    %1507 = vmax.xlane.f32.xlu0 %v1506
    %v1508 = vpop.xlane.xlu0 %1507
    %v1509 = vsel %vm1195, %v1497, -inf
    %1510 = vmax.xlane.f32.xlu0 %v1509
    %v1511 = vpop.xlane.xlu0 %1510
    %v1512 = vsub.f32 %v1269, %v1502
    %v1513 = vsub.f32 %v1345, %v1505
    %v1514 = vsub.f32 %v1421, %v1508
    %v1515 = vsub.f32 %v1497, %v1511
    %v1516 = vmul.f32 %v1512, 1.442695
    %v1517 = vpow.pop %v1516
    %v1518 = vmul.f32 %v1513, 1.442695
    %v1519 = vpow.pop %v1518
    %v1520 = vmul.f32 %v1514, 1.442695
    %v1521 = vpow.pop %v1520
    %v1522 = vmul.f32 %v1515, 1.442695
    %v1523 = vpow.pop %v1522
    %v1524 = vsel %vm1195, %v1517, 0.0
    %1525 = vadd.xlane.f32.xlu0 %v1524
    %v1526 = vpop.xlane.xlu0 %1525
    %v1527 = vsel %vm1195, %v1519, 0.0
    %1528 = vadd.xlane.f32.xlu0 %v1527
    %v1529 = vpop.xlane.xlu0 %1528
    %v1530 = vsel %vm1195, %v1521, 0.0
    %1531 = vadd.xlane.f32.xlu0 %v1530
    %v1532 = vpop.xlane.xlu0 %1531
    %v1533 = vsel %vm1195, %v1523, 0.0
    %1534 = vadd.xlane.f32.xlu0 %v1533
    %v1535 = vpop.xlane.xlu0 %1534
    %v1536 = vrcp.pop %v1526
    %v1537 = vrcp.pop %v1529
    %v1538 = vrcp.pop %v1532
    %v1539 = vrcp.pop %v1535
    %v1540 = vmul.f32 %v1517, %v1536
    %v1541 = vmul.f32 %v1519, %v1537
    %v1542 = vmul.f32 %v1521, %v1538
    %v1543 = vmul.f32 %v1523, %v1539
    %v1545 = vsel %vm1195, %v1540, 0
    %1547 = vmatprep.subr.mxu0 0.0
    %1548 = vmatpush1.msra.mxu0 %v982
    %1549 = vmatprep.subr.mxu0 0.0
    %1550 = vmatpush1.msra.mxu0 0.0
    %1551 = vmatprep.subr.mxu0 0.0
    %1552 = vmatpush1.msra.mxu0 0.0
    %1553 = vmatprep.subr.mxu0 0.0
    %1554 = vmatpush1.msra.mxu0 0.0
    %1555 = vmatprep.subr.mxu0 0.0
    %1556 = vmatpush1.msra.mxu0 0.0
    %1557 = vmatprep.subr.mxu0 0.0
    %1558 = vmatpush1.msra.mxu0 0.0
    %1559 = vmatprep.subr.mxu0 0.0
    %1560 = vmatpush1.msra.mxu0 0.0
    %1561 = vmatprep.subr.mxu0 0.0
    %1562 = vmatpush1.msra.mxu0 0.0
    %1563 = vmatprep.subr.mxu0 0.0
    %1564 = vmatpush1.msra.mxu0 0.0
    %1565 = vmatprep.subr.mxu0 0.0
    %1566 = vmatpush1.msra.mxu0 0.0
    %1567 = vmatprep.subr.mxu0 0.0
    %1568 = vmatpush1.msra.mxu0 0.0
    %1569 = vmatprep.subr.mxu0 0.0
    %1570 = vmatpush1.msra.mxu0 0.0
    %1571 = vmatprep.subr.mxu0 0.0
    %1572 = vmatpush1.msra.mxu0 0.0
    %1573 = vmatprep.subr.mxu0 0.0
    %1574 = vmatpush1.msra.mxu0 0.0
    %1575 = vmatprep.subr.mxu0 0.0
    %1576 = vmatpush1.msra.mxu0 0.0
    %1577 = vmatprep.subr.mxu0 0.0
    %1578 = vmatpush1.msra.mxu0 0.0
    %1579 = vmatprep.subr.mxu0 0.0
    %1580 = vmatpush1.msra.mxu0 0.0
    %1581 = vmatprep.subr.mxu0 0.0
    %1582 = vmatpush1.msra.mxu0 0.0
    %1583 = vmatprep.subr.mxu0 0.0
    %1584 = vmatpush1.msra.mxu0 0.0
    %1585 = vmatprep.subr.mxu0 0.0
    %1586 = vmatpush1.msra.mxu0 0.0
    %1587 = vmatprep.subr.mxu0 0.0
    %1588 = vmatpush1.msra.mxu0 0.0
    %1589 = vmatprep.subr.mxu0 0.0
    %1590 = vmatpush1.msra.mxu0 0.0
    %1591 = vmatprep.subr.mxu0 0.0
    %1592 = vmatpush1.msra.mxu0 0.0
    %1593 = vmatprep.subr.mxu0 0.0
    %1594 = vmatpush1.msra.mxu0 0.0
    %1595 = vmatprep.subr.mxu0 0.0
    %1596 = vmatpush1.msra.mxu0 0.0
    %1597 = vmatprep.subr.mxu0 0.0
    %1598 = vmatpush1.msra.mxu0 0.0
    %1599 = vmatprep.subr.mxu0 0.0
    %1600 = vmatpush1.msra.mxu0 0.0
    %1601 = vmatprep.subr.mxu0 0.0
    %1602 = vmatpush1.msra.mxu0 0.0
    %1603 = vmatprep.subr.mxu0 0.0
    %1604 = vmatpush1.msra.mxu0 0.0
    %1605 = vmatprep.subr.mxu0 0.0
    %1606 = vmatpush1.msra.mxu0 0.0
    %1607 = vmatprep.subr.mxu0 0.0
    %1608 = vmatpush1.msra.mxu0 0.0
    %1609 = vmatprep.subr.mxu0 0.0
    %1610 = vmatpush1.msra.mxu0 0.0
    %1611 = vmatprep.mubr.f32.mxu0 0.0
    %1612 = vmatmul.mubr.f32.gmra.mrb[0].mxu0 %v1545
    %v1613 = vpop.f32.mrb[0].mxu0
    %v1614 = vadd.f32 0.0, %v1613
    %v1615 = vpop.f32.mrb[0].mxu0
    %1616 = vdwg.mxu0
    %v1618 = vsel %vm1195, %v1541, 0
    %1620 = vmatprep.subr.mxu0 0.0
    %1621 = vmatpush1.msra.mxu0 %v1052
    %1622 = vmatprep.subr.mxu0 0.0
    %1623 = vmatpush1.msra.mxu0 0.0
    %1624 = vmatprep.subr.mxu0 0.0
    %1625 = vmatpush1.msra.mxu0 0.0
    %1626 = vmatprep.subr.mxu0 0.0
    %1627 = vmatpush1.msra.mxu0 0.0
    %1628 = vmatprep.subr.mxu0 0.0
    %1629 = vmatpush1.msra.mxu0 0.0
    %1630 = vmatprep.subr.mxu0 0.0
    %1631 = vmatpush1.msra.mxu0 0.0
    %1632 = vmatprep.subr.mxu0 0.0
    %1633 = vmatpush1.msra.mxu0 0.0
    %1634 = vmatprep.subr.mxu0 0.0
    %1635 = vmatpush1.msra.mxu0 0.0
    %1636 = vmatprep.subr.mxu0 0.0
    %1637 = vmatpush1.msra.mxu0 0.0
    %1638 = vmatprep.subr.mxu0 0.0
    %1639 = vmatpush1.msra.mxu0 0.0
    %1640 = vmatprep.subr.mxu0 0.0
    %1641 = vmatpush1.msra.mxu0 0.0
    %1642 = vmatprep.subr.mxu0 0.0
    %1643 = vmatpush1.msra.mxu0 0.0
    %1644 = vmatprep.subr.mxu0 0.0
    %1645 = vmatpush1.msra.mxu0 0.0
    %1646 = vmatprep.subr.mxu0 0.0
    %1647 = vmatpush1.msra.mxu0 0.0
    %1648 = vmatprep.subr.mxu0 0.0
    %1649 = vmatpush1.msra.mxu0 0.0
    %1650 = vmatprep.subr.mxu0 0.0
    %1651 = vmatpush1.msra.mxu0 0.0
    %1652 = vmatprep.subr.mxu0 0.0
    %1653 = vmatpush1.msra.mxu0 0.0
    %1654 = vmatprep.subr.mxu0 0.0
    %1655 = vmatpush1.msra.mxu0 0.0
    %1656 = vmatprep.subr.mxu0 0.0
    %1657 = vmatpush1.msra.mxu0 0.0
    %1658 = vmatprep.subr.mxu0 0.0
    %1659 = vmatpush1.msra.mxu0 0.0
    %1660 = vmatprep.subr.mxu0 0.0
    %1661 = vmatpush1.msra.mxu0 0.0
    %1662 = vmatprep.subr.mxu0 0.0
    %1663 = vmatpush1.msra.mxu0 0.0
    %1664 = vmatprep.subr.mxu0 0.0
    %1665 = vmatpush1.msra.mxu0 0.0
    %1666 = vmatprep.subr.mxu0 0.0
    %1667 = vmatpush1.msra.mxu0 0.0
    %1668 = vmatprep.subr.mxu0 0.0
    %1669 = vmatpush1.msra.mxu0 0.0
    %1670 = vmatprep.subr.mxu0 0.0
    %1671 = vmatpush1.msra.mxu0 0.0
    %1672 = vmatprep.subr.mxu0 0.0
    %1673 = vmatpush1.msra.mxu0 0.0
    %1674 = vmatprep.subr.mxu0 0.0
    %1675 = vmatpush1.msra.mxu0 0.0
    %1676 = vmatprep.subr.mxu0 0.0
    %1677 = vmatpush1.msra.mxu0 0.0
    %1678 = vmatprep.subr.mxu0 0.0
    %1679 = vmatpush1.msra.mxu0 0.0
    %1680 = vmatprep.subr.mxu0 0.0
    %1681 = vmatpush1.msra.mxu0 0.0
    %1682 = vmatprep.subr.mxu0 0.0
    %1683 = vmatpush1.msra.mxu0 0.0
    %1684 = vmatprep.mubr.f32.mxu0 0.0
    %1685 = vmatmul.mubr.f32.gmra.mrb[0].mxu0 %v1618
    %v1686 = vpop.f32.mrb[0].mxu0
    %v1687 = vadd.f32 0.0, %v1686
    %v1688 = vpop.f32.mrb[0].mxu0
    %1689 = vdwg.mxu0
    %v1691 = vsel %vm1195, %v1542, 0
    %1693 = vmatprep.subr.mxu0 0.0
    %1694 = vmatpush1.msra.mxu0 %v1122
    %1695 = vmatprep.subr.mxu0 0.0
    %1696 = vmatpush1.msra.mxu0 0.0
    %1697 = vmatprep.subr.mxu0 0.0
    %1698 = vmatpush1.msra.mxu0 0.0
    %1699 = vmatprep.subr.mxu0 0.0
    %1700 = vmatpush1.msra.mxu0 0.0
    %1701 = vmatprep.subr.mxu0 0.0
    %1702 = vmatpush1.msra.mxu0 0.0
    %1703 = vmatprep.subr.mxu0 0.0
    %1704 = vmatpush1.msra.mxu0 0.0
    %1705 = vmatprep.subr.mxu0 0.0
    %1706 = vmatpush1.msra.mxu0 0.0
    %1707 = vmatprep.subr.mxu0 0.0
    %1708 = vmatpush1.msra.mxu0 0.0
    %1709 = vmatprep.subr.mxu0 0.0
    %1710 = vmatpush1.msra.mxu0 0.0
    %1711 = vmatprep.subr.mxu0 0.0
    %1712 = vmatpush1.msra.mxu0 0.0
    %1713 = vmatprep.subr.mxu0 0.0
    %1714 = vmatpush1.msra.mxu0 0.0
    %1715 = vmatprep.subr.mxu0 0.0
    %1716 = vmatpush1.msra.mxu0 0.0
    %1717 = vmatprep.subr.mxu0 0.0
    %1718 = vmatpush1.msra.mxu0 0.0
    %1719 = vmatprep.subr.mxu0 0.0
    %1720 = vmatpush1.msra.mxu0 0.0
    %1721 = vmatprep.subr.mxu0 0.0
    %1722 = vmatpush1.msra.mxu0 0.0
    %1723 = vmatprep.subr.mxu0 0.0
    %1724 = vmatpush1.msra.mxu0 0.0
    %1725 = vmatprep.subr.mxu0 0.0
    %1726 = vmatpush1.msra.mxu0 0.0
    %1727 = vmatprep.subr.mxu0 0.0
    %1728 = vmatpush1.msra.mxu0 0.0
    %1729 = vmatprep.subr.mxu0 0.0
    %1730 = vmatpush1.msra.mxu0 0.0
    %1731 = vmatprep.subr.mxu0 0.0
    %1732 = vmatpush1.msra.mxu0 0.0
    %1733 = vmatprep.subr.mxu0 0.0
    %1734 = vmatpush1.msra.mxu0 0.0
    %1735 = vmatprep.subr.mxu0 0.0
    %1736 = vmatpush1.msra.mxu0 0.0
    %1737 = vmatprep.subr.mxu0 0.0
    %1738 = vmatpush1.msra.mxu0 0.0
    %1739 = vmatprep.subr.mxu0 0.0
    %1740 = vmatpush1.msra.mxu0 0.0
    %1741 = vmatprep.subr.mxu0 0.0
    %1742 = vmatpush1.msra.mxu0 0.0
    %1743 = vmatprep.subr.mxu0 0.0
    %1744 = vmatpush1.msra.mxu0 0.0
    %1745 = vmatprep.subr.mxu0 0.0
    %1746 = vmatpush1.msra.mxu0 0.0
    %1747 = vmatprep.subr.mxu0 0.0
    %1748 = vmatpush1.msra.mxu0 0.0
    %1749 = vmatprep.subr.mxu0 0.0
    %1750 = vmatpush1.msra.mxu0 0.0
    %1751 = vmatprep.subr.mxu0 0.0
    %1752 = vmatpush1.msra.mxu0 0.0
    %1753 = vmatprep.subr.mxu0 0.0
    %1754 = vmatpush1.msra.mxu0 0.0
    %1755 = vmatprep.subr.mxu0 0.0
    %1756 = vmatpush1.msra.mxu0 0.0
    %1757 = vmatprep.mubr.f32.mxu0 0.0
    %1758 = vmatmul.mubr.f32.gmra.mrb[0].mxu0 %v1691
    %v1759 = vpop.f32.mrb[0].mxu0
    %v1760 = vadd.f32 0.0, %v1759
    %v1761 = vpop.f32.mrb[0].mxu0
    %1762 = vdwg.mxu0
    %v1764 = vsel %vm1195, %v1543, 0
    %1766 = vmatprep.subr.mxu0 0.0
    %1767 = vmatpush1.msra.mxu0 %v1192
    %1768 = vmatprep.subr.mxu0 0.0
    %1769 = vmatpush1.msra.mxu0 0.0
    %1770 = vmatprep.subr.mxu0 0.0
    %1771 = vmatpush1.msra.mxu0 0.0
    %1772 = vmatprep.subr.mxu0 0.0
    %1773 = vmatpush1.msra.mxu0 0.0
    %1774 = vmatprep.subr.mxu0 0.0
    %1775 = vmatpush1.msra.mxu0 0.0
    %1776 = vmatprep.subr.mxu0 0.0
    %1777 = vmatpush1.msra.mxu0 0.0
    %1778 = vmatprep.subr.mxu0 0.0
    %1779 = vmatpush1.msra.mxu0 0.0
    %1780 = vmatprep.subr.mxu0 0.0
    %1781 = vmatpush1.msra.mxu0 0.0
    %1782 = vmatprep.subr.mxu0 0.0
    %1783 = vmatpush1.msra.mxu0 0.0
    %1784 = vmatprep.subr.mxu0 0.0
    %1785 = vmatpush1.msra.mxu0 0.0
    %1786 = vmatprep.subr.mxu0 0.0
    %1787 = vmatpush1.msra.mxu0 0.0
    %1788 = vmatprep.subr.mxu0 0.0
    %1789 = vmatpush1.msra.mxu0 0.0
    %1790 = vmatprep.subr.mxu0 0.0
    %1791 = vmatpush1.msra.mxu0 0.0
    %1792 = vmatprep.subr.mxu0 0.0
    %1793 = vmatpush1.msra.mxu0 0.0
    %1794 = vmatprep.subr.mxu0 0.0
    %1795 = vmatpush1.msra.mxu0 0.0
    %1796 = vmatprep.subr.mxu0 0.0
    %1797 = vmatpush1.msra.mxu0 0.0
    %1798 = vmatprep.subr.mxu0 0.0
    %1799 = vmatpush1.msra.mxu0 0.0
    %1800 = vmatprep.subr.mxu0 0.0
    %1801 = vmatpush1.msra.mxu0 0.0
    %1802 = vmatprep.subr.mxu0 0.0
    %1803 = vmatpush1.msra.mxu0 0.0
    %1804 = vmatprep.subr.mxu0 0.0
    %1805 = vmatpush1.msra.mxu0 0.0
    %1806 = vmatprep.subr.mxu0 0.0
    %1807 = vmatpush1.msra.mxu0 0.0
    %1808 = vmatprep.subr.mxu0 0.0
    %1809 = vmatpush1.msra.mxu0 0.0
    %1810 = vmatprep.subr.mxu0 0.0
    %1811 = vmatpush1.msra.mxu0 0.0
    %1812 = vmatprep.subr.mxu0 0.0
    %1813 = vmatpush1.msra.mxu0 0.0
    %1814 = vmatprep.subr.mxu0 0.0
    %1815 = vmatpush1.msra.mxu0 0.0
    %1816 = vmatprep.subr.mxu0 0.0
    %1817 = vmatpush1.msra.mxu0 0.0
    %1818 = vmatprep.subr.mxu0 0.0
    %1819 = vmatpush1.msra.mxu0 0.0
    %1820 = vmatprep.subr.mxu0 0.0
    %1821 = vmatpush1.msra.mxu0 0.0
    %1822 = vmatprep.subr.mxu0 0.0
    %1823 = vmatpush1.msra.mxu0 0.0
    %1824 = vmatprep.subr.mxu0 0.0
    %1825 = vmatpush1.msra.mxu0 0.0
    %1826 = vmatprep.subr.mxu0 0.0
    %1827 = vmatpush1.msra.mxu0 0.0
    %1828 = vmatprep.subr.mxu0 0.0
    %1829 = vmatpush1.msra.mxu0 0.0
    %1830 = vmatprep.mubr.f32.mxu0 0.0
    %1831 = vmatmul.mubr.f32.gmra.mrb[0].mxu0 %v1764
    %v1832 = vpop.f32.mrb[0].mxu0
    %v1833 = vadd.f32 0.0, %v1832
    %v1834 = vpop.f32.mrb[0].mxu0
    %1835 = vdwg.mxu0
    %v1836 = vld [vmem:[%s13] sm:$0xff]
    %v1837 = vld [vmem:[%s13 + $0x8] sm:$0xff]
    %v1838 = vld [vmem:[%s13 + $0x10] sm:$0xff]
    %v1839 = vld [vmem:[%s13 + $0x18] sm:$0xff]
    %v1841 = vsel %vm1195, %v1614, 0
    %1843 = vmatprep.subr.mxu0 0.0
    %1844 = vmatpush1.msra.mxu0 %v1836
    %1845 = vmatprep.subr.mxu0 0.0
    %1846 = vmatpush1.msra.mxu0 0.0
    %1847 = vmatprep.subr.mxu0 0.0
    %1848 = vmatpush1.msra.mxu0 0.0
    %1849 = vmatprep.subr.mxu0 0.0
    %1850 = vmatpush1.msra.mxu0 0.0
    %1851 = vmatprep.subr.mxu0 0.0
    %1852 = vmatpush1.msra.mxu0 0.0
    %1853 = vmatprep.subr.mxu0 0.0
    %1854 = vmatpush1.msra.mxu0 0.0
    %1855 = vmatprep.subr.mxu0 0.0
    %1856 = vmatpush1.msra.mxu0 0.0
    %1857 = vmatprep.subr.mxu0 0.0
    %1858 = vmatpush1.msra.mxu0 0.0
    %1859 = vmatprep.subr.mxu0 0.0
    %1860 = vmatpush1.msra.mxu0 0.0
    %1861 = vmatprep.subr.mxu0 0.0
    %1862 = vmatpush1.msra.mxu0 0.0
    %1863 = vmatprep.subr.mxu0 0.0
    %1864 = vmatpush1.msra.mxu0 0.0
    %1865 = vmatprep.subr.mxu0 0.0
    %1866 = vmatpush1.msra.mxu0 0.0
    %1867 = vmatprep.subr.mxu0 0.0
    %1868 = vmatpush1.msra.mxu0 0.0
    %1869 = vmatprep.subr.mxu0 0.0
    %1870 = vmatpush1.msra.mxu0 0.0
    %1871 = vmatprep.subr.mxu0 0.0
    %1872 = vmatpush1.msra.mxu0 0.0
    %1873 = vmatprep.subr.mxu0 0.0
    %1874 = vmatpush1.msra.mxu0 0.0
    %1875 = vmatprep.subr.mxu0 0.0
    %1876 = vmatpush1.msra.mxu0 0.0
    %1877 = vmatprep.subr.mxu0 0.0
    %1878 = vmatpush1.msra.mxu0 0.0
    %1879 = vmatprep.subr.mxu0 0.0
    %1880 = vmatpush1.msra.mxu0 0.0
    %1881 = vmatprep.subr.mxu0 0.0
    %1882 = vmatpush1.msra.mxu0 0.0
    %1883 = vmatprep.subr.mxu0 0.0
    %1884 = vmatpush1.msra.mxu0 0.0
    %1885 = vmatprep.subr.mxu0 0.0
    %1886 = vmatpush1.msra.mxu0 0.0
    %1887 = vmatprep.subr.mxu0 0.0
    %1888 = vmatpush1.msra.mxu0 0.0
    %1889 = vmatprep.subr.mxu0 0.0
    %1890 = vmatpush1.msra.mxu0 0.0
    %1891 = vmatprep.subr.mxu0 0.0
    %1892 = vmatpush1.msra.mxu0 0.0
    %1893 = vmatprep.subr.mxu0 0.0
    %1894 = vmatpush1.msra.mxu0 0.0
    %1895 = vmatprep.subr.mxu0 0.0
    %1896 = vmatpush1.msra.mxu0 0.0
    %1897 = vmatprep.subr.mxu0 0.0
    %1898 = vmatpush1.msra.mxu0 0.0
    %1899 = vmatprep.subr.mxu0 0.0
    %1900 = vmatpush1.msra.mxu0 0.0
    %1901 = vmatprep.subr.mxu0 0.0
    %1902 = vmatpush1.msra.mxu0 0.0
    %1903 = vmatprep.subr.mxu0 0.0
    %1904 = vmatpush1.msra.mxu0 0.0
    %1905 = vmatprep.subr.mxu0 0.0
    %1906 = vmatpush1.msra.mxu0 0.0
    %1907 = vmatprep.mubr.f32.mxu0 0.0
    %1908 = vmatmul.mubr.f32.gmra.mrb[0].mxu0 %v1841
    %v1909 = vpop.f32.mrb[0].mxu0
    %v1910 = vadd.f32 0.0, %v1909
    %v1911 = vpop.f32.mrb[0].mxu0
    %1912 = vdwg.mxu0
    %v1914 = vsel %vm1195, %v1687, 0
    %1916 = vmatprep.subr.mxu0 0.0
    %1917 = vmatpush1.msra.mxu0 %v1837
    %1918 = vmatprep.subr.mxu0 0.0
    %1919 = vmatpush1.msra.mxu0 0.0
    %1920 = vmatprep.subr.mxu0 0.0
    %1921 = vmatpush1.msra.mxu0 0.0
    %1922 = vmatprep.subr.mxu0 0.0
    %1923 = vmatpush1.msra.mxu0 0.0
    %1924 = vmatprep.subr.mxu0 0.0
    %1925 = vmatpush1.msra.mxu0 0.0
    %1926 = vmatprep.subr.mxu0 0.0
    %1927 = vmatpush1.msra.mxu0 0.0
    %1928 = vmatprep.subr.mxu0 0.0
    %1929 = vmatpush1.msra.mxu0 0.0
    %1930 = vmatprep.subr.mxu0 0.0
    %1931 = vmatpush1.msra.mxu0 0.0
    %1932 = vmatprep.subr.mxu0 0.0
    %1933 = vmatpush1.msra.mxu0 0.0
    %1934 = vmatprep.subr.mxu0 0.0
    %1935 = vmatpush1.msra.mxu0 0.0
    %1936 = vmatprep.subr.mxu0 0.0
    %1937 = vmatpush1.msra.mxu0 0.0
    %1938 = vmatprep.subr.mxu0 0.0
    %1939 = vmatpush1.msra.mxu0 0.0
    %1940 = vmatprep.subr.mxu0 0.0
    %1941 = vmatpush1.msra.mxu0 0.0
    %1942 = vmatprep.subr.mxu0 0.0
    %1943 = vmatpush1.msra.mxu0 0.0
    %1944 = vmatprep.subr.mxu0 0.0
    %1945 = vmatpush1.msra.mxu0 0.0
    %1946 = vmatprep.subr.mxu0 0.0
    %1947 = vmatpush1.msra.mxu0 0.0
    %1948 = vmatprep.subr.mxu0 0.0
    %1949 = vmatpush1.msra.mxu0 0.0
    %1950 = vmatprep.subr.mxu0 0.0
    %1951 = vmatpush1.msra.mxu0 0.0
    %1952 = vmatprep.subr.mxu0 0.0
    %1953 = vmatpush1.msra.mxu0 0.0
    %1954 = vmatprep.subr.mxu0 0.0
    %1955 = vmatpush1.msra.mxu0 0.0
    %1956 = vmatprep.subr.mxu0 0.0
    %1957 = vmatpush1.msra.mxu0 0.0
    %1958 = vmatprep.subr.mxu0 0.0
    %1959 = vmatpush1.msra.mxu0 0.0
    %1960 = vmatprep.subr.mxu0 0.0
    %1961 = vmatpush1.msra.mxu0 0.0
    %1962 = vmatprep.subr.mxu0 0.0
    %1963 = vmatpush1.msra.mxu0 0.0
    %1964 = vmatprep.subr.mxu0 0.0
    %1965 = vmatpush1.msra.mxu0 0.0
    %1966 = vmatprep.subr.mxu0 0.0
    %1967 = vmatpush1.msra.mxu0 0.0
    %1968 = vmatprep.subr.mxu0 0.0
    %1969 = vmatpush1.msra.mxu0 0.0
    %1970 = vmatprep.subr.mxu0 0.0
    %1971 = vmatpush1.msra.mxu0 0.0
    %1972 = vmatprep.subr.mxu0 0.0
    %1973 = vmatpush1.msra.mxu0 0.0
    %1974 = vmatprep.subr.mxu0 0.0
    %1975 = vmatpush1.msra.mxu0 0.0
    %1976 = vmatprep.subr.mxu0 0.0
    %1977 = vmatpush1.msra.mxu0 0.0
    %1978 = vmatprep.subr.mxu0 0.0
    %1979 = vmatpush1.msra.mxu0 0.0
    %1980 = vmatprep.mubr.f32.mxu0 0.0
    %1981 = vmatmul.mubr.f32.gmra.mrb[0].mxu0 %v1914
    %v1982 = vpop.f32.mrb[0].mxu0
    %v1983 = vadd.f32 0.0, %v1982
    %v1984 = vpop.f32.mrb[0].mxu0
    %1985 = vdwg.mxu0
    %v1987 = vsel %vm1195, %v1760, 0
    %1989 = vmatprep.subr.mxu0 0.0
    %1990 = vmatpush1.msra.mxu0 %v1838
    %1991 = vmatprep.subr.mxu0 0.0
    %1992 = vmatpush1.msra.mxu0 0.0
    %1993 = vmatprep.subr.mxu0 0.0
    %1994 = vmatpush1.msra.mxu0 0.0
    %1995 = vmatprep.subr.mxu0 0.0
    %1996 = vmatpush1.msra.mxu0 0.0
    %1997 = vmatprep.subr.mxu0 0.0
    %1998 = vmatpush1.msra.mxu0 0.0
    %1999 = vmatprep.subr.mxu0 0.0
    %2000 = vmatpush1.msra.mxu0 0.0
    %2001 = vmatprep.subr.mxu0 0.0
    %2002 = vmatpush1.msra.mxu0 0.0
    %2003 = vmatprep.subr.mxu0 0.0
    %2004 = vmatpush1.msra.mxu0 0.0
    %2005 = vmatprep.subr.mxu0 0.0
    %2006 = vmatpush1.msra.mxu0 0.0
    %2007 = vmatprep.subr.mxu0 0.0
    %2008 = vmatpush1.msra.mxu0 0.0
    %2009 = vmatprep.subr.mxu0 0.0
    %2010 = vmatpush1.msra.mxu0 0.0
    %2011 = vmatprep.subr.mxu0 0.0
    %2012 = vmatpush1.msra.mxu0 0.0
    %2013 = vmatprep.subr.mxu0 0.0
    %2014 = vmatpush1.msra.mxu0 0.0
    %2015 = vmatprep.subr.mxu0 0.0
    %2016 = vmatpush1.msra.mxu0 0.0
    %2017 = vmatprep.subr.mxu0 0.0
    %2018 = vmatpush1.msra.mxu0 0.0
    %2019 = vmatprep.subr.mxu0 0.0
    %2020 = vmatpush1.msra.mxu0 0.0
    %2021 = vmatprep.subr.mxu0 0.0
    %2022 = vmatpush1.msra.mxu0 0.0
    %2023 = vmatprep.subr.mxu0 0.0
    %2024 = vmatpush1.msra.mxu0 0.0
    %2025 = vmatprep.subr.mxu0 0.0
    %2026 = vmatpush1.msra.mxu0 0.0
    %2027 = vmatprep.subr.mxu0 0.0
    %2028 = vmatpush1.msra.mxu0 0.0
    %2029 = vmatprep.subr.mxu0 0.0
    %2030 = vmatpush1.msra.mxu0 0.0
    %2031 = vmatprep.subr.mxu0 0.0
    %2032 = vmatpush1.msra.mxu0 0.0
    %2033 = vmatprep.subr.mxu0 0.0
    %2034 = vmatpush1.msra.mxu0 0.0
    %2035 = vmatprep.subr.mxu0 0.0
    %2036 = vmatpush1.msra.mxu0 0.0
    %2037 = vmatprep.subr.mxu0 0.0
    %2038 = vmatpush1.msra.mxu0 0.0
    %2039 = vmatprep.subr.mxu0 0.0
    %2040 = vmatpush1.msra.mxu0 0.0
    %2041 = vmatprep.subr.mxu0 0.0
    %2042 = vmatpush1.msra.mxu0 0.0
    %2043 = vmatprep.subr.mxu0 0.0
    %2044 = vmatpush1.msra.mxu0 0.0
    %2045 = vmatprep.subr.mxu0 0.0
    %2046 = vmatpush1.msra.mxu0 0.0
    %2047 = vmatprep.subr.mxu0 0.0
    %2048 = vmatpush1.msra.mxu0 0.0
    %2049 = vmatprep.subr.mxu0 0.0
    %2050 = vmatpush1.msra.mxu0 0.0
    %2051 = vmatprep.subr.mxu0 0.0
    %2052 = vmatpush1.msra.mxu0 0.0
    %2053 = vmatprep.mubr.f32.mxu0 0.0
    %2054 = vmatmul.mubr.f32.gmra.mrb[0].mxu0 %v1987
    %v2055 = vpop.f32.mrb[0].mxu0
    %v2056 = vadd.f32 0.0, %v2055
    %v2057 = vpop.f32.mrb[0].mxu0
    %2058 = vdwg.mxu0
    %v2060 = vsel %vm1195, %v1833, 0
    %2062 = vmatprep.subr.mxu0 0.0
    %2063 = vmatpush1.msra.mxu0 %v1839
    %2064 = vmatprep.subr.mxu0 0.0
    %2065 = vmatpush1.msra.mxu0 0.0
    %2066 = vmatprep.subr.mxu0 0.0
    %2067 = vmatpush1.msra.mxu0 0.0
    %2068 = vmatprep.subr.mxu0 0.0
    %2069 = vmatpush1.msra.mxu0 0.0
    %2070 = vmatprep.subr.mxu0 0.0
    %2071 = vmatpush1.msra.mxu0 0.0
    %2072 = vmatprep.subr.mxu0 0.0
    %2073 = vmatpush1.msra.mxu0 0.0
    %2074 = vmatprep.subr.mxu0 0.0
    %2075 = vmatpush1.msra.mxu0 0.0
    %2076 = vmatprep.subr.mxu0 0.0
    %2077 = vmatpush1.msra.mxu0 0.0
    %2078 = vmatprep.subr.mxu0 0.0
    %2079 = vmatpush1.msra.mxu0 0.0
    %2080 = vmatprep.subr.mxu0 0.0
    %2081 = vmatpush1.msra.mxu0 0.0
    %2082 = vmatprep.subr.mxu0 0.0
    %2083 = vmatpush1.msra.mxu0 0.0
    %2084 = vmatprep.subr.mxu0 0.0
    %2085 = vmatpush1.msra.mxu0 0.0
    %2086 = vmatprep.subr.mxu0 0.0
    %2087 = vmatpush1.msra.mxu0 0.0
    %2088 = vmatprep.subr.mxu0 0.0
    %2089 = vmatpush1.msra.mxu0 0.0
    %2090 = vmatprep.subr.mxu0 0.0
    %2091 = vmatpush1.msra.mxu0 0.0
    %2092 = vmatprep.subr.mxu0 0.0
    %2093 = vmatpush1.msra.mxu0 0.0
    %2094 = vmatprep.subr.mxu0 0.0
    %2095 = vmatpush1.msra.mxu0 0.0
    %2096 = vmatprep.subr.mxu0 0.0
    %2097 = vmatpush1.msra.mxu0 0.0
    %2098 = vmatprep.subr.mxu0 0.0
    %2099 = vmatpush1.msra.mxu0 0.0
    %2100 = vmatprep.subr.mxu0 0.0
    %2101 = vmatpush1.msra.mxu0 0.0
    %2102 = vmatprep.subr.mxu0 0.0
    %2103 = vmatpush1.msra.mxu0 0.0
    %2104 = vmatprep.subr.mxu0 0.0
    %2105 = vmatpush1.msra.mxu0 0.0
    %2106 = vmatprep.subr.mxu0 0.0
    %2107 = vmatpush1.msra.mxu0 0.0
    %2108 = vmatprep.subr.mxu0 0.0
    %2109 = vmatpush1.msra.mxu0 0.0
    %2110 = vmatprep.subr.mxu0 0.0
    %2111 = vmatpush1.msra.mxu0 0.0
    %2112 = vmatprep.subr.mxu0 0.0
    %2113 = vmatpush1.msra.mxu0 0.0
    %2114 = vmatprep.subr.mxu0 0.0
    %2115 = vmatpush1.msra.mxu0 0.0
    %2116 = vmatprep.subr.mxu0 0.0
    %2117 = vmatpush1.msra.mxu0 0.0
    %2118 = vmatprep.subr.mxu0 0.0
    %2119 = vmatpush1.msra.mxu0 0.0
    %2120 = vmatprep.subr.mxu0 0.0
    %2121 = vmatpush1.msra.mxu0 0.0
    %2122 = vmatprep.subr.mxu0 0.0
    %2123 = vmatpush1.msra.mxu0 0.0
    %2124 = vmatprep.subr.mxu0 0.0
    %2125 = vmatpush1.msra.mxu0 0.0
    %2126 = vmatprep.mubr.f32.mxu0 0.0
    %2127 = vmatmul.mubr.f32.gmra.mrb[0].mxu0 %v2060
    %v2128 = vpop.f32.mrb[0].mxu0
    %v2129 = vadd.f32 0.0, %v2128
    %v2130 = vpop.f32.mrb[0].mxu0
    %2131 = vdwg.mxu0
    %v2132 = vsel %vm191, %v1910, 0.0
    %v2133 = vsel %vm191, %v1983, 0.0
    %v2134 = vadd.f32 %v2132, %v2133
    %v2135 = vsel %vm191, %v2056, 0.0
    %v2136 = vadd.f32 %v2134, %v2135
    %v2137 = vsel %vm191, %v2129, 0.0
    %v2138 = vadd.f32 %v2136, %v2137
    %v2139 = vadd.f32 %v187, %v2138
    %v2140 = vld [vmem:[%s14] sm:$0x1]
    %v2142 = vlaneseq
    %v2143 = vshrl.u32 %v2142, 7
    %v2144 = vsub.s32 0, %v2143
    %v2145 = vrot.slane %v2140, %v2144
    %v2147 = vadd.f32 %v2139, %v2145
    %v2148 = vld [vmem:[%s15] sm:$0x1]
    %v2149 = vld [vmem:[%s16] sm:$0x1]
    %v2150 = vsel %vm191, %v2147, 0.0
    %2151 = vadd.xlane.f32.xlu0 %v2150
    %v2152 = vpop.xlane.xlu0 %2151
    %v2153 = vmul.f32 %v2152, %v195
    %v2154 = vsub.f32 %v2147, %v2153
    %v2155 = vmul.f32 %v2154, %v2154
    %v2156 = vsel %vm191, %v2155, 0.0
    %2157 = vadd.xlane.f32.xlu0 %v2156
    %v2158 = vpop.xlane.xlu0 %2157
    %v2159 = vmul.f32 %v2158, %v195
    %v2160 = vadd.f32 %v2159, 1e-06
    %v2161 = vrsqrt.pop %v2160
    %v2162 = vmul.f32 %v2154, %v2161
    %v2164 = vlaneseq
    %v2165 = vshrl.u32 %v2164, 7
    %v2166 = vsub.s32 0, %v2165
    %v2167 = vrot.slane %v2148, %v2166
    %v2169 = vmul.f32 %v2162, %v2167
    %v2171 = vlaneseq
    %v2172 = vshrl.u32 %v2171, 7
    %v2173 = vsub.s32 0, %v2172
    %v2174 = vrot.slane %v2149, %v2173
    %v2176 = vadd.f32 %v2169, %v2174
    %v2177 = vld [vmem:[%s17] sm:$0xff]
    %v2178 = vld [vmem:[%s17 + $0x8] sm:$0xff]
    %v2179 = vld [vmem:[%s17 + $0x10] sm:$0xff]
    %v2180 = vld [vmem:[%s17 + $0x18] sm:$0xff]
    %v2181 = vld [vmem:[%s18] sm:$0x1]
    %v2183 = vlaneseq
    %v2184 = vshrl.u32 %v2183, 7
    %v2185 = vsub.s32 0, %v2184
    %v2186 = vrot.slane %v2181, %v2185
    %v2189 = vsel %vm191, %v2176, 0
    %2191 = vmatprep.subr.mxu0 0.0
    %2192 = vmatpush1.msra.mxu0 %v2177
    %2193 = vmatprep.subr.mxu0 0.0
    %2194 = vmatpush1.msra.mxu0 %v2178
    %2195 = vmatprep.subr.mxu0 0.0
    %2196 = vmatpush1.msra.mxu0 %v2179
    %2197 = vmatprep.subr.mxu0 0.0
    %2198 = vmatpush1.msra.mxu0 %v2180
    %2199 = vmatprep.subr.mxu0 0.0
    %2200 = vmatpush1.msra.mxu0 0.0
    %2201 = vmatprep.subr.mxu0 0.0
    %2202 = vmatpush1.msra.mxu0 0.0
    %2203 = vmatprep.subr.mxu0 0.0
    %2204 = vmatpush1.msra.mxu0 0.0
    %2205 = vmatprep.subr.mxu0 0.0
    %2206 = vmatpush1.msra.mxu0 0.0
    %2207 = vmatprep.subr.mxu0 0.0
    %2208 = vmatpush1.msra.mxu0 0.0
    %2209 = vmatprep.subr.mxu0 0.0
    %2210 = vmatpush1.msra.mxu0 0.0
    %2211 = vmatprep.subr.mxu0 0.0
    %2212 = vmatpush1.msra.mxu0 0.0
    %2213 = vmatprep.subr.mxu0 0.0
    %2214 = vmatpush1.msra.mxu0 0.0
    %2215 = vmatprep.subr.mxu0 0.0
    %2216 = vmatpush1.msra.mxu0 0.0
    %2217 = vmatprep.subr.mxu0 0.0
    %2218 = vmatpush1.msra.mxu0 0.0
    %2219 = vmatprep.subr.mxu0 0.0
    %2220 = vmatpush1.msra.mxu0 0.0
    %2221 = vmatprep.subr.mxu0 0.0
    %2222 = vmatpush1.msra.mxu0 0.0
    %2223 = vmatprep.subr.mxu0 0.0
    %2224 = vmatpush1.msra.mxu0 0.0
    %2225 = vmatprep.subr.mxu0 0.0
    %2226 = vmatpush1.msra.mxu0 0.0
    %2227 = vmatprep.subr.mxu0 0.0
    %2228 = vmatpush1.msra.mxu0 0.0
    %2229 = vmatprep.subr.mxu0 0.0
    %2230 = vmatpush1.msra.mxu0 0.0
    %2231 = vmatprep.subr.mxu0 0.0
    %2232 = vmatpush1.msra.mxu0 0.0
    %2233 = vmatprep.subr.mxu0 0.0
    %2234 = vmatpush1.msra.mxu0 0.0
    %2235 = vmatprep.subr.mxu0 0.0
    %2236 = vmatpush1.msra.mxu0 0.0
    %2237 = vmatprep.subr.mxu0 0.0
    %2238 = vmatpush1.msra.mxu0 0.0
    %2239 = vmatprep.subr.mxu0 0.0
    %2240 = vmatpush1.msra.mxu0 0.0
    %2241 = vmatprep.subr.mxu0 0.0
    %2242 = vmatpush1.msra.mxu0 0.0
    %2243 = vmatprep.subr.mxu0 0.0
    %2244 = vmatpush1.msra.mxu0 0.0
    %2245 = vmatprep.subr.mxu0 0.0
    %2246 = vmatpush1.msra.mxu0 0.0
    %2247 = vmatprep.subr.mxu0 0.0
    %2248 = vmatpush1.msra.mxu0 0.0
    %2249 = vmatprep.subr.mxu0 0.0
    %2250 = vmatpush1.msra.mxu0 0.0
    %2251 = vmatprep.subr.mxu0 0.0
    %2252 = vmatpush1.msra.mxu0 0.0
    %2253 = vmatprep.subr.mxu0 0.0
    %2254 = vmatpush1.msra.mxu0 0.0
    %2255 = vmatprep.mubr.f32.mxu0 0.0
    %2256 = vmatmul.mubr.f32.gmra.mrb[0].mxu0 %v2189
    %v2257 = vpop.f32.mrb[0].mxu0
    %v2258 = vadd.f32 %v2186, %v2257
    %v2259 = vpop.f32.mrb[0].mxu0
    %2260 = vdwg.mxu0
    %v2261 = vmul.f32 %v2258, 0.5
    %v2262 = vmul.f32 %v2258, 0.044715
    %v2263 = vmul.f32 %v2262, %v2258
    %v2264 = vmul.f32 %v2263, %v2258
    %v2265 = vadd.f32 %v2258, %v2264
    %v2266 = vmul.f32 %v2265, 0.7978846
    %v2267 = vtanh.pop %v2266
    %v2268 = vadd.f32 %v2267, 1.0
    %v2269 = vmul.f32 %v2261, %v2268
    %v2270 = vld [vmem:[%s19] sm:$0xff]
    %v2271 = vld [vmem:[%s19 + $0x8] sm:$0xff]
    %v2272 = vld [vmem:[%s19 + $0x10] sm:$0xff]
    %v2273 = vld [vmem:[%s19 + $0x18] sm:$0xff]
    %v2274 = vld [vmem:[%s19 + $0x20] sm:$0xff]
    %v2275 = vld [vmem:[%s19 + $0x28] sm:$0xff]
    %v2276 = vld [vmem:[%s19 + $0x30] sm:$0xff]
    %v2277 = vld [vmem:[%s19 + $0x38] sm:$0xff]
    %v2278 = vld [vmem:[%s20] sm:$0x1]
    %v2280 = vlaneseq
    %v2281 = vshrl.u32 %v2280, 7
    %v2282 = vsub.s32 0, %v2281
    %v2283 = vrot.slane %v2278, %v2282
    %vm2285 = vcmask 523264
    %v2287 = vsel %vm2285, %v2269, 0
    %2289 = vmatprep.subr.mxu0 0.0
    %2290 = vmatpush1.msra.mxu0 %v2270
    %2291 = vmatprep.subr.mxu0 0.0
    %2292 = vmatpush1.msra.mxu0 %v2271
    %2293 = vmatprep.subr.mxu0 0.0
    %2294 = vmatpush1.msra.mxu0 %v2272
    %2295 = vmatprep.subr.mxu0 0.0
    %2296 = vmatpush1.msra.mxu0 %v2273
    %2297 = vmatprep.subr.mxu0 0.0
    %2298 = vmatpush1.msra.mxu0 %v2274
    %2299 = vmatprep.subr.mxu0 0.0
    %2300 = vmatpush1.msra.mxu0 %v2275
    %2301 = vmatprep.subr.mxu0 0.0
    %2302 = vmatpush1.msra.mxu0 %v2276
    %2303 = vmatprep.subr.mxu0 0.0
    %2304 = vmatpush1.msra.mxu0 %v2277
    %2305 = vmatprep.subr.mxu0 0.0
    %2306 = vmatpush1.msra.mxu0 0.0
    %2307 = vmatprep.subr.mxu0 0.0
    %2308 = vmatpush1.msra.mxu0 0.0
    %2309 = vmatprep.subr.mxu0 0.0
    %2310 = vmatpush1.msra.mxu0 0.0
    %2311 = vmatprep.subr.mxu0 0.0
    %2312 = vmatpush1.msra.mxu0 0.0
    %2313 = vmatprep.subr.mxu0 0.0
    %2314 = vmatpush1.msra.mxu0 0.0
    %2315 = vmatprep.subr.mxu0 0.0
    %2316 = vmatpush1.msra.mxu0 0.0
    %2317 = vmatprep.subr.mxu0 0.0
    %2318 = vmatpush1.msra.mxu0 0.0
    %2319 = vmatprep.subr.mxu0 0.0
    %2320 = vmatpush1.msra.mxu0 0.0
    %2321 = vmatprep.subr.mxu0 0.0
    %2322 = vmatpush1.msra.mxu0 0.0
    %2323 = vmatprep.subr.mxu0 0.0
    %2324 = vmatpush1.msra.mxu0 0.0
    %2325 = vmatprep.subr.mxu0 0.0
    %2326 = vmatpush1.msra.mxu0 0.0
    %2327 = vmatprep.subr.mxu0 0.0
    %2328 = vmatpush1.msra.mxu0 0.0
    %2329 = vmatprep.subr.mxu0 0.0
    %2330 = vmatpush1.msra.mxu0 0.0
    %2331 = vmatprep.subr.mxu0 0.0
    %2332 = vmatpush1.msra.mxu0 0.0
    %2333 = vmatprep.subr.mxu0 0.0
    %2334 = vmatpush1.msra.mxu0 0.0
    %2335 = vmatprep.subr.mxu0 0.0
    %2336 = vmatpush1.msra.mxu0 0.0
    %2337 = vmatprep.subr.mxu0 0.0
    %2338 = vmatpush1.msra.mxu0 0.0
    %2339 = vmatprep.subr.mxu0 0.0
    %2340 = vmatpush1.msra.mxu0 0.0
    %2341 = vmatprep.subr.mxu0 0.0
    %2342 = vmatpush1.msra.mxu0 0.0
    %2343 = vmatprep.subr.mxu0 0.0
    %2344 = vmatpush1.msra.mxu0 0.0
    %2345 = vmatprep.subr.mxu0 0.0
    %2346 = vmatpush1.msra.mxu0 0.0
    %2347 = vmatprep.subr.mxu0 0.0
    %2348 = vmatpush1.msra.mxu0 0.0
    %2349 = vmatprep.subr.mxu0 0.0
    %2350 = vmatpush1.msra.mxu0 0.0
    %2351 = vmatprep.subr.mxu0 0.0
    %2352 = vmatpush1.msra.mxu0 0.0
    %2353 = vmatprep.mubr.f32.mxu0 0.0
    %2354 = vmatmul.mubr.f32.gmra.mrb[0].mxu0 %v2287
    %v2355 = vpop.f32.mrb[0].mxu0
    %v2356 = vadd.f32 %v2283, %v2355
    %v2357 = vpop.f32.mrb[0].mxu0
    %2358 = vdwg.mxu0
    %v2359 = vadd.f32 %v2147, %v2356
    %s2360 = scalar_lea.vmem %s5, 1
    %v2361 = vld [vmem:[%s2360] sm:$0x1]
    %s2362 = scalar_lea.vmem %s6, 1
    %v2363 = vld [vmem:[%s2362] sm:$0x1]
    %v2364 = vsel %vm191, %v2359, 0.0
    %2365 = vadd.xlane.f32.xlu0 %v2364
    %v2366 = vpop.xlane.xlu0 %2365
    %v2367 = vmul.f32 %v2366, %v195
    %v2368 = vsub.f32 %v2359, %v2367
    %v2369 = vmul.f32 %v2368, %v2368
    %v2370 = vsel %vm191, %v2369, 0.0
    %2371 = vadd.xlane.f32.xlu0 %v2370
    %v2372 = vpop.xlane.xlu0 %2371
    %v2373 = vmul.f32 %v2372, %v195
    %v2374 = vadd.f32 %v2373, 1e-06
    %v2375 = vrsqrt.pop %v2374
    %v2376 = vmul.f32 %v2368, %v2375
    %v2378 = vlaneseq
    %v2379 = vshrl.u32 %v2378, 7
    %v2380 = vsub.s32 0, %v2379
    %v2381 = vrot.slane %v2361, %v2380
    %v2383 = vmul.f32 %v2376, %v2381
    %v2385 = vlaneseq
    %v2386 = vshrl.u32 %v2385, 7
    %v2387 = vsub.s32 0, %v2386
    %v2388 = vrot.slane %v2363, %v2387
    %v2390 = vadd.f32 %v2383, %v2388
    %s2391 = scalar_lea.vmem %s7, 128
    %v2392 = vld [vmem:[%s2391] sm:$0xff]
    %v2393 = vld [vmem:[%s2391 + $0x8] sm:$0xff]
    %v2394 = vld [vmem:[%s2391 + $0x10] sm:$0xff]
    %v2395 = vld [vmem:[%s2391 + $0x18] sm:$0xff]
    %v2396 = vld [vmem:[%s2391 + $0x20] sm:$0xff]
    %v2397 = vld [vmem:[%s2391 + $0x28] sm:$0xff]
    %v2398 = vld [vmem:[%s2391 + $0x30] sm:$0xff]
    %v2399 = vld [vmem:[%s2391 + $0x38] sm:$0xff]
    %v2400 = vld [vmem:[%s2391 + $0x40] sm:$0xff]
    %v2401 = vld [vmem:[%s2391 + $0x48] sm:$0xff]
    %v2402 = vld [vmem:[%s2391 + $0x50] sm:$0xff]
    %v2403 = vld [vmem:[%s2391 + $0x58] sm:$0xff]
    %v2404 = vld [vmem:[%s2391 + $0x60] sm:$0xff]
    %v2405 = vld [vmem:[%s2391 + $0x68] sm:$0xff]
    %v2406 = vld [vmem:[%s2391 + $0x70] sm:$0xff]
    %v2407 = vld [vmem:[%s2391 + $0x78] sm:$0xff]
    %s2408 = scalar_lea.vmem %s8, 4
    %v2409 = vld [vmem:[%s2408] sm:$0x1]
    %v2410 = vld [vmem:[%s2408 + $0x1] sm:$0x1]
    %v2411 = vld [vmem:[%s2408 + $0x2] sm:$0x1]
    %v2412 = vld [vmem:[%s2408 + $0x3] sm:$0x1]
    %v2417 = vlaneseq
    %v2418 = vshrl.u32 %v2417, 7
    %v2419 = vsub.s32 0, %v2418
    %v2420 = vrot.slane %v2409, %v2419
    %v2421 = vlaneseq
    %v2422 = vshrl.u32 %v2421, 7
    %v2423 = vsub.s32 0, %v2422
    %v2424 = vrot.slane %v2410, %v2423
    %v2425 = vlaneseq
    %v2426 = vshrl.u32 %v2425, 7
    %v2427 = vsub.s32 0, %v2426
    %v2428 = vrot.slane %v2411, %v2427
    %v2429 = vlaneseq
    %v2430 = vshrl.u32 %v2429, 7
    %v2431 = vsub.s32 0, %v2430
    %v2432 = vrot.slane %v2412, %v2431
    %v2438 = vsel %vm191, %v2390, 0
    %2440 = vmatprep.subr.mxu0 0.0
    %2441 = vmatpush1.msra.mxu0 %v2392
    %2442 = vmatprep.subr.mxu0 0.0
    %2443 = vmatpush1.msra.mxu0 %v2393
    %2444 = vmatprep.subr.mxu0 0.0
    %2445 = vmatpush1.msra.mxu0 %v2394
    %2446 = vmatprep.subr.mxu0 0.0
    %2447 = vmatpush1.msra.mxu0 %v2395
    %2448 = vmatprep.subr.mxu0 0.0
    %2449 = vmatpush1.msra.mxu0 0.0
    %2450 = vmatprep.subr.mxu0 0.0
    %2451 = vmatpush1.msra.mxu0 0.0
    %2452 = vmatprep.subr.mxu0 0.0
    %2453 = vmatpush1.msra.mxu0 0.0
    %2454 = vmatprep.subr.mxu0 0.0
    %2455 = vmatpush1.msra.mxu0 0.0
    %2456 = vmatprep.subr.mxu0 0.0
    %2457 = vmatpush1.msra.mxu0 0.0
    %2458 = vmatprep.subr.mxu0 0.0
    %2459 = vmatpush1.msra.mxu0 0.0
    %2460 = vmatprep.subr.mxu0 0.0
    %2461 = vmatpush1.msra.mxu0 0.0
    %2462 = vmatprep.subr.mxu0 0.0
    %2463 = vmatpush1.msra.mxu0 0.0
    %2464 = vmatprep.subr.mxu0 0.0
    %2465 = vmatpush1.msra.mxu0 0.0
    %2466 = vmatprep.subr.mxu0 0.0
    %2467 = vmatpush1.msra.mxu0 0.0
    %2468 = vmatprep.subr.mxu0 0.0
    %2469 = vmatpush1.msra.mxu0 0.0
    %2470 = vmatprep.subr.mxu0 0.0
    %2471 = vmatpush1.msra.mxu0 0.0
    %2472 = vmatprep.subr.mxu0 0.0
    %2473 = vmatpush1.msra.mxu0 0.0
    %2474 = vmatprep.subr.mxu0 0.0
    %2475 = vmatpush1.msra.mxu0 0.0
    %2476 = vmatprep.subr.mxu0 0.0
    %2477 = vmatpush1.msra.mxu0 0.0
    %2478 = vmatprep.subr.mxu0 0.0
    %2479 = vmatpush1.msra.mxu0 0.0
    %2480 = vmatprep.subr.mxu0 0.0
    %2481 = vmatpush1.msra.mxu0 0.0
    %2482 = vmatprep.subr.mxu0 0.0
    %2483 = vmatpush1.msra.mxu0 0.0
    %2484 = vmatprep.subr.mxu0 0.0
    %2485 = vmatpush1.msra.mxu0 0.0
    %2486 = vmatprep.subr.mxu0 0.0
    %2487 = vmatpush1.msra.mxu0 0.0
    %2488 = vmatprep.subr.mxu0 0.0
    %2489 = vmatpush1.msra.mxu0 0.0
    %2490 = vmatprep.subr.mxu0 0.0
    %2491 = vmatpush1.msra.mxu0 0.0
    %2492 = vmatprep.subr.mxu0 0.0
    %2493 = vmatpush1.msra.mxu0 0.0
    %2494 = vmatprep.subr.mxu0 0.0
    %2495 = vmatpush1.msra.mxu0 0.0
    %2496 = vmatprep.subr.mxu0 0.0
    %2497 = vmatpush1.msra.mxu0 0.0
    %2498 = vmatprep.subr.mxu0 0.0
    %2499 = vmatpush1.msra.mxu0 0.0
    %2500 = vmatprep.subr.mxu0 0.0
    %2501 = vmatpush1.msra.mxu0 0.0
    %2502 = vmatprep.subr.mxu0 0.0
    %2503 = vmatpush1.msra.mxu0 0.0
    %2504 = vmatprep.mubr.f32.mxu0 0.0
    %2505 = vmatmul.mubr.f32.gmra.mrb[0].mxu0 %v2438
    %v2506 = vpop.f32.mrb[0].mxu0
    %v2507 = vadd.f32 %v2420, %v2506
    %v2508 = vpop.f32.mrb[0].mxu0
    %2509 = vdwg.mxu0
    %2510 = vmatprep.subr.mxu0 0.0
    %2511 = vmatpush1.msra.mxu0 %v2396
    %2512 = vmatprep.subr.mxu0 0.0
    %2513 = vmatpush1.msra.mxu0 %v2397
    %2514 = vmatprep.subr.mxu0 0.0
    %2515 = vmatpush1.msra.mxu0 %v2398
    %2516 = vmatprep.subr.mxu0 0.0
    %2517 = vmatpush1.msra.mxu0 %v2399
    %2518 = vmatprep.subr.mxu0 0.0
    %2519 = vmatpush1.msra.mxu0 0.0
    %2520 = vmatprep.subr.mxu0 0.0
    %2521 = vmatpush1.msra.mxu0 0.0
    %2522 = vmatprep.subr.mxu0 0.0
    %2523 = vmatpush1.msra.mxu0 0.0
    %2524 = vmatprep.subr.mxu0 0.0
    %2525 = vmatpush1.msra.mxu0 0.0
    %2526 = vmatprep.subr.mxu0 0.0
    %2527 = vmatpush1.msra.mxu0 0.0
    %2528 = vmatprep.subr.mxu0 0.0
    %2529 = vmatpush1.msra.mxu0 0.0
    %2530 = vmatprep.subr.mxu0 0.0
    %2531 = vmatpush1.msra.mxu0 0.0
    %2532 = vmatprep.subr.mxu0 0.0
    %2533 = vmatpush1.msra.mxu0 0.0
    %2534 = vmatprep.subr.mxu0 0.0
    %2535 = vmatpush1.msra.mxu0 0.0
    %2536 = vmatprep.subr.mxu0 0.0
    %2537 = vmatpush1.msra.mxu0 0.0
    %2538 = vmatprep.subr.mxu0 0.0
    %2539 = vmatpush1.msra.mxu0 0.0
    %2540 = vmatprep.subr.mxu0 0.0
    %2541 = vmatpush1.msra.mxu0 0.0
    %2542 = vmatprep.subr.mxu0 0.0
    %2543 = vmatpush1.msra.mxu0 0.0
    %2544 = vmatprep.subr.mxu0 0.0
    %2545 = vmatpush1.msra.mxu0 0.0
    %2546 = vmatprep.subr.mxu0 0.0
    %2547 = vmatpush1.msra.mxu0 0.0
    %2548 = vmatprep.subr.mxu0 0.0
    %2549 = vmatpush1.msra.mxu0 0.0
    %2550 = vmatprep.subr.mxu0 0.0
    %2551 = vmatpush1.msra.mxu0 0.0
    %2552 = vmatprep.subr.mxu0 0.0
    %2553 = vmatpush1.msra.mxu0 0.0
    %2554 = vmatprep.subr.mxu0 0.0
    %2555 = vmatpush1.msra.mxu0 0.0
    %2556 = vmatprep.subr.mxu0 0.0
    %2557 = vmatpush1.msra.mxu0 0.0
    %2558 = vmatprep.subr.mxu0 0.0
    %2559 = vmatpush1.msra.mxu0 0.0
    %2560 = vmatprep.subr.mxu0 0.0
    %2561 = vmatpush1.msra.mxu0 0.0
    %2562 = vmatprep.subr.mxu0 0.0
    %2563 = vmatpush1.msra.mxu0 0.0
    %2564 = vmatprep.subr.mxu0 0.0
    %2565 = vmatpush1.msra.mxu0 0.0
    %2566 = vmatprep.subr.mxu0 0.0
    %2567 = vmatpush1.msra.mxu0 0.0
    %2568 = vmatprep.subr.mxu0 0.0
    %2569 = vmatpush1.msra.mxu0 0.0
    %2570 = vmatprep.subr.mxu0 0.0
    %2571 = vmatpush1.msra.mxu0 0.0
    %2572 = vmatprep.subr.mxu0 0.0
    %2573 = vmatpush1.msra.mxu0 0.0
    %2574 = vmatprep.mubr.f32.mxu0 0.0
    %2575 = vmatmul.mubr.f32.gmra.mrb[0].mxu0 %v2438
    %v2576 = vpop.f32.mrb[0].mxu0
    %v2577 = vadd.f32 %v2424, %v2576
    %v2578 = vpop.f32.mrb[0].mxu0
    %2579 = vdwg.mxu0
    %2580 = vmatprep.subr.mxu0 0.0
    %2581 = vmatpush1.msra.mxu0 %v2400
    %2582 = vmatprep.subr.mxu0 0.0
    %2583 = vmatpush1.msra.mxu0 %v2401
    %2584 = vmatprep.subr.mxu0 0.0
    %2585 = vmatpush1.msra.mxu0 %v2402
    %2586 = vmatprep.subr.mxu0 0.0
    %2587 = vmatpush1.msra.mxu0 %v2403
    %2588 = vmatprep.subr.mxu0 0.0
    %2589 = vmatpush1.msra.mxu0 0.0
    %2590 = vmatprep.subr.mxu0 0.0
    %2591 = vmatpush1.msra.mxu0 0.0
    %2592 = vmatprep.subr.mxu0 0.0
    %2593 = vmatpush1.msra.mxu0 0.0
    %2594 = vmatprep.subr.mxu0 0.0
    %2595 = vmatpush1.msra.mxu0 0.0
    %2596 = vmatprep.subr.mxu0 0.0
    %2597 = vmatpush1.msra.mxu0 0.0
    %2598 = vmatprep.subr.mxu0 0.0
    %2599 = vmatpush1.msra.mxu0 0.0
    %2600 = vmatprep.subr.mxu0 0.0
    %2601 = vmatpush1.msra.mxu0 0.0
    %2602 = vmatprep.subr.mxu0 0.0
    %2603 = vmatpush1.msra.mxu0 0.0
    %2604 = vmatprep.subr.mxu0 0.0
    %2605 = vmatpush1.msra.mxu0 0.0
    %2606 = vmatprep.subr.mxu0 0.0
    %2607 = vmatpush1.msra.mxu0 0.0
    %2608 = vmatprep.subr.mxu0 0.0
    %2609 = vmatpush1.msra.mxu0 0.0
    %2610 = vmatprep.subr.mxu0 0.0
    %2611 = vmatpush1.msra.mxu0 0.0
    %2612 = vmatprep.subr.mxu0 0.0
    %2613 = vmatpush1.msra.mxu0 0.0
    %2614 = vmatprep.subr.mxu0 0.0
    %2615 = vmatpush1.msra.mxu0 0.0
    %2616 = vmatprep.subr.mxu0 0.0
    %2617 = vmatpush1.msra.mxu0 0.0
    %2618 = vmatprep.subr.mxu0 0.0
    %2619 = vmatpush1.msra.mxu0 0.0
    %2620 = vmatprep.subr.mxu0 0.0
    %2621 = vmatpush1.msra.mxu0 0.0
    %2622 = vmatprep.subr.mxu0 0.0
    %2623 = vmatpush1.msra.mxu0 0.0
    %2624 = vmatprep.subr.mxu0 0.0
    %2625 = vmatpush1.msra.mxu0 0.0
    %2626 = vmatprep.subr.mxu0 0.0
    %2627 = vmatpush1.msra.mxu0 0.0
    %2628 = vmatprep.subr.mxu0 0.0
    %2629 = vmatpush1.msra.mxu0 0.0
    %2630 = vmatprep.subr.mxu0 0.0
    %2631 = vmatpush1.msra.mxu0 0.0
    %2632 = vmatprep.subr.mxu0 0.0
    %2633 = vmatpush1.msra.mxu0 0.0
    %2634 = vmatprep.subr.mxu0 0.0
    %2635 = vmatpush1.msra.mxu0 0.0
    %2636 = vmatprep.subr.mxu0 0.0
    %2637 = vmatpush1.msra.mxu0 0.0
    %2638 = vmatprep.subr.mxu0 0.0
    %2639 = vmatpush1.msra.mxu0 0.0
    %2640 = vmatprep.subr.mxu0 0.0
    %2641 = vmatpush1.msra.mxu0 0.0
    %2642 = vmatprep.subr.mxu0 0.0
    %2643 = vmatpush1.msra.mxu0 0.0
    %2644 = vmatprep.mubr.f32.mxu0 0.0
    %2645 = vmatmul.mubr.f32.gmra.mrb[0].mxu0 %v2438
    %v2646 = vpop.f32.mrb[0].mxu0
    %v2647 = vadd.f32 %v2428, %v2646
    %v2648 = vpop.f32.mrb[0].mxu0
    %2649 = vdwg.mxu0
    %2650 = vmatprep.subr.mxu0 0.0
    %2651 = vmatpush1.msra.mxu0 %v2404
    %2652 = vmatprep.subr.mxu0 0.0
    %2653 = vmatpush1.msra.mxu0 %v2405
    %2654 = vmatprep.subr.mxu0 0.0
    %2655 = vmatpush1.msra.mxu0 %v2406
    %2656 = vmatprep.subr.mxu0 0.0
    %2657 = vmatpush1.msra.mxu0 %v2407
    %2658 = vmatprep.subr.mxu0 0.0
    %2659 = vmatpush1.msra.mxu0 0.0
    %2660 = vmatprep.subr.mxu0 0.0
    %2661 = vmatpush1.msra.mxu0 0.0
    %2662 = vmatprep.subr.mxu0 0.0
    %2663 = vmatpush1.msra.mxu0 0.0
    %2664 = vmatprep.subr.mxu0 0.0
    %2665 = vmatpush1.msra.mxu0 0.0
    %2666 = vmatprep.subr.mxu0 0.0
    %2667 = vmatpush1.msra.mxu0 0.0
    %2668 = vmatprep.subr.mxu0 0.0
    %2669 = vmatpush1.msra.mxu0 0.0
    %2670 = vmatprep.subr.mxu0 0.0
    %2671 = vmatpush1.msra.mxu0 0.0
    %2672 = vmatprep.subr.mxu0 0.0
    %2673 = vmatpush1.msra.mxu0 0.0
    %2674 = vmatprep.subr.mxu0 0.0
    %2675 = vmatpush1.msra.mxu0 0.0
    %2676 = vmatprep.subr.mxu0 0.0
    %2677 = vmatpush1.msra.mxu0 0.0
    %2678 = vmatprep.subr.mxu0 0.0
    %2679 = vmatpush1.msra.mxu0 0.0
    %2680 = vmatprep.subr.mxu0 0.0
    %2681 = vmatpush1.msra.mxu0 0.0
    %2682 = vmatprep.subr.mxu0 0.0
    %2683 = vmatpush1.msra.mxu0 0.0
    %2684 = vmatprep.subr.mxu0 0.0
    %2685 = vmatpush1.msra.mxu0 0.0
    %2686 = vmatprep.subr.mxu0 0.0
    %2687 = vmatpush1.msra.mxu0 0.0
    %2688 = vmatprep.subr.mxu0 0.0
    %2689 = vmatpush1.msra.mxu0 0.0
    %2690 = vmatprep.subr.mxu0 0.0
    %2691 = vmatpush1.msra.mxu0 0.0
    %2692 = vmatprep.subr.mxu0 0.0
    %2693 = vmatpush1.msra.mxu0 0.0
    %2694 = vmatprep.subr.mxu0 0.0
    %2695 = vmatpush1.msra.mxu0 0.0
    %2696 = vmatprep.subr.mxu0 0.0
    %2697 = vmatpush1.msra.mxu0 0.0
    %2698 = vmatprep.subr.mxu0 0.0
    %2699 = vmatpush1.msra.mxu0 0.0
    %2700 = vmatprep.subr.mxu0 0.0
    %2701 = vmatpush1.msra.mxu0 0.0
    %2702 = vmatprep.subr.mxu0 0.0
    %2703 = vmatpush1.msra.mxu0 0.0
    %2704 = vmatprep.subr.mxu0 0.0
    %2705 = vmatpush1.msra.mxu0 0.0
    %2706 = vmatprep.subr.mxu0 0.0
    %2707 = vmatpush1.msra.mxu0 0.0
    %2708 = vmatprep.subr.mxu0 0.0
    %2709 = vmatpush1.msra.mxu0 0.0
    %2710 = vmatprep.subr.mxu0 0.0
    %2711 = vmatpush1.msra.mxu0 0.0
    %2712 = vmatprep.subr.mxu0 0.0
    %2713 = vmatpush1.msra.mxu0 0.0
    %2714 = vmatprep.mubr.f32.mxu0 0.0
    %2715 = vmatmul.mubr.f32.gmra.mrb[0].mxu0 %v2438
    %v2716 = vpop.f32.mrb[0].mxu0
    %v2717 = vadd.f32 %v2432, %v2716
    %v2718 = vpop.f32.mrb[0].mxu0
    %2719 = vdwg.mxu0
    %s2720 = scalar_lea.vmem %s9, 128
    %v2721 = vld [vmem:[%s2720] sm:$0xff]
    %v2722 = vld [vmem:[%s2720 + $0x8] sm:$0xff]
    %v2723 = vld [vmem:[%s2720 + $0x10] sm:$0xff]
    %v2724 = vld [vmem:[%s2720 + $0x18] sm:$0xff]
    %v2725 = vld [vmem:[%s2720 + $0x20] sm:$0xff]
    %v2726 = vld [vmem:[%s2720 + $0x28] sm:$0xff]
    %v2727 = vld [vmem:[%s2720 + $0x30] sm:$0xff]
    %v2728 = vld [vmem:[%s2720 + $0x38] sm:$0xff]
    %v2729 = vld [vmem:[%s2720 + $0x40] sm:$0xff]
    %v2730 = vld [vmem:[%s2720 + $0x48] sm:$0xff]
    %v2731 = vld [vmem:[%s2720 + $0x50] sm:$0xff]
    %v2732 = vld [vmem:[%s2720 + $0x58] sm:$0xff]
    %v2733 = vld [vmem:[%s2720 + $0x60] sm:$0xff]
    %v2734 = vld [vmem:[%s2720 + $0x68] sm:$0xff]
    %v2735 = vld [vmem:[%s2720 + $0x70] sm:$0xff]
    %v2736 = vld [vmem:[%s2720 + $0x78] sm:$0xff]
    %s2737 = scalar_lea.vmem %s10, 4
    %v2738 = vld [vmem:[%s2737] sm:$0x1]
    %v2739 = vld [vmem:[%s2737 + $0x1] sm:$0x1]
    %v2740 = vld [vmem:[%s2737 + $0x2] sm:$0x1]
    %v2741 = vld [vmem:[%s2737 + $0x3] sm:$0x1]
    %v2746 = vlaneseq
    %v2747 = vshrl.u32 %v2746, 7
    %v2748 = vsub.s32 0, %v2747
    %v2749 = vrot.slane %v2738, %v2748
    %v2750 = vlaneseq
    %v2751 = vshrl.u32 %v2750, 7
    %v2752 = vsub.s32 0, %v2751
    %v2753 = vrot.slane %v2739, %v2752
    %v2754 = vlaneseq
    %v2755 = vshrl.u32 %v2754, 7
    %v2756 = vsub.s32 0, %v2755
    %v2757 = vrot.slane %v2740, %v2756
    %v2758 = vlaneseq
    %v2759 = vshrl.u32 %v2758, 7
    %v2760 = vsub.s32 0, %v2759
    %v2761 = vrot.slane %v2741, %v2760
    %2766 = vmatprep.subr.mxu0 0.0
    %2767 = vmatpush1.msra.mxu0 %v2721
    %2768 = vmatprep.subr.mxu0 0.0
    %2769 = vmatpush1.msra.mxu0 %v2722
    %2770 = vmatprep.subr.mxu0 0.0
    %2771 = vmatpush1.msra.mxu0 %v2723
    %2772 = vmatprep.subr.mxu0 0.0
    %2773 = vmatpush1.msra.mxu0 %v2724
    %2774 = vmatprep.subr.mxu0 0.0
    %2775 = vmatpush1.msra.mxu0 0.0
    %2776 = vmatprep.subr.mxu0 0.0
    %2777 = vmatpush1.msra.mxu0 0.0
    %2778 = vmatprep.subr.mxu0 0.0
    %2779 = vmatpush1.msra.mxu0 0.0
    %2780 = vmatprep.subr.mxu0 0.0
    %2781 = vmatpush1.msra.mxu0 0.0
    %2782 = vmatprep.subr.mxu0 0.0
    %2783 = vmatpush1.msra.mxu0 0.0
    %2784 = vmatprep.subr.mxu0 0.0
    %2785 = vmatpush1.msra.mxu0 0.0
    %2786 = vmatprep.subr.mxu0 0.0
    %2787 = vmatpush1.msra.mxu0 0.0
    %2788 = vmatprep.subr.mxu0 0.0
    %2789 = vmatpush1.msra.mxu0 0.0
    %2790 = vmatprep.subr.mxu0 0.0
    %2791 = vmatpush1.msra.mxu0 0.0
    %2792 = vmatprep.subr.mxu0 0.0
    %2793 = vmatpush1.msra.mxu0 0.0
    %2794 = vmatprep.subr.mxu0 0.0
    %2795 = vmatpush1.msra.mxu0 0.0
    %2796 = vmatprep.subr.mxu0 0.0
    %2797 = vmatpush1.msra.mxu0 0.0
    %2798 = vmatprep.subr.mxu0 0.0
    %2799 = vmatpush1.msra.mxu0 0.0
    %2800 = vmatprep.subr.mxu0 0.0
    %2801 = vmatpush1.msra.mxu0 0.0
    %2802 = vmatprep.subr.mxu0 0.0
    %2803 = vmatpush1.msra.mxu0 0.0
    %2804 = vmatprep.subr.mxu0 0.0
    %2805 = vmatpush1.msra.mxu0 0.0
    %2806 = vmatprep.subr.mxu0 0.0
    %2807 = vmatpush1.msra.mxu0 0.0
    %2808 = vmatprep.subr.mxu0 0.0
    %2809 = vmatpush1.msra.mxu0 0.0
    %2810 = vmatprep.subr.mxu0 0.0
    %2811 = vmatpush1.msra.mxu0 0.0
    %2812 = vmatprep.subr.mxu0 0.0
    %2813 = vmatpush1.msra.mxu0 0.0
    %2814 = vmatprep.subr.mxu0 0.0
    %2815 = vmatpush1.msra.mxu0 0.0
    %2816 = vmatprep.subr.mxu0 0.0
    %2817 = vmatpush1.msra.mxu0 0.0
    %2818 = vmatprep.subr.mxu0 0.0
    %2819 = vmatpush1.msra.mxu0 0.0
    %2820 = vmatprep.subr.mxu0 0.0
    %2821 = vmatpush1.msra.mxu0 0.0
    %2822 = vmatprep.subr.mxu0 0.0
    %2823 = vmatpush1.msra.mxu0 0.0
    %2824 = vmatprep.subr.mxu0 0.0
    %2825 = vmatpush1.msra.mxu0 0.0
    %2826 = vmatprep.subr.mxu0 0.0
    %2827 = vmatpush1.msra.mxu0 0.0
    %2828 = vmatprep.subr.mxu0 0.0
    %2829 = vmatpush1.msra.mxu0 0.0
    %2830 = vmatprep.mubr.f32.mxu0 0.0
    %2831 = vmatmul.mubr.f32.gmra.mrb[0].mxu0 %v2438
    %v2832 = vpop.f32.mrb[0].mxu0
    %v2833 = vadd.f32 %v2749, %v2832
    %v2834 = vpop.f32.mrb[0].mxu0
    %2835 = vdwg.mxu0
    %2836 = vmatprep.subr.mxu0 0.0
    %2837 = vmatpush1.msra.mxu0 %v2725
    %2838 = vmatprep.subr.mxu0 0.0
    %2839 = vmatpush1.msra.mxu0 %v2726
    %2840 = vmatprep.subr.mxu0 0.0
    %2841 = vmatpush1.msra.mxu0 %v2727
    %2842 = vmatprep.subr.mxu0 0.0
    %2843 = vmatpush1.msra.mxu0 %v2728
    %2844 = vmatprep.subr.mxu0 0.0
    %2845 = vmatpush1.msra.mxu0 0.0
    %2846 = vmatprep.subr.mxu0 0.0
    %2847 = vmatpush1.msra.mxu0 0.0
    %2848 = vmatprep.subr.mxu0 0.0
    %2849 = vmatpush1.msra.mxu0 0.0
    %2850 = vmatprep.subr.mxu0 0.0
    %2851 = vmatpush1.msra.mxu0 0.0
    %2852 = vmatprep.subr.mxu0 0.0
    %2853 = vmatpush1.msra.mxu0 0.0
    %2854 = vmatprep.subr.mxu0 0.0
    %2855 = vmatpush1.msra.mxu0 0.0
    %2856 = vmatprep.subr.mxu0 0.0
    %2857 = vmatpush1.msra.mxu0 0.0
    %2858 = vmatprep.subr.mxu0 0.0
    %2859 = vmatpush1.msra.mxu0 0.0
    %2860 = vmatprep.subr.mxu0 0.0
    %2861 = vmatpush1.msra.mxu0 0.0
    %2862 = vmatprep.subr.mxu0 0.0
    %2863 = vmatpush1.msra.mxu0 0.0
    %2864 = vmatprep.subr.mxu0 0.0
    %2865 = vmatpush1.msra.mxu0 0.0
    %2866 = vmatprep.subr.mxu0 0.0
    %2867 = vmatpush1.msra.mxu0 0.0
    %2868 = vmatprep.subr.mxu0 0.0
    %2869 = vmatpush1.msra.mxu0 0.0
    %2870 = vmatprep.subr.mxu0 0.0
    %2871 = vmatpush1.msra.mxu0 0.0
    %2872 = vmatprep.subr.mxu0 0.0
    %2873 = vmatpush1.msra.mxu0 0.0
    %2874 = vmatprep.subr.mxu0 0.0
    %2875 = vmatpush1.msra.mxu0 0.0
    %2876 = vmatprep.subr.mxu0 0.0
    %2877 = vmatpush1.msra.mxu0 0.0
    %2878 = vmatprep.subr.mxu0 0.0
    %2879 = vmatpush1.msra.mxu0 0.0
    %2880 = vmatprep.subr.mxu0 0.0
    %2881 = vmatpush1.msra.mxu0 0.0
    %2882 = vmatprep.subr.mxu0 0.0
    %2883 = vmatpush1.msra.mxu0 0.0
    %2884 = vmatprep.subr.mxu0 0.0
    %2885 = vmatpush1.msra.mxu0 0.0
    %2886 = vmatprep.subr.mxu0 0.0
    %2887 = vmatpush1.msra.mxu0 0.0
    %2888 = vmatprep.subr.mxu0 0.0
    %2889 = vmatpush1.msra.mxu0 0.0
    %2890 = vmatprep.subr.mxu0 0.0
    %2891 = vmatpush1.msra.mxu0 0.0
    %2892 = vmatprep.subr.mxu0 0.0
    %2893 = vmatpush1.msra.mxu0 0.0
    %2894 = vmatprep.subr.mxu0 0.0
    %2895 = vmatpush1.msra.mxu0 0.0
    %2896 = vmatprep.subr.mxu0 0.0
    %2897 = vmatpush1.msra.mxu0 0.0
    %2898 = vmatprep.subr.mxu0 0.0
    %2899 = vmatpush1.msra.mxu0 0.0
    %2900 = vmatprep.mubr.f32.mxu0 0.0
    %2901 = vmatmul.mubr.f32.gmra.mrb[0].mxu0 %v2438
    %v2902 = vpop.f32.mrb[0].mxu0
    %v2903 = vadd.f32 %v2753, %v2902
    %v2904 = vpop.f32.mrb[0].mxu0
    %2905 = vdwg.mxu0
    %2906 = vmatprep.subr.mxu0 0.0
    %2907 = vmatpush1.msra.mxu0 %v2729
    %2908 = vmatprep.subr.mxu0 0.0
    %2909 = vmatpush1.msra.mxu0 %v2730
    %2910 = vmatprep.subr.mxu0 0.0
    %2911 = vmatpush1.msra.mxu0 %v2731
    %2912 = vmatprep.subr.mxu0 0.0
    %2913 = vmatpush1.msra.mxu0 %v2732
    %2914 = vmatprep.subr.mxu0 0.0
    %2915 = vmatpush1.msra.mxu0 0.0
    %2916 = vmatprep.subr.mxu0 0.0
    %2917 = vmatpush1.msra.mxu0 0.0
    %2918 = vmatprep.subr.mxu0 0.0
    %2919 = vmatpush1.msra.mxu0 0.0
    %2920 = vmatprep.subr.mxu0 0.0
    %2921 = vmatpush1.msra.mxu0 0.0
    %2922 = vmatprep.subr.mxu0 0.0
    %2923 = vmatpush1.msra.mxu0 0.0
    %2924 = vmatprep.subr.mxu0 0.0
    %2925 = vmatpush1.msra.mxu0 0.0
    %2926 = vmatprep.subr.mxu0 0.0
    %2927 = vmatpush1.msra.mxu0 0.0
    %2928 = vmatprep.subr.mxu0 0.0
    %2929 = vmatpush1.msra.mxu0 0.0
    %2930 = vmatprep.subr.mxu0 0.0
    %2931 = vmatpush1.msra.mxu0 0.0
    %2932 = vmatprep.subr.mxu0 0.0
    %2933 = vmatpush1.msra.mxu0 0.0
    %2934 = vmatprep.subr.mxu0 0.0
    %2935 = vmatpush1.msra.mxu0 0.0
    %2936 = vmatprep.subr.mxu0 0.0
    %2937 = vmatpush1.msra.mxu0 0.0
    %2938 = vmatprep.subr.mxu0 0.0
    %2939 = vmatpush1.msra.mxu0 0.0
    %2940 = vmatprep.subr.mxu0 0.0
    %2941 = vmatpush1.msra.mxu0 0.0
    %2942 = vmatprep.subr.mxu0 0.0
    %2943 = vmatpush1.msra.mxu0 0.0
    %2944 = vmatprep.subr.mxu0 0.0
    %2945 = vmatpush1.msra.mxu0 0.0
    %2946 = vmatprep.subr.mxu0 0.0
    %2947 = vmatpush1.msra.mxu0 0.0
    %2948 = vmatprep.subr.mxu0 0.0
    %2949 = vmatpush1.msra.mxu0 0.0
    %2950 = vmatprep.subr.mxu0 0.0
    %2951 = vmatpush1.msra.mxu0 0.0
    %2952 = vmatprep.subr.mxu0 0.0
    %2953 = vmatpush1.msra.mxu0 0.0
    %2954 = vmatprep.subr.mxu0 0.0
    %2955 = vmatpush1.msra.mxu0 0.0
    %2956 = vmatprep.subr.mxu0 0.0
    %2957 = vmatpush1.msra.mxu0 0.0
    %2958 = vmatprep.subr.mxu0 0.0
    %2959 = vmatpush1.msra.mxu0 0.0
    %2960 = vmatprep.subr.mxu0 0.0
    %2961 = vmatpush1.msra.mxu0 0.0
    %2962 = vmatprep.subr.mxu0 0.0
    %2963 = vmatpush1.msra.mxu0 0.0
    %2964 = vmatprep.subr.mxu0 0.0
    %2965 = vmatpush1.msra.mxu0 0.0
    %2966 = vmatprep.subr.mxu0 0.0
    %2967 = vmatpush1.msra.mxu0 0.0
    %2968 = vmatprep.subr.mxu0 0.0
    %2969 = vmatpush1.msra.mxu0 0.0
    %2970 = vmatprep.mubr.f32.mxu0 0.0
    %2971 = vmatmul.mubr.f32.gmra.mrb[0].mxu0 %v2438
    %v2972 = vpop.f32.mrb[0].mxu0
    %v2973 = vadd.f32 %v2757, %v2972
    %v2974 = vpop.f32.mrb[0].mxu0
    %2975 = vdwg.mxu0
    %2976 = vmatprep.subr.mxu0 0.0
    %2977 = vmatpush1.msra.mxu0 %v2733
    %2978 = vmatprep.subr.mxu0 0.0
    %2979 = vmatpush1.msra.mxu0 %v2734
    %2980 = vmatprep.subr.mxu0 0.0
    %2981 = vmatpush1.msra.mxu0 %v2735
    %2982 = vmatprep.subr.mxu0 0.0
    %2983 = vmatpush1.msra.mxu0 %v2736
    %2984 = vmatprep.subr.mxu0 0.0
    %2985 = vmatpush1.msra.mxu0 0.0
    %2986 = vmatprep.subr.mxu0 0.0
    %2987 = vmatpush1.msra.mxu0 0.0
    %2988 = vmatprep.subr.mxu0 0.0
    %2989 = vmatpush1.msra.mxu0 0.0
    %2990 = vmatprep.subr.mxu0 0.0
    %2991 = vmatpush1.msra.mxu0 0.0
    %2992 = vmatprep.subr.mxu0 0.0
    %2993 = vmatpush1.msra.mxu0 0.0
    %2994 = vmatprep.subr.mxu0 0.0
    %2995 = vmatpush1.msra.mxu0 0.0
    %2996 = vmatprep.subr.mxu0 0.0
    %2997 = vmatpush1.msra.mxu0 0.0
    %2998 = vmatprep.subr.mxu0 0.0
    %2999 = vmatpush1.msra.mxu0 0.0
    %3000 = vmatprep.subr.mxu0 0.0
    %3001 = vmatpush1.msra.mxu0 0.0
    %3002 = vmatprep.subr.mxu0 0.0
    %3003 = vmatpush1.msra.mxu0 0.0
    %3004 = vmatprep.subr.mxu0 0.0
    %3005 = vmatpush1.msra.mxu0 0.0
    %3006 = vmatprep.subr.mxu0 0.0
    %3007 = vmatpush1.msra.mxu0 0.0
    %3008 = vmatprep.subr.mxu0 0.0
    %3009 = vmatpush1.msra.mxu0 0.0
    %3010 = vmatprep.subr.mxu0 0.0
    %3011 = vmatpush1.msra.mxu0 0.0
    %3012 = vmatprep.subr.mxu0 0.0
    %3013 = vmatpush1.msra.mxu0 0.0
    %3014 = vmatprep.subr.mxu0 0.0
    %3015 = vmatpush1.msra.mxu0 0.0
    %3016 = vmatprep.subr.mxu0 0.0
    %3017 = vmatpush1.msra.mxu0 0.0
    %3018 = vmatprep.subr.mxu0 0.0
    %3019 = vmatpush1.msra.mxu0 0.0
    %3020 = vmatprep.subr.mxu0 0.0
    %3021 = vmatpush1.msra.mxu0 0.0
    %3022 = vmatprep.subr.mxu0 0.0
    %3023 = vmatpush1.msra.mxu0 0.0
    %3024 = vmatprep.subr.mxu0 0.0
    %3025 = vmatpush1.msra.mxu0 0.0
    %3026 = vmatprep.subr.mxu0 0.0
    %3027 = vmatpush1.msra.mxu0 0.0
    %3028 = vmatprep.subr.mxu0 0.0
    %3029 = vmatpush1.msra.mxu0 0.0
    %3030 = vmatprep.subr.mxu0 0.0
    %3031 = vmatpush1.msra.mxu0 0.0
    %3032 = vmatprep.subr.mxu0 0.0
    %3033 = vmatpush1.msra.mxu0 0.0
    %3034 = vmatprep.subr.mxu0 0.0
    %3035 = vmatpush1.msra.mxu0 0.0
    %3036 = vmatprep.subr.mxu0 0.0
    %3037 = vmatpush1.msra.mxu0 0.0
    %3038 = vmatprep.subr.mxu0 0.0
    %3039 = vmatpush1.msra.mxu0 0.0
    %3040 = vmatprep.mubr.f32.mxu0 0.0
    %3041 = vmatmul.mubr.f32.gmra.mrb[0].mxu0 %v2438
    %v3042 = vpop.f32.mrb[0].mxu0
    %v3043 = vadd.f32 %v2761, %v3042
    %v3044 = vpop.f32.mrb[0].mxu0
    %3045 = vdwg.mxu0
    %s3046 = scalar_lea.vmem %s11, 128
    %v3047 = vld [vmem:[%s3046] sm:$0xff]
    %v3048 = vld [vmem:[%s3046 + $0x8] sm:$0xff]
    %v3049 = vld [vmem:[%s3046 + $0x10] sm:$0xff]
    %v3050 = vld [vmem:[%s3046 + $0x18] sm:$0xff]
    %v3051 = vld [vmem:[%s3046 + $0x20] sm:$0xff]
    %v3052 = vld [vmem:[%s3046 + $0x28] sm:$0xff]
    %v3053 = vld [vmem:[%s3046 + $0x30] sm:$0xff]
    %v3054 = vld [vmem:[%s3046 + $0x38] sm:$0xff]
    %v3055 = vld [vmem:[%s3046 + $0x40] sm:$0xff]
    %v3056 = vld [vmem:[%s3046 + $0x48] sm:$0xff]
    %v3057 = vld [vmem:[%s3046 + $0x50] sm:$0xff]
    %v3058 = vld [vmem:[%s3046 + $0x58] sm:$0xff]
    %v3059 = vld [vmem:[%s3046 + $0x60] sm:$0xff]
    %v3060 = vld [vmem:[%s3046 + $0x68] sm:$0xff]
    %v3061 = vld [vmem:[%s3046 + $0x70] sm:$0xff]
    %v3062 = vld [vmem:[%s3046 + $0x78] sm:$0xff]
    %s3063 = scalar_lea.vmem %s12, 4
    %v3064 = vld [vmem:[%s3063] sm:$0x1]
    %v3065 = vld [vmem:[%s3063 + $0x1] sm:$0x1]
    %v3066 = vld [vmem:[%s3063 + $0x2] sm:$0x1]
    %v3067 = vld [vmem:[%s3063 + $0x3] sm:$0x1]
    %v3072 = vlaneseq
    %v3073 = vshrl.u32 %v3072, 7
    %v3074 = vsub.s32 0, %v3073
    %v3075 = vrot.slane %v3064, %v3074
    %v3076 = vlaneseq
    %v3077 = vshrl.u32 %v3076, 7
    %v3078 = vsub.s32 0, %v3077
    %v3079 = vrot.slane %v3065, %v3078
    %v3080 = vlaneseq
    %v3081 = vshrl.u32 %v3080, 7
    %v3082 = vsub.s32 0, %v3081
    %v3083 = vrot.slane %v3066, %v3082
    %v3084 = vlaneseq
    %v3085 = vshrl.u32 %v3084, 7
    %v3086 = vsub.s32 0, %v3085
    %v3087 = vrot.slane %v3067, %v3086
    %3092 = vmatprep.subr.mxu0 0.0
    %3093 = vmatpush1.msra.mxu0 %v3047
    %3094 = vmatprep.subr.mxu0 0.0
    %3095 = vmatpush1.msra.mxu0 %v3048
    %3096 = vmatprep.subr.mxu0 0.0
    %3097 = vmatpush1.msra.mxu0 %v3049
    %3098 = vmatprep.subr.mxu0 0.0
    %3099 = vmatpush1.msra.mxu0 %v3050
    %3100 = vmatprep.subr.mxu0 0.0
    %3101 = vmatpush1.msra.mxu0 0.0
    %3102 = vmatprep.subr.mxu0 0.0
    %3103 = vmatpush1.msra.mxu0 0.0
    %3104 = vmatprep.subr.mxu0 0.0
    %3105 = vmatpush1.msra.mxu0 0.0
    %3106 = vmatprep.subr.mxu0 0.0
    %3107 = vmatpush1.msra.mxu0 0.0
    %3108 = vmatprep.subr.mxu0 0.0
    %3109 = vmatpush1.msra.mxu0 0.0
    %3110 = vmatprep.subr.mxu0 0.0
    %3111 = vmatpush1.msra.mxu0 0.0
    %3112 = vmatprep.subr.mxu0 0.0
    %3113 = vmatpush1.msra.mxu0 0.0
    %3114 = vmatprep.subr.mxu0 0.0
    %3115 = vmatpush1.msra.mxu0 0.0
    %3116 = vmatprep.subr.mxu0 0.0
    %3117 = vmatpush1.msra.mxu0 0.0
    %3118 = vmatprep.subr.mxu0 0.0
    %3119 = vmatpush1.msra.mxu0 0.0
    %3120 = vmatprep.subr.mxu0 0.0
    %3121 = vmatpush1.msra.mxu0 0.0
    %3122 = vmatprep.subr.mxu0 0.0
    %3123 = vmatpush1.msra.mxu0 0.0
    %3124 = vmatprep.subr.mxu0 0.0
    %3125 = vmatpush1.msra.mxu0 0.0
    %3126 = vmatprep.subr.mxu0 0.0
    %3127 = vmatpush1.msra.mxu0 0.0
    %3128 = vmatprep.subr.mxu0 0.0
    %3129 = vmatpush1.msra.mxu0 0.0
    %3130 = vmatprep.subr.mxu0 0.0
    %3131 = vmatpush1.msra.mxu0 0.0
    %3132 = vmatprep.subr.mxu0 0.0
    %3133 = vmatpush1.msra.mxu0 0.0
    %3134 = vmatprep.subr.mxu0 0.0
    %3135 = vmatpush1.msra.mxu0 0.0
    %3136 = vmatprep.subr.mxu0 0.0
    %3137 = vmatpush1.msra.mxu0 0.0
    %3138 = vmatprep.subr.mxu0 0.0
    %3139 = vmatpush1.msra.mxu0 0.0
    %3140 = vmatprep.subr.mxu0 0.0
    %3141 = vmatpush1.msra.mxu0 0.0
    %3142 = vmatprep.subr.mxu0 0.0
    %3143 = vmatpush1.msra.mxu0 0.0
    %3144 = vmatprep.subr.mxu0 0.0
    %3145 = vmatpush1.msra.mxu0 0.0
    %3146 = vmatprep.subr.mxu0 0.0
    %3147 = vmatpush1.msra.mxu0 0.0
    %3148 = vmatprep.subr.mxu0 0.0
    %3149 = vmatpush1.msra.mxu0 0.0
    %3150 = vmatprep.subr.mxu0 0.0
    %3151 = vmatpush1.msra.mxu0 0.0
    %3152 = vmatprep.subr.mxu0 0.0
    %3153 = vmatpush1.msra.mxu0 0.0
    %3154 = vmatprep.subr.mxu0 0.0
    %3155 = vmatpush1.msra.mxu0 0.0
    %3156 = vmatprep.mubr.f32.mxu0 0.0
    %3157 = vmatmul.mubr.f32.gmra.mrb[0].mxu0 %v2438
    %v3158 = vpop.f32.mrb[0].mxu0
    %v3159 = vadd.f32 %v3075, %v3158
    %v3160 = vpop.f32.mrb[0].mxu0
    %3161 = vdwg.mxu0
    %3162 = vmatprep.subr.mxu0 0.0
    %3163 = vmatpush1.msra.mxu0 %v3051
    %3164 = vmatprep.subr.mxu0 0.0
    %3165 = vmatpush1.msra.mxu0 %v3052
    %3166 = vmatprep.subr.mxu0 0.0
    %3167 = vmatpush1.msra.mxu0 %v3053
    %3168 = vmatprep.subr.mxu0 0.0
    %3169 = vmatpush1.msra.mxu0 %v3054
    %3170 = vmatprep.subr.mxu0 0.0
    %3171 = vmatpush1.msra.mxu0 0.0
    %3172 = vmatprep.subr.mxu0 0.0
    %3173 = vmatpush1.msra.mxu0 0.0
    %3174 = vmatprep.subr.mxu0 0.0
    %3175 = vmatpush1.msra.mxu0 0.0
    %3176 = vmatprep.subr.mxu0 0.0
    %3177 = vmatpush1.msra.mxu0 0.0
    %3178 = vmatprep.subr.mxu0 0.0
    %3179 = vmatpush1.msra.mxu0 0.0
    %3180 = vmatprep.subr.mxu0 0.0
    %3181 = vmatpush1.msra.mxu0 0.0
    %3182 = vmatprep.subr.mxu0 0.0
    %3183 = vmatpush1.msra.mxu0 0.0
    %3184 = vmatprep.subr.mxu0 0.0
    %3185 = vmatpush1.msra.mxu0 0.0
    %3186 = vmatprep.subr.mxu0 0.0
    %3187 = vmatpush1.msra.mxu0 0.0
    %3188 = vmatprep.subr.mxu0 0.0
    %3189 = vmatpush1.msra.mxu0 0.0
    %3190 = vmatprep.subr.mxu0 0.0
    %3191 = vmatpush1.msra.mxu0 0.0
    %3192 = vmatprep.subr.mxu0 0.0
    %3193 = vmatpush1.msra.mxu0 0.0
    %3194 = vmatprep.subr.mxu0 0.0
    %3195 = vmatpush1.msra.mxu0 0.0
    %3196 = vmatprep.subr.mxu0 0.0
    %3197 = vmatpush1.msra.mxu0 0.0
    %3198 = vmatprep.subr.mxu0 0.0
    %3199 = vmatpush1.msra.mxu0 0.0
    %3200 = vmatprep.subr.mxu0 0.0
    %3201 = vmatpush1.msra.mxu0 0.0
    %3202 = vmatprep.subr.mxu0 0.0
    %3203 = vmatpush1.msra.mxu0 0.0
    %3204 = vmatprep.subr.mxu0 0.0
    %3205 = vmatpush1.msra.mxu0 0.0
    %3206 = vmatprep.subr.mxu0 0.0
    %3207 = vmatpush1.msra.mxu0 0.0
    %3208 = vmatprep.subr.mxu0 0.0
    %3209 = vmatpush1.msra.mxu0 0.0
    %3210 = vmatprep.subr.mxu0 0.0
    %3211 = vmatpush1.msra.mxu0 0.0
    %3212 = vmatprep.subr.mxu0 0.0
    %3213 = vmatpush1.msra.mxu0 0.0
    %3214 = vmatprep.subr.mxu0 0.0
    %3215 = vmatpush1.msra.mxu0 0.0
    %3216 = vmatprep.subr.mxu0 0.0
    %3217 = vmatpush1.msra.mxu0 0.0
    %3218 = vmatprep.subr.mxu0 0.0
    %3219 = vmatpush1.msra.mxu0 0.0
    %3220 = vmatprep.subr.mxu0 0.0
    %3221 = vmatpush1.msra.mxu0 0.0
    %3222 = vmatprep.subr.mxu0 0.0
    %3223 = vmatpush1.msra.mxu0 0.0
    %3224 = vmatprep.subr.mxu0 0.0
    %3225 = vmatpush1.msra.mxu0 0.0
    %3226 = vmatprep.mubr.f32.mxu0 0.0
    %3227 = vmatmul.mubr.f32.gmra.mrb[0].mxu0 %v2438
    %v3228 = vpop.f32.mrb[0].mxu0
    %v3229 = vadd.f32 %v3079, %v3228
    %v3230 = vpop.f32.mrb[0].mxu0
    %3231 = vdwg.mxu0
    %3232 = vmatprep.subr.mxu0 0.0
    %3233 = vmatpush1.msra.mxu0 %v3055
    %3234 = vmatprep.subr.mxu0 0.0
    %3235 = vmatpush1.msra.mxu0 %v3056
    %3236 = vmatprep.subr.mxu0 0.0
    %3237 = vmatpush1.msra.mxu0 %v3057
    %3238 = vmatprep.subr.mxu0 0.0
    %3239 = vmatpush1.msra.mxu0 %v3058
    %3240 = vmatprep.subr.mxu0 0.0
    %3241 = vmatpush1.msra.mxu0 0.0
    %3242 = vmatprep.subr.mxu0 0.0
    %3243 = vmatpush1.msra.mxu0 0.0
    %3244 = vmatprep.subr.mxu0 0.0
    %3245 = vmatpush1.msra.mxu0 0.0
    %3246 = vmatprep.subr.mxu0 0.0
    %3247 = vmatpush1.msra.mxu0 0.0
    %3248 = vmatprep.subr.mxu0 0.0
    %3249 = vmatpush1.msra.mxu0 0.0
    %3250 = vmatprep.subr.mxu0 0.0
    %3251 = vmatpush1.msra.mxu0 0.0
    %3252 = vmatprep.subr.mxu0 0.0
    %3253 = vmatpush1.msra.mxu0 0.0
    %3254 = vmatprep.subr.mxu0 0.0
    %3255 = vmatpush1.msra.mxu0 0.0
    %3256 = vmatprep.subr.mxu0 0.0
    %3257 = vmatpush1.msra.mxu0 0.0
    %3258 = vmatprep.subr.mxu0 0.0
    %3259 = vmatpush1.msra.mxu0 0.0
    %3260 = vmatprep.subr.mxu0 0.0
    %3261 = vmatpush1.msra.mxu0 0.0
    %3262 = vmatprep.subr.mxu0 0.0
    %3263 = vmatpush1.msra.mxu0 0.0
    %3264 = vmatprep.subr.mxu0 0.0
    %3265 = vmatpush1.msra.mxu0 0.0
    %3266 = vmatprep.subr.mxu0 0.0
    %3267 = vmatpush1.msra.mxu0 0.0
    %3268 = vmatprep.subr.mxu0 0.0
    %3269 = vmatpush1.msra.mxu0 0.0
    %3270 = vmatprep.subr.mxu0 0.0
    %3271 = vmatpush1.msra.mxu0 0.0
    %3272 = vmatprep.subr.mxu0 0.0
    %3273 = vmatpush1.msra.mxu0 0.0
    %3274 = vmatprep.subr.mxu0 0.0
    %3275 = vmatpush1.msra.mxu0 0.0
    %3276 = vmatprep.subr.mxu0 0.0
    %3277 = vmatpush1.msra.mxu0 0.0
    %3278 = vmatprep.subr.mxu0 0.0
    %3279 = vmatpush1.msra.mxu0 0.0
    %3280 = vmatprep.subr.mxu0 0.0
    %3281 = vmatpush1.msra.mxu0 0.0
    %3282 = vmatprep.subr.mxu0 0.0
    %3283 = vmatpush1.msra.mxu0 0.0
    %3284 = vmatprep.subr.mxu0 0.0
    %3285 = vmatpush1.msra.mxu0 0.0
    %3286 = vmatprep.subr.mxu0 0.0
    %3287 = vmatpush1.msra.mxu0 0.0
    %3288 = vmatprep.subr.mxu0 0.0
    %3289 = vmatpush1.msra.mxu0 0.0
    %3290 = vmatprep.subr.mxu0 0.0
    %3291 = vmatpush1.msra.mxu0 0.0
    %3292 = vmatprep.subr.mxu0 0.0
    %3293 = vmatpush1.msra.mxu0 0.0
    %3294 = vmatprep.subr.mxu0 0.0
    %3295 = vmatpush1.msra.mxu0 0.0
    %3296 = vmatprep.mubr.f32.mxu0 0.0
    %3297 = vmatmul.mubr.f32.gmra.mrb[0].mxu0 %v2438
    %v3298 = vpop.f32.mrb[0].mxu0
    %v3299 = vadd.f32 %v3083, %v3298
    %v3300 = vpop.f32.mrb[0].mxu0
    %3301 = vdwg.mxu0
    %3302 = vmatprep.subr.mxu0 0.0
    %3303 = vmatpush1.msra.mxu0 %v3059
    %3304 = vmatprep.subr.mxu0 0.0
    %3305 = vmatpush1.msra.mxu0 %v3060
    %3306 = vmatprep.subr.mxu0 0.0
    %3307 = vmatpush1.msra.mxu0 %v3061
    %3308 = vmatprep.subr.mxu0 0.0
    %3309 = vmatpush1.msra.mxu0 %v3062
    %3310 = vmatprep.subr.mxu0 0.0
    %3311 = vmatpush1.msra.mxu0 0.0
    %3312 = vmatprep.subr.mxu0 0.0
    %3313 = vmatpush1.msra.mxu0 0.0
    %3314 = vmatprep.subr.mxu0 0.0
    %3315 = vmatpush1.msra.mxu0 0.0
    %3316 = vmatprep.subr.mxu0 0.0
    %3317 = vmatpush1.msra.mxu0 0.0
    %3318 = vmatprep.subr.mxu0 0.0
    %3319 = vmatpush1.msra.mxu0 0.0
    %3320 = vmatprep.subr.mxu0 0.0
    %3321 = vmatpush1.msra.mxu0 0.0
    %3322 = vmatprep.subr.mxu0 0.0
    %3323 = vmatpush1.msra.mxu0 0.0
    %3324 = vmatprep.subr.mxu0 0.0
    %3325 = vmatpush1.msra.mxu0 0.0
    %3326 = vmatprep.subr.mxu0 0.0
    %3327 = vmatpush1.msra.mxu0 0.0
    %3328 = vmatprep.subr.mxu0 0.0
    %3329 = vmatpush1.msra.mxu0 0.0
    %3330 = vmatprep.subr.mxu0 0.0
    %3331 = vmatpush1.msra.mxu0 0.0
    %3332 = vmatprep.subr.mxu0 0.0
    %3333 = vmatpush1.msra.mxu0 0.0
    %3334 = vmatprep.subr.mxu0 0.0
    %3335 = vmatpush1.msra.mxu0 0.0
    %3336 = vmatprep.subr.mxu0 0.0
    %3337 = vmatpush1.msra.mxu0 0.0
    %3338 = vmatprep.subr.mxu0 0.0
    %3339 = vmatpush1.msra.mxu0 0.0
    %3340 = vmatprep.subr.mxu0 0.0
    %3341 = vmatpush1.msra.mxu0 0.0
    %3342 = vmatprep.subr.mxu0 0.0
    %3343 = vmatpush1.msra.mxu0 0.0
    %3344 = vmatprep.subr.mxu0 0.0
    %3345 = vmatpush1.msra.mxu0 0.0
    %3346 = vmatprep.subr.mxu0 0.0
    %3347 = vmatpush1.msra.mxu0 0.0
    %3348 = vmatprep.subr.mxu0 0.0
    %3349 = vmatpush1.msra.mxu0 0.0
    %3350 = vmatprep.subr.mxu0 0.0
    %3351 = vmatpush1.msra.mxu0 0.0
    %3352 = vmatprep.subr.mxu0 0.0
    %3353 = vmatpush1.msra.mxu0 0.0
    %3354 = vmatprep.subr.mxu0 0.0
    %3355 = vmatpush1.msra.mxu0 0.0
    %3356 = vmatprep.subr.mxu0 0.0
    %3357 = vmatpush1.msra.mxu0 0.0
    %3358 = vmatprep.subr.mxu0 0.0
    %3359 = vmatpush1.msra.mxu0 0.0
    %3360 = vmatprep.subr.mxu0 0.0
    %3361 = vmatpush1.msra.mxu0 0.0
    %3362 = vmatprep.subr.mxu0 0.0
    %3363 = vmatpush1.msra.mxu0 0.0
    %3364 = vmatprep.subr.mxu0 0.0
    %3365 = vmatpush1.msra.mxu0 0.0
    %3366 = vmatprep.mubr.f32.mxu0 0.0
    %3367 = vmatmul.mubr.f32.gmra.mrb[0].mxu0 %v2438
    %v3368 = vpop.f32.mrb[0].mxu0
    %v3369 = vadd.f32 %v3087, %v3368
    %v3370 = vpop.f32.mrb[0].mxu0
    %3371 = vdwg.mxu0
    %v3373 = vsel %vm1195, %v2507, 0
    %v3376 = vsel %vm1195, %v2833, 0
    %3378 = vmatprep.subr.mxu0 0.0
    %3379 = vmatpush1.xpose.msra.mxu0 %v3376
    %3380 = vmatprep.subr.mxu0 0.0
    %3381 = vmatpush1.xpose.msra.mxu0 0.0
    %3382 = vmatprep.subr.mxu0 0.0
    %3383 = vmatpush1.xpose.msra.mxu0 0.0
    %3384 = vmatprep.subr.mxu0 0.0
    %3385 = vmatpush1.xpose.msra.mxu0 0.0
    %3386 = vmatprep.subr.mxu0 0.0
    %3387 = vmatpush1.xpose.msra.mxu0 0.0
    %3388 = vmatprep.subr.mxu0 0.0
    %3389 = vmatpush1.xpose.msra.mxu0 0.0
    %3390 = vmatprep.subr.mxu0 0.0
    %3391 = vmatpush1.xpose.msra.mxu0 0.0
    %3392 = vmatprep.subr.mxu0 0.0
    %3393 = vmatpush1.xpose.msra.mxu0 0.0
    %3394 = vmatprep.subr.mxu0 0.0
    %3395 = vmatpush1.xpose.msra.mxu0 0.0
    %3396 = vmatprep.subr.mxu0 0.0
    %3397 = vmatpush1.xpose.msra.mxu0 0.0
    %3398 = vmatprep.subr.mxu0 0.0
    %3399 = vmatpush1.xpose.msra.mxu0 0.0
    %3400 = vmatprep.subr.mxu0 0.0
    %3401 = vmatpush1.xpose.msra.mxu0 0.0
    %3402 = vmatprep.subr.mxu0 0.0
    %3403 = vmatpush1.xpose.msra.mxu0 0.0
    %3404 = vmatprep.subr.mxu0 0.0
    %3405 = vmatpush1.xpose.msra.mxu0 0.0
    %3406 = vmatprep.subr.mxu0 0.0
    %3407 = vmatpush1.xpose.msra.mxu0 0.0
    %3408 = vmatprep.subr.mxu0 0.0
    %3409 = vmatpush1.xpose.msra.mxu0 0.0
    %3410 = vmatprep.subr.mxu0 0.0
    %3411 = vmatpush1.xpose.msra.mxu0 0.0
    %3412 = vmatprep.subr.mxu0 0.0
    %3413 = vmatpush1.xpose.msra.mxu0 0.0
    %3414 = vmatprep.subr.mxu0 0.0
    %3415 = vmatpush1.xpose.msra.mxu0 0.0
    %3416 = vmatprep.subr.mxu0 0.0
    %3417 = vmatpush1.xpose.msra.mxu0 0.0
    %3418 = vmatprep.subr.mxu0 0.0
    %3419 = vmatpush1.xpose.msra.mxu0 0.0
    %3420 = vmatprep.subr.mxu0 0.0
    %3421 = vmatpush1.xpose.msra.mxu0 0.0
    %3422 = vmatprep.subr.mxu0 0.0
    %3423 = vmatpush1.xpose.msra.mxu0 0.0
    %3424 = vmatprep.subr.mxu0 0.0
    %3425 = vmatpush1.xpose.msra.mxu0 0.0
    %3426 = vmatprep.subr.mxu0 0.0
    %3427 = vmatpush1.xpose.msra.mxu0 0.0
    %3428 = vmatprep.subr.mxu0 0.0
    %3429 = vmatpush1.xpose.msra.mxu0 0.0
    %3430 = vmatprep.subr.mxu0 0.0
    %3431 = vmatpush1.xpose.msra.mxu0 0.0
    %3432 = vmatprep.subr.mxu0 0.0
    %3433 = vmatpush1.xpose.msra.mxu0 0.0
    %3434 = vmatprep.subr.mxu0 0.0
    %3435 = vmatpush1.xpose.msra.mxu0 0.0
    %3436 = vmatprep.subr.mxu0 0.0
    %3437 = vmatpush1.xpose.msra.mxu0 0.0
    %3438 = vmatprep.subr.mxu0 0.0
    %3439 = vmatpush1.xpose.msra.mxu0 0.0
    %3440 = vmatprep.subr.mxu0 0.0
    %3441 = vmatpush1.xpose.msra.mxu0 0.0
    %3442 = vmatprep.mubr.f32.mxu0 0.0
    %3443 = vmatmul.mubr.f32.gmra.mrb[0].mxu0 %v3373
    %v3444 = vpop.f32.mrb[0].mxu0
    %v3445 = vadd.f32 %v188, %v3444
    %v3446 = vpop.f32.mrb[0].mxu0
    %3447 = vdwg.mxu0
    %v3449 = vsel %vm1195, %v2577, 0
    %v3452 = vsel %vm1195, %v2903, 0
    %3454 = vmatprep.subr.mxu0 0.0
    %3455 = vmatpush1.xpose.msra.mxu0 %v3452
    %3456 = vmatprep.subr.mxu0 0.0
    %3457 = vmatpush1.xpose.msra.mxu0 0.0
    %3458 = vmatprep.subr.mxu0 0.0
    %3459 = vmatpush1.xpose.msra.mxu0 0.0
    %3460 = vmatprep.subr.mxu0 0.0
    %3461 = vmatpush1.xpose.msra.mxu0 0.0
    %3462 = vmatprep.subr.mxu0 0.0
    %3463 = vmatpush1.xpose.msra.mxu0 0.0
    %3464 = vmatprep.subr.mxu0 0.0
    %3465 = vmatpush1.xpose.msra.mxu0 0.0
    %3466 = vmatprep.subr.mxu0 0.0
    %3467 = vmatpush1.xpose.msra.mxu0 0.0
    %3468 = vmatprep.subr.mxu0 0.0
    %3469 = vmatpush1.xpose.msra.mxu0 0.0
    %3470 = vmatprep.subr.mxu0 0.0
    %3471 = vmatpush1.xpose.msra.mxu0 0.0
    %3472 = vmatprep.subr.mxu0 0.0
    %3473 = vmatpush1.xpose.msra.mxu0 0.0
    %3474 = vmatprep.subr.mxu0 0.0
    %3475 = vmatpush1.xpose.msra.mxu0 0.0
    %3476 = vmatprep.subr.mxu0 0.0
    %3477 = vmatpush1.xpose.msra.mxu0 0.0
    %3478 = vmatprep.subr.mxu0 0.0
    %3479 = vmatpush1.xpose.msra.mxu0 0.0
    %3480 = vmatprep.subr.mxu0 0.0
    %3481 = vmatpush1.xpose.msra.mxu0 0.0
    %3482 = vmatprep.subr.mxu0 0.0
    %3483 = vmatpush1.xpose.msra.mxu0 0.0
    %3484 = vmatprep.subr.mxu0 0.0
    %3485 = vmatpush1.xpose.msra.mxu0 0.0
    %3486 = vmatprep.subr.mxu0 0.0
    %3487 = vmatpush1.xpose.msra.mxu0 0.0
    %3488 = vmatprep.subr.mxu0 0.0
    %3489 = vmatpush1.xpose.msra.mxu0 0.0
    %3490 = vmatprep.subr.mxu0 0.0
    %3491 = vmatpush1.xpose.msra.mxu0 0.0
    %3492 = vmatprep.subr.mxu0 0.0
    %3493 = vmatpush1.xpose.msra.mxu0 0.0
    %3494 = vmatprep.subr.mxu0 0.0
    %3495 = vmatpush1.xpose.msra.mxu0 0.0
    %3496 = vmatprep.subr.mxu0 0.0
    %3497 = vmatpush1.xpose.msra.mxu0 0.0
    %3498 = vmatprep.subr.mxu0 0.0
    %3499 = vmatpush1.xpose.msra.mxu0 0.0
    %3500 = vmatprep.subr.mxu0 0.0
    %3501 = vmatpush1.xpose.msra.mxu0 0.0
    %3502 = vmatprep.subr.mxu0 0.0
    %3503 = vmatpush1.xpose.msra.mxu0 0.0
    %3504 = vmatprep.subr.mxu0 0.0
    %3505 = vmatpush1.xpose.msra.mxu0 0.0
    %3506 = vmatprep.subr.mxu0 0.0
    %3507 = vmatpush1.xpose.msra.mxu0 0.0
    %3508 = vmatprep.subr.mxu0 0.0
    %3509 = vmatpush1.xpose.msra.mxu0 0.0
    %3510 = vmatprep.subr.mxu0 0.0
    %3511 = vmatpush1.xpose.msra.mxu0 0.0
    %3512 = vmatprep.subr.mxu0 0.0
    %3513 = vmatpush1.xpose.msra.mxu0 0.0
    %3514 = vmatprep.subr.mxu0 0.0
    %3515 = vmatpush1.xpose.msra.mxu0 0.0
    %3516 = vmatprep.subr.mxu0 0.0
    %3517 = vmatpush1.xpose.msra.mxu0 0.0
    %3518 = vmatprep.mubr.f32.mxu0 0.0
    %3519 = vmatmul.mubr.f32.gmra.mrb[0].mxu0 %v3449
    %v3520 = vpop.f32.mrb[0].mxu0
    %v3521 = vadd.f32 %v188, %v3520
    %v3522 = vpop.f32.mrb[0].mxu0
    %3523 = vdwg.mxu0
    %v3525 = vsel %vm1195, %v2647, 0
    %v3528 = vsel %vm1195, %v2973, 0
    %3530 = vmatprep.subr.mxu0 0.0
    %3531 = vmatpush1.xpose.msra.mxu0 %v3528
    %3532 = vmatprep.subr.mxu0 0.0
    %3533 = vmatpush1.xpose.msra.mxu0 0.0
    %3534 = vmatprep.subr.mxu0 0.0
    %3535 = vmatpush1.xpose.msra.mxu0 0.0
    %3536 = vmatprep.subr.mxu0 0.0
    %3537 = vmatpush1.xpose.msra.mxu0 0.0
    %3538 = vmatprep.subr.mxu0 0.0
    %3539 = vmatpush1.xpose.msra.mxu0 0.0
    %3540 = vmatprep.subr.mxu0 0.0
    %3541 = vmatpush1.xpose.msra.mxu0 0.0
    %3542 = vmatprep.subr.mxu0 0.0
    %3543 = vmatpush1.xpose.msra.mxu0 0.0
    %3544 = vmatprep.subr.mxu0 0.0
    %3545 = vmatpush1.xpose.msra.mxu0 0.0
    %3546 = vmatprep.subr.mxu0 0.0
    %3547 = vmatpush1.xpose.msra.mxu0 0.0
    %3548 = vmatprep.subr.mxu0 0.0
    %3549 = vmatpush1.xpose.msra.mxu0 0.0
    %3550 = vmatprep.subr.mxu0 0.0
    %3551 = vmatpush1.xpose.msra.mxu0 0.0
    %3552 = vmatprep.subr.mxu0 0.0
    %3553 = vmatpush1.xpose.msra.mxu0 0.0
    %3554 = vmatprep.subr.mxu0 0.0
    %3555 = vmatpush1.xpose.msra.mxu0 0.0
    %3556 = vmatprep.subr.mxu0 0.0
    %3557 = vmatpush1.xpose.msra.mxu0 0.0
    %3558 = vmatprep.subr.mxu0 0.0
    %3559 = vmatpush1.xpose.msra.mxu0 0.0
    %3560 = vmatprep.subr.mxu0 0.0
    %3561 = vmatpush1.xpose.msra.mxu0 0.0
    %3562 = vmatprep.subr.mxu0 0.0
    %3563 = vmatpush1.xpose.msra.mxu0 0.0
    %3564 = vmatprep.subr.mxu0 0.0
    %3565 = vmatpush1.xpose.msra.mxu0 0.0
    %3566 = vmatprep.subr.mxu0 0.0
    %3567 = vmatpush1.xpose.msra.mxu0 0.0
    %3568 = vmatprep.subr.mxu0 0.0
    %3569 = vmatpush1.xpose.msra.mxu0 0.0
    %3570 = vmatprep.subr.mxu0 0.0
    %3571 = vmatpush1.xpose.msra.mxu0 0.0
    %3572 = vmatprep.subr.mxu0 0.0
    %3573 = vmatpush1.xpose.msra.mxu0 0.0
    %3574 = vmatprep.subr.mxu0 0.0
    %3575 = vmatpush1.xpose.msra.mxu0 0.0
    %3576 = vmatprep.subr.mxu0 0.0
    %3577 = vmatpush1.xpose.msra.mxu0 0.0
    %3578 = vmatprep.subr.mxu0 0.0
    %3579 = vmatpush1.xpose.msra.mxu0 0.0
    %3580 = vmatprep.subr.mxu0 0.0
    %3581 = vmatpush1.xpose.msra.mxu0 0.0
    %3582 = vmatprep.subr.mxu0 0.0
    %3583 = vmatpush1.xpose.msra.mxu0 0.0
    %3584 = vmatprep.subr.mxu0 0.0
    %3585 = vmatpush1.xpose.msra.mxu0 0.0
    %3586 = vmatprep.subr.mxu0 0.0
    %3587 = vmatpush1.xpose.msra.mxu0 0.0
    %3588 = vmatprep.subr.mxu0 0.0
    %3589 = vmatpush1.xpose.msra.mxu0 0.0
    %3590 = vmatprep.subr.mxu0 0.0
    %3591 = vmatpush1.xpose.msra.mxu0 0.0
    %3592 = vmatprep.subr.mxu0 0.0
    %3593 = vmatpush1.xpose.msra.mxu0 0.0
    %3594 = vmatprep.mubr.f32.mxu0 0.0
    %3595 = vmatmul.mubr.f32.gmra.mrb[0].mxu0 %v3525
    %v3596 = vpop.f32.mrb[0].mxu0
    %v3597 = vadd.f32 %v188, %v3596
    %v3598 = vpop.f32.mrb[0].mxu0
    %3599 = vdwg.mxu0
    %v3601 = vsel %vm1195, %v2717, 0
    %v3604 = vsel %vm1195, %v3043, 0
    %3606 = vmatprep.subr.mxu0 0.0
    %3607 = vmatpush1.xpose.msra.mxu0 %v3604
    %3608 = vmatprep.subr.mxu0 0.0
    %3609 = vmatpush1.xpose.msra.mxu0 0.0
    %3610 = vmatprep.subr.mxu0 0.0
    %3611 = vmatpush1.xpose.msra.mxu0 0.0
    %3612 = vmatprep.subr.mxu0 0.0
    %3613 = vmatpush1.xpose.msra.mxu0 0.0
    %3614 = vmatprep.subr.mxu0 0.0
    %3615 = vmatpush1.xpose.msra.mxu0 0.0
    %3616 = vmatprep.subr.mxu0 0.0
    %3617 = vmatpush1.xpose.msra.mxu0 0.0
    %3618 = vmatprep.subr.mxu0 0.0
    %3619 = vmatpush1.xpose.msra.mxu0 0.0
    %3620 = vmatprep.subr.mxu0 0.0
    %3621 = vmatpush1.xpose.msra.mxu0 0.0
    %3622 = vmatprep.subr.mxu0 0.0
    %3623 = vmatpush1.xpose.msra.mxu0 0.0
    %3624 = vmatprep.subr.mxu0 0.0
    %3625 = vmatpush1.xpose.msra.mxu0 0.0
    %3626 = vmatprep.subr.mxu0 0.0
    %3627 = vmatpush1.xpose.msra.mxu0 0.0
    %3628 = vmatprep.subr.mxu0 0.0
    %3629 = vmatpush1.xpose.msra.mxu0 0.0
    %3630 = vmatprep.subr.mxu0 0.0
    %3631 = vmatpush1.xpose.msra.mxu0 0.0
    %3632 = vmatprep.subr.mxu0 0.0
    %3633 = vmatpush1.xpose.msra.mxu0 0.0
    %3634 = vmatprep.subr.mxu0 0.0
    %3635 = vmatpush1.xpose.msra.mxu0 0.0
    %3636 = vmatprep.subr.mxu0 0.0
    %3637 = vmatpush1.xpose.msra.mxu0 0.0
    %3638 = vmatprep.subr.mxu0 0.0
    %3639 = vmatpush1.xpose.msra.mxu0 0.0
    %3640 = vmatprep.subr.mxu0 0.0
    %3641 = vmatpush1.xpose.msra.mxu0 0.0
    %3642 = vmatprep.subr.mxu0 0.0
    %3643 = vmatpush1.xpose.msra.mxu0 0.0
    %3644 = vmatprep.subr.mxu0 0.0
    %3645 = vmatpush1.xpose.msra.mxu0 0.0
    %3646 = vmatprep.subr.mxu0 0.0
    %3647 = vmatpush1.xpose.msra.mxu0 0.0
    %3648 = vmatprep.subr.mxu0 0.0
    %3649 = vmatpush1.xpose.msra.mxu0 0.0
    %3650 = vmatprep.subr.mxu0 0.0
    %3651 = vmatpush1.xpose.msra.mxu0 0.0
    %3652 = vmatprep.subr.mxu0 0.0
    %3653 = vmatpush1.xpose.msra.mxu0 0.0
    %3654 = vmatprep.subr.mxu0 0.0
    %3655 = vmatpush1.xpose.msra.mxu0 0.0
    %3656 = vmatprep.subr.mxu0 0.0
    %3657 = vmatpush1.xpose.msra.mxu0 0.0
    %3658 = vmatprep.subr.mxu0 0.0
    %3659 = vmatpush1.xpose.msra.mxu0 0.0
    %3660 = vmatprep.subr.mxu0 0.0
    %3661 = vmatpush1.xpose.msra.mxu0 0.0
    %3662 = vmatprep.subr.mxu0 0.0
    %3663 = vmatpush1.xpose.msra.mxu0 0.0
    %3664 = vmatprep.subr.mxu0 0.0
    %3665 = vmatpush1.xpose.msra.mxu0 0.0
    %3666 = vmatprep.subr.mxu0 0.0
    %3667 = vmatpush1.xpose.msra.mxu0 0.0
    %3668 = vmatprep.subr.mxu0 0.0
    %3669 = vmatpush1.xpose.msra.mxu0 0.0
    %3670 = vmatprep.mubr.f32.mxu0 0.0
    %3671 = vmatmul.mubr.f32.gmra.mrb[0].mxu0 %v3601
    %v3672 = vpop.f32.mrb[0].mxu0
    %v3673 = vadd.f32 %v188, %v3672
    %v3674 = vpop.f32.mrb[0].mxu0
    %3675 = vdwg.mxu0
    %v3676 = vsel %vm1195, %v3445, -inf
    %3677 = vmax.xlane.f32.xlu0 %v3676
    %v3678 = vpop.xlane.xlu0 %3677
    %v3679 = vsel %vm1195, %v3521, -inf
    %3680 = vmax.xlane.f32.xlu0 %v3679
    %v3681 = vpop.xlane.xlu0 %3680
    %v3682 = vsel %vm1195, %v3597, -inf
    %3683 = vmax.xlane.f32.xlu0 %v3682
    %v3684 = vpop.xlane.xlu0 %3683
    %v3685 = vsel %vm1195, %v3673, -inf
    %3686 = vmax.xlane.f32.xlu0 %v3685
    %v3687 = vpop.xlane.xlu0 %3686
    %v3688 = vsub.f32 %v3445, %v3678
    %v3689 = vsub.f32 %v3521, %v3681
    %v3690 = vsub.f32 %v3597, %v3684
    %v3691 = vsub.f32 %v3673, %v3687
    %v3692 = vmul.f32 %v3688, 1.442695
    %v3693 = vpow.pop %v3692
    %v3694 = vmul.f32 %v3689, 1.442695
    %v3695 = vpow.pop %v3694
    %v3696 = vmul.f32 %v3690, 1.442695
    %v3697 = vpow.pop %v3696
    %v3698 = vmul.f32 %v3691, 1.442695
    %v3699 = vpow.pop %v3698
    %v3700 = vsel %vm1195, %v3693, 0.0
    %3701 = vadd.xlane.f32.xlu0 %v3700
    %v3702 = vpop.xlane.xlu0 %3701
    %v3703 = vsel %vm1195, %v3695, 0.0
    %3704 = vadd.xlane.f32.xlu0 %v3703
    %v3705 = vpop.xlane.xlu0 %3704
    %v3706 = vsel %vm1195, %v3697, 0.0
    %3707 = vadd.xlane.f32.xlu0 %v3706
    %v3708 = vpop.xlane.xlu0 %3707
    %v3709 = vsel %vm1195, %v3699, 0.0
    %3710 = vadd.xlane.f32.xlu0 %v3709
    %v3711 = vpop.xlane.xlu0 %3710
    %v3712 = vrcp.pop %v3702
    %v3713 = vrcp.pop %v3705
    %v3714 = vrcp.pop %v3708
    %v3715 = vrcp.pop %v3711
    %v3716 = vmul.f32 %v3693, %v3712
    %v3717 = vmul.f32 %v3695, %v3713
    %v3718 = vmul.f32 %v3697, %v3714
    %v3719 = vmul.f32 %v3699, %v3715
    %v3721 = vsel %vm1195, %v3716, 0
    %3723 = vmatprep.subr.mxu0 0.0
    %3724 = vmatpush1.msra.mxu0 %v3159
    %3725 = vmatprep.subr.mxu0 0.0
    %3726 = vmatpush1.msra.mxu0 0.0
    %3727 = vmatprep.subr.mxu0 0.0
    %3728 = vmatpush1.msra.mxu0 0.0
    %3729 = vmatprep.subr.mxu0 0.0
    %3730 = vmatpush1.msra.mxu0 0.0
    %3731 = vmatprep.subr.mxu0 0.0
    %3732 = vmatpush1.msra.mxu0 0.0
    %3733 = vmatprep.subr.mxu0 0.0
    %3734 = vmatpush1.msra.mxu0 0.0
    %3735 = vmatprep.subr.mxu0 0.0
    %3736 = vmatpush1.msra.mxu0 0.0
    %3737 = vmatprep.subr.mxu0 0.0
    %3738 = vmatpush1.msra.mxu0 0.0
    %3739 = vmatprep.subr.mxu0 0.0
    %3740 = vmatpush1.msra.mxu0 0.0
    %3741 = vmatprep.subr.mxu0 0.0
    %3742 = vmatpush1.msra.mxu0 0.0
    %3743 = vmatprep.subr.mxu0 0.0
    %3744 = vmatpush1.msra.mxu0 0.0
    %3745 = vmatprep.subr.mxu0 0.0
    %3746 = vmatpush1.msra.mxu0 0.0
    %3747 = vmatprep.subr.mxu0 0.0
    %3748 = vmatpush1.msra.mxu0 0.0
    %3749 = vmatprep.subr.mxu0 0.0
    %3750 = vmatpush1.msra.mxu0 0.0
    %3751 = vmatprep.subr.mxu0 0.0
    %3752 = vmatpush1.msra.mxu0 0.0
    %3753 = vmatprep.subr.mxu0 0.0
    %3754 = vmatpush1.msra.mxu0 0.0
    %3755 = vmatprep.subr.mxu0 0.0
    %3756 = vmatpush1.msra.mxu0 0.0
    %3757 = vmatprep.subr.mxu0 0.0
    %3758 = vmatpush1.msra.mxu0 0.0
    %3759 = vmatprep.subr.mxu0 0.0
    %3760 = vmatpush1.msra.mxu0 0.0
    %3761 = vmatprep.subr.mxu0 0.0
    %3762 = vmatpush1.msra.mxu0 0.0
    %3763 = vmatprep.subr.mxu0 0.0
    %3764 = vmatpush1.msra.mxu0 0.0
    %3765 = vmatprep.subr.mxu0 0.0
    %3766 = vmatpush1.msra.mxu0 0.0
    %3767 = vmatprep.subr.mxu0 0.0
    %3768 = vmatpush1.msra.mxu0 0.0
    %3769 = vmatprep.subr.mxu0 0.0
    %3770 = vmatpush1.msra.mxu0 0.0
    %3771 = vmatprep.subr.mxu0 0.0
    %3772 = vmatpush1.msra.mxu0 0.0
    %3773 = vmatprep.subr.mxu0 0.0
    %3774 = vmatpush1.msra.mxu0 0.0
    %3775 = vmatprep.subr.mxu0 0.0
    %3776 = vmatpush1.msra.mxu0 0.0
    %3777 = vmatprep.subr.mxu0 0.0
    %3778 = vmatpush1.msra.mxu0 0.0
    %3779 = vmatprep.subr.mxu0 0.0
    %3780 = vmatpush1.msra.mxu0 0.0
    %3781 = vmatprep.subr.mxu0 0.0
    %3782 = vmatpush1.msra.mxu0 0.0
    %3783 = vmatprep.subr.mxu0 0.0
    %3784 = vmatpush1.msra.mxu0 0.0
    %3785 = vmatprep.subr.mxu0 0.0
    %3786 = vmatpush1.msra.mxu0 0.0
    %3787 = vmatprep.mubr.f32.mxu0 0.0
    %3788 = vmatmul.mubr.f32.gmra.mrb[0].mxu0 %v3721
    %v3789 = vpop.f32.mrb[0].mxu0
    %v3790 = vadd.f32 0.0, %v3789
    %v3791 = vpop.f32.mrb[0].mxu0
    %3792 = vdwg.mxu0
    %v3794 = vsel %vm1195, %v3717, 0
    %3796 = vmatprep.subr.mxu0 0.0
    %3797 = vmatpush1.msra.mxu0 %v3229
    %3798 = vmatprep.subr.mxu0 0.0
    %3799 = vmatpush1.msra.mxu0 0.0
    %3800 = vmatprep.subr.mxu0 0.0
    %3801 = vmatpush1.msra.mxu0 0.0
    %3802 = vmatprep.subr.mxu0 0.0
    %3803 = vmatpush1.msra.mxu0 0.0
    %3804 = vmatprep.subr.mxu0 0.0
    %3805 = vmatpush1.msra.mxu0 0.0
    %3806 = vmatprep.subr.mxu0 0.0
    %3807 = vmatpush1.msra.mxu0 0.0
    %3808 = vmatprep.subr.mxu0 0.0
    %3809 = vmatpush1.msra.mxu0 0.0
    %3810 = vmatprep.subr.mxu0 0.0
    %3811 = vmatpush1.msra.mxu0 0.0
    %3812 = vmatprep.subr.mxu0 0.0
    %3813 = vmatpush1.msra.mxu0 0.0
    %3814 = vmatprep.subr.mxu0 0.0
    %3815 = vmatpush1.msra.mxu0 0.0
    %3816 = vmatprep.subr.mxu0 0.0
    %3817 = vmatpush1.msra.mxu0 0.0
    %3818 = vmatprep.subr.mxu0 0.0
    %3819 = vmatpush1.msra.mxu0 0.0
    %3820 = vmatprep.subr.mxu0 0.0
    %3821 = vmatpush1.msra.mxu0 0.0
    %3822 = vmatprep.subr.mxu0 0.0
    %3823 = vmatpush1.msra.mxu0 0.0
    %3824 = vmatprep.subr.mxu0 0.0
    %3825 = vmatpush1.msra.mxu0 0.0
    %3826 = vmatprep.subr.mxu0 0.0
    %3827 = vmatpush1.msra.mxu0 0.0
    %3828 = vmatprep.subr.mxu0 0.0
    %3829 = vmatpush1.msra.mxu0 0.0
    %3830 = vmatprep.subr.mxu0 0.0
    %3831 = vmatpush1.msra.mxu0 0.0
    %3832 = vmatprep.subr.mxu0 0.0
    %3833 = vmatpush1.msra.mxu0 0.0
    %3834 = vmatprep.subr.mxu0 0.0
    %3835 = vmatpush1.msra.mxu0 0.0
    %3836 = vmatprep.subr.mxu0 0.0
    %3837 = vmatpush1.msra.mxu0 0.0
    %3838 = vmatprep.subr.mxu0 0.0
    %3839 = vmatpush1.msra.mxu0 0.0
    %3840 = vmatprep.subr.mxu0 0.0
    %3841 = vmatpush1.msra.mxu0 0.0
    %3842 = vmatprep.subr.mxu0 0.0
    %3843 = vmatpush1.msra.mxu0 0.0
    %3844 = vmatprep.subr.mxu0 0.0
    %3845 = vmatpush1.msra.mxu0 0.0
    %3846 = vmatprep.subr.mxu0 0.0
    %3847 = vmatpush1.msra.mxu0 0.0
    %3848 = vmatprep.subr.mxu0 0.0
    %3849 = vmatpush1.msra.mxu0 0.0
    %3850 = vmatprep.subr.mxu0 0.0
    %3851 = vmatpush1.msra.mxu0 0.0
    %3852 = vmatprep.subr.mxu0 0.0
    %3853 = vmatpush1.msra.mxu0 0.0
    %3854 = vmatprep.subr.mxu0 0.0
    %3855 = vmatpush1.msra.mxu0 0.0
    %3856 = vmatprep.subr.mxu0 0.0
    %3857 = vmatpush1.msra.mxu0 0.0
    %3858 = vmatprep.subr.mxu0 0.0
    %3859 = vmatpush1.msra.mxu0 0.0
    %3860 = vmatprep.mubr.f32.mxu0 0.0
    %3861 = vmatmul.mubr.f32.gmra.mrb[0].mxu0 %v3794
    %v3862 = vpop.f32.mrb[0].mxu0
    %v3863 = vadd.f32 0.0, %v3862
    %v3864 = vpop.f32.mrb[0].mxu0
    %3865 = vdwg.mxu0
    %v3867 = vsel %vm1195, %v3718, 0
    %3869 = vmatprep.subr.mxu0 0.0
    %3870 = vmatpush1.msra.mxu0 %v3299
    %3871 = vmatprep.subr.mxu0 0.0
    %3872 = vmatpush1.msra.mxu0 0.0
    %3873 = vmatprep.subr.mxu0 0.0
    %3874 = vmatpush1.msra.mxu0 0.0
    %3875 = vmatprep.subr.mxu0 0.0
    %3876 = vmatpush1.msra.mxu0 0.0
    %3877 = vmatprep.subr.mxu0 0.0
    %3878 = vmatpush1.msra.mxu0 0.0
    %3879 = vmatprep.subr.mxu0 0.0
    %3880 = vmatpush1.msra.mxu0 0.0
    %3881 = vmatprep.subr.mxu0 0.0
    %3882 = vmatpush1.msra.mxu0 0.0
    %3883 = vmatprep.subr.mxu0 0.0
    %3884 = vmatpush1.msra.mxu0 0.0
    %3885 = vmatprep.subr.mxu0 0.0
    %3886 = vmatpush1.msra.mxu0 0.0
    %3887 = vmatprep.subr.mxu0 0.0
    %3888 = vmatpush1.msra.mxu0 0.0
    %3889 = vmatprep.subr.mxu0 0.0
    %3890 = vmatpush1.msra.mxu0 0.0
    %3891 = vmatprep.subr.mxu0 0.0
    %3892 = vmatpush1.msra.mxu0 0.0
    %3893 = vmatprep.subr.mxu0 0.0
    %3894 = vmatpush1.msra.mxu0 0.0
    %3895 = vmatprep.subr.mxu0 0.0
    %3896 = vmatpush1.msra.mxu0 0.0
    %3897 = vmatprep.subr.mxu0 0.0
    %3898 = vmatpush1.msra.mxu0 0.0
    %3899 = vmatprep.subr.mxu0 0.0
    %3900 = vmatpush1.msra.mxu0 0.0
    %3901 = vmatprep.subr.mxu0 0.0
    %3902 = vmatpush1.msra.mxu0 0.0
    %3903 = vmatprep.subr.mxu0 0.0
    %3904 = vmatpush1.msra.mxu0 0.0
    %3905 = vmatprep.subr.mxu0 0.0
    %3906 = vmatpush1.msra.mxu0 0.0
    %3907 = vmatprep.subr.mxu0 0.0
    %3908 = vmatpush1.msra.mxu0 0.0
    %3909 = vmatprep.subr.mxu0 0.0
    %3910 = vmatpush1.msra.mxu0 0.0
    %3911 = vmatprep.subr.mxu0 0.0
    %3912 = vmatpush1.msra.mxu0 0.0
    %3913 = vmatprep.subr.mxu0 0.0
    %3914 = vmatpush1.msra.mxu0 0.0
    %3915 = vmatprep.subr.mxu0 0.0
    %3916 = vmatpush1.msra.mxu0 0.0
    %3917 = vmatprep.subr.mxu0 0.0
    %3918 = vmatpush1.msra.mxu0 0.0
    %3919 = vmatprep.subr.mxu0 0.0
    %3920 = vmatpush1.msra.mxu0 0.0
    %3921 = vmatprep.subr.mxu0 0.0
    %3922 = vmatpush1.msra.mxu0 0.0
    %3923 = vmatprep.subr.mxu0 0.0
    %3924 = vmatpush1.msra.mxu0 0.0
    %3925 = vmatprep.subr.mxu0 0.0
    %3926 = vmatpush1.msra.mxu0 0.0
    %3927 = vmatprep.subr.mxu0 0.0
    %3928 = vmatpush1.msra.mxu0 0.0
    %3929 = vmatprep.subr.mxu0 0.0
    %3930 = vmatpush1.msra.mxu0 0.0
    %3931 = vmatprep.subr.mxu0 0.0
    %3932 = vmatpush1.msra.mxu0 0.0
    %3933 = vmatprep.mubr.f32.mxu0 0.0
    %3934 = vmatmul.mubr.f32.gmra.mrb[0].mxu0 %v3867
    %v3935 = vpop.f32.mrb[0].mxu0
    %v3936 = vadd.f32 0.0, %v3935
    %v3937 = vpop.f32.mrb[0].mxu0
    %3938 = vdwg.mxu0
    %v3940 = vsel %vm1195, %v3719, 0
    %3942 = vmatprep.subr.mxu0 0.0
    %3943 = vmatpush1.msra.mxu0 %v3369
    %3944 = vmatprep.subr.mxu0 0.0
    %3945 = vmatpush1.msra.mxu0 0.0
    %3946 = vmatprep.subr.mxu0 0.0
    %3947 = vmatpush1.msra.mxu0 0.0
    %3948 = vmatprep.subr.mxu0 0.0
    %3949 = vmatpush1.msra.mxu0 0.0
    %3950 = vmatprep.subr.mxu0 0.0
    %3951 = vmatpush1.msra.mxu0 0.0
    %3952 = vmatprep.subr.mxu0 0.0
    %3953 = vmatpush1.msra.mxu0 0.0
    %3954 = vmatprep.subr.mxu0 0.0
    %3955 = vmatpush1.msra.mxu0 0.0
    %3956 = vmatprep.subr.mxu0 0.0
    %3957 = vmatpush1.msra.mxu0 0.0
    %3958 = vmatprep.subr.mxu0 0.0
    %3959 = vmatpush1.msra.mxu0 0.0
    %3960 = vmatprep.subr.mxu0 0.0
    %3961 = vmatpush1.msra.mxu0 0.0
    %3962 = vmatprep.subr.mxu0 0.0
    %3963 = vmatpush1.msra.mxu0 0.0
    %3964 = vmatprep.subr.mxu0 0.0
    %3965 = vmatpush1.msra.mxu0 0.0
    %3966 = vmatprep.subr.mxu0 0.0
    %3967 = vmatpush1.msra.mxu0 0.0
    %3968 = vmatprep.subr.mxu0 0.0
    %3969 = vmatpush1.msra.mxu0 0.0
    %3970 = vmatprep.subr.mxu0 0.0
    %3971 = vmatpush1.msra.mxu0 0.0
    %3972 = vmatprep.subr.mxu0 0.0
    %3973 = vmatpush1.msra.mxu0 0.0
    %3974 = vmatprep.subr.mxu0 0.0
    %3975 = vmatpush1.msra.mxu0 0.0
    %3976 = vmatprep.subr.mxu0 0.0
    %3977 = vmatpush1.msra.mxu0 0.0
    %3978 = vmatprep.subr.mxu0 0.0
    %3979 = vmatpush1.msra.mxu0 0.0
    %3980 = vmatprep.subr.mxu0 0.0
    %3981 = vmatpush1.msra.mxu0 0.0
    %3982 = vmatprep.subr.mxu0 0.0
    %3983 = vmatpush1.msra.mxu0 0.0
    %3984 = vmatprep.subr.mxu0 0.0
    %3985 = vmatpush1.msra.mxu0 0.0
    %3986 = vmatprep.subr.mxu0 0.0
    %3987 = vmatpush1.msra.mxu0 0.0
    %3988 = vmatprep.subr.mxu0 0.0
    %3989 = vmatpush1.msra.mxu0 0.0
    %3990 = vmatprep.subr.mxu0 0.0
    %3991 = vmatpush1.msra.mxu0 0.0
    %3992 = vmatprep.subr.mxu0 0.0
    %3993 = vmatpush1.msra.mxu0 0.0
    %3994 = vmatprep.subr.mxu0 0.0
    %3995 = vmatpush1.msra.mxu0 0.0
    %3996 = vmatprep.subr.mxu0 0.0
    %3997 = vmatpush1.msra.mxu0 0.0
    %3998 = vmatprep.subr.mxu0 0.0
    %3999 = vmatpush1.msra.mxu0 0.0
    %4000 = vmatprep.subr.mxu0 0.0
    %4001 = vmatpush1.msra.mxu0 0.0
    %4002 = vmatprep.subr.mxu0 0.0
    %4003 = vmatpush1.msra.mxu0 0.0
    %4004 = vmatprep.subr.mxu0 0.0
    %4005 = vmatpush1.msra.mxu0 0.0
    %4006 = vmatprep.mubr.f32.mxu0 0.0
    %4007 = vmatmul.mubr.f32.gmra.mrb[0].mxu0 %v3940
    %v4008 = vpop.f32.mrb[0].mxu0
    %v4009 = vadd.f32 0.0, %v4008
    %v4010 = vpop.f32.mrb[0].mxu0
    %4011 = vdwg.mxu0
    %s4012 = scalar_lea.vmem %s13, 32
    %v4013 = vld [vmem:[%s4012] sm:$0xff]
    %v4014 = vld [vmem:[%s4012 + $0x8] sm:$0xff]
    %v4015 = vld [vmem:[%s4012 + $0x10] sm:$0xff]
    %v4016 = vld [vmem:[%s4012 + $0x18] sm:$0xff]
    %v4018 = vsel %vm1195, %v3790, 0
    %4020 = vmatprep.subr.mxu0 0.0
    %4021 = vmatpush1.msra.mxu0 %v4013
    %4022 = vmatprep.subr.mxu0 0.0
    %4023 = vmatpush1.msra.mxu0 0.0
    %4024 = vmatprep.subr.mxu0 0.0
    %4025 = vmatpush1.msra.mxu0 0.0
    %4026 = vmatprep.subr.mxu0 0.0
    %4027 = vmatpush1.msra.mxu0 0.0
    %4028 = vmatprep.subr.mxu0 0.0
    %4029 = vmatpush1.msra.mxu0 0.0
    %4030 = vmatprep.subr.mxu0 0.0
    %4031 = vmatpush1.msra.mxu0 0.0
    %4032 = vmatprep.subr.mxu0 0.0
    %4033 = vmatpush1.msra.mxu0 0.0
    %4034 = vmatprep.subr.mxu0 0.0
    %4035 = vmatpush1.msra.mxu0 0.0
    %4036 = vmatprep.subr.mxu0 0.0
    %4037 = vmatpush1.msra.mxu0 0.0
    %4038 = vmatprep.subr.mxu0 0.0
    %4039 = vmatpush1.msra.mxu0 0.0
    %4040 = vmatprep.subr.mxu0 0.0
    %4041 = vmatpush1.msra.mxu0 0.0
    %4042 = vmatprep.subr.mxu0 0.0
    %4043 = vmatpush1.msra.mxu0 0.0
    %4044 = vmatprep.subr.mxu0 0.0
    %4045 = vmatpush1.msra.mxu0 0.0
    %4046 = vmatprep.subr.mxu0 0.0
    %4047 = vmatpush1.msra.mxu0 0.0
    %4048 = vmatprep.subr.mxu0 0.0
    %4049 = vmatpush1.msra.mxu0 0.0
    %4050 = vmatprep.subr.mxu0 0.0
    %4051 = vmatpush1.msra.mxu0 0.0
    %4052 = vmatprep.subr.mxu0 0.0
    %4053 = vmatpush1.msra.mxu0 0.0
    %4054 = vmatprep.subr.mxu0 0.0
    %4055 = vmatpush1.msra.mxu0 0.0
    %4056 = vmatprep.subr.mxu0 0.0
    %4057 = vmatpush1.msra.mxu0 0.0
    %4058 = vmatprep.subr.mxu0 0.0
    %4059 = vmatpush1.msra.mxu0 0.0
    %4060 = vmatprep.subr.mxu0 0.0
    %4061 = vmatpush1.msra.mxu0 0.0
    %4062 = vmatprep.subr.mxu0 0.0
    %4063 = vmatpush1.msra.mxu0 0.0
    %4064 = vmatprep.subr.mxu0 0.0
    %4065 = vmatpush1.msra.mxu0 0.0
    %4066 = vmatprep.subr.mxu0 0.0
    %4067 = vmatpush1.msra.mxu0 0.0
    %4068 = vmatprep.subr.mxu0 0.0
    %4069 = vmatpush1.msra.mxu0 0.0
    %4070 = vmatprep.subr.mxu0 0.0
    %4071 = vmatpush1.msra.mxu0 0.0
    %4072 = vmatprep.subr.mxu0 0.0
    %4073 = vmatpush1.msra.mxu0 0.0
    %4074 = vmatprep.subr.mxu0 0.0
    %4075 = vmatpush1.msra.mxu0 0.0
    %4076 = vmatprep.subr.mxu0 0.0
    %4077 = vmatpush1.msra.mxu0 0.0
    %4078 = vmatprep.subr.mxu0 0.0
    %4079 = vmatpush1.msra.mxu0 0.0
    %4080 = vmatprep.subr.mxu0 0.0
    %4081 = vmatpush1.msra.mxu0 0.0
    %4082 = vmatprep.subr.mxu0 0.0
    %4083 = vmatpush1.msra.mxu0 0.0
    %4084 = vmatprep.mubr.f32.mxu0 0.0
    %4085 = vmatmul.mubr.f32.gmra.mrb[0].mxu0 %v4018
    %v4086 = vpop.f32.mrb[0].mxu0
    %v4087 = vadd.f32 0.0, %v4086
    %v4088 = vpop.f32.mrb[0].mxu0
    %4089 = vdwg.mxu0
    %v4091 = vsel %vm1195, %v3863, 0
    %4093 = vmatprep.subr.mxu0 0.0
    %4094 = vmatpush1.msra.mxu0 %v4014
    %4095 = vmatprep.subr.mxu0 0.0
    %4096 = vmatpush1.msra.mxu0 0.0
    %4097 = vmatprep.subr.mxu0 0.0
    %4098 = vmatpush1.msra.mxu0 0.0
    %4099 = vmatprep.subr.mxu0 0.0
    %4100 = vmatpush1.msra.mxu0 0.0
    %4101 = vmatprep.subr.mxu0 0.0
    %4102 = vmatpush1.msra.mxu0 0.0
    %4103 = vmatprep.subr.mxu0 0.0
    %4104 = vmatpush1.msra.mxu0 0.0
    %4105 = vmatprep.subr.mxu0 0.0
    %4106 = vmatpush1.msra.mxu0 0.0
    %4107 = vmatprep.subr.mxu0 0.0
    %4108 = vmatpush1.msra.mxu0 0.0
    %4109 = vmatprep.subr.mxu0 0.0
    %4110 = vmatpush1.msra.mxu0 0.0
    %4111 = vmatprep.subr.mxu0 0.0
    %4112 = vmatpush1.msra.mxu0 0.0
    %4113 = vmatprep.subr.mxu0 0.0
    %4114 = vmatpush1.msra.mxu0 0.0
    %4115 = vmatprep.subr.mxu0 0.0
    %4116 = vmatpush1.msra.mxu0 0.0
    %4117 = vmatprep.subr.mxu0 0.0
    %4118 = vmatpush1.msra.mxu0 0.0
    %4119 = vmatprep.subr.mxu0 0.0
    %4120 = vmatpush1.msra.mxu0 0.0
    %4121 = vmatprep.subr.mxu0 0.0
    %4122 = vmatpush1.msra.mxu0 0.0
    %4123 = vmatprep.subr.mxu0 0.0
    %4124 = vmatpush1.msra.mxu0 0.0
    %4125 = vmatprep.subr.mxu0 0.0
    %4126 = vmatpush1.msra.mxu0 0.0
    %4127 = vmatprep.subr.mxu0 0.0
    %4128 = vmatpush1.msra.mxu0 0.0
    %4129 = vmatprep.subr.mxu0 0.0
    %4130 = vmatpush1.msra.mxu0 0.0
    %4131 = vmatprep.subr.mxu0 0.0
    %4132 = vmatpush1.msra.mxu0 0.0
    %4133 = vmatprep.subr.mxu0 0.0
    %4134 = vmatpush1.msra.mxu0 0.0
    %4135 = vmatprep.subr.mxu0 0.0
    %4136 = vmatpush1.msra.mxu0 0.0
    %4137 = vmatprep.subr.mxu0 0.0
    %4138 = vmatpush1.msra.mxu0 0.0
    %4139 = vmatprep.subr.mxu0 0.0
    %4140 = vmatpush1.msra.mxu0 0.0
    %4141 = vmatprep.subr.mxu0 0.0
    %4142 = vmatpush1.msra.mxu0 0.0
    %4143 = vmatprep.subr.mxu0 0.0
    %4144 = vmatpush1.msra.mxu0 0.0
    %4145 = vmatprep.subr.mxu0 0.0
    %4146 = vmatpush1.msra.mxu0 0.0
    %4147 = vmatprep.subr.mxu0 0.0
    %4148 = vmatpush1.msra.mxu0 0.0
    %4149 = vmatprep.subr.mxu0 0.0
    %4150 = vmatpush1.msra.mxu0 0.0
    %4151 = vmatprep.subr.mxu0 0.0
    %4152 = vmatpush1.msra.mxu0 0.0
    %4153 = vmatprep.subr.mxu0 0.0
    %4154 = vmatpush1.msra.mxu0 0.0
    %4155 = vmatprep.subr.mxu0 0.0
    %4156 = vmatpush1.msra.mxu0 0.0
    %4157 = vmatprep.mubr.f32.mxu0 0.0
    %4158 = vmatmul.mubr.f32.gmra.mrb[0].mxu0 %v4091
    %v4159 = vpop.f32.mrb[0].mxu0
    %v4160 = vadd.f32 0.0, %v4159
    %v4161 = vpop.f32.mrb[0].mxu0
    %4162 = vdwg.mxu0
    %v4164 = vsel %vm1195, %v3936, 0
    %4166 = vmatprep.subr.mxu0 0.0
    %4167 = vmatpush1.msra.mxu0 %v4015
    %4168 = vmatprep.subr.mxu0 0.0
    %4169 = vmatpush1.msra.mxu0 0.0
    %4170 = vmatprep.subr.mxu0 0.0
    %4171 = vmatpush1.msra.mxu0 0.0
    %4172 = vmatprep.subr.mxu0 0.0
    %4173 = vmatpush1.msra.mxu0 0.0
    %4174 = vmatprep.subr.mxu0 0.0
    %4175 = vmatpush1.msra.mxu0 0.0
    %4176 = vmatprep.subr.mxu0 0.0
    %4177 = vmatpush1.msra.mxu0 0.0
    %4178 = vmatprep.subr.mxu0 0.0
    %4179 = vmatpush1.msra.mxu0 0.0
    %4180 = vmatprep.subr.mxu0 0.0
    %4181 = vmatpush1.msra.mxu0 0.0
    %4182 = vmatprep.subr.mxu0 0.0
    %4183 = vmatpush1.msra.mxu0 0.0
    %4184 = vmatprep.subr.mxu0 0.0
    %4185 = vmatpush1.msra.mxu0 0.0
    %4186 = vmatprep.subr.mxu0 0.0
    %4187 = vmatpush1.msra.mxu0 0.0
    %4188 = vmatprep.subr.mxu0 0.0
    %4189 = vmatpush1.msra.mxu0 0.0
    %4190 = vmatprep.subr.mxu0 0.0
    %4191 = vmatpush1.msra.mxu0 0.0
    %4192 = vmatprep.subr.mxu0 0.0
    %4193 = vmatpush1.msra.mxu0 0.0
    %4194 = vmatprep.subr.mxu0 0.0
    %4195 = vmatpush1.msra.mxu0 0.0
    %4196 = vmatprep.subr.mxu0 0.0
    %4197 = vmatpush1.msra.mxu0 0.0
    %4198 = vmatprep.subr.mxu0 0.0
    %4199 = vmatpush1.msra.mxu0 0.0
    %4200 = vmatprep.subr.mxu0 0.0
    %4201 = vmatpush1.msra.mxu0 0.0
    %4202 = vmatprep.subr.mxu0 0.0
    %4203 = vmatpush1.msra.mxu0 0.0
    %4204 = vmatprep.subr.mxu0 0.0
    %4205 = vmatpush1.msra.mxu0 0.0
    %4206 = vmatprep.subr.mxu0 0.0
    %4207 = vmatpush1.msra.mxu0 0.0
    %4208 = vmatprep.subr.mxu0 0.0
    %4209 = vmatpush1.msra.mxu0 0.0
    %4210 = vmatprep.subr.mxu0 0.0
    %4211 = vmatpush1.msra.mxu0 0.0
    %4212 = vmatprep.subr.mxu0 0.0
    %4213 = vmatpush1.msra.mxu0 0.0
    %4214 = vmatprep.subr.mxu0 0.0
    %4215 = vmatpush1.msra.mxu0 0.0
    %4216 = vmatprep.subr.mxu0 0.0
    %4217 = vmatpush1.msra.mxu0 0.0
    %4218 = vmatprep.subr.mxu0 0.0
    %4219 = vmatpush1.msra.mxu0 0.0
    %4220 = vmatprep.subr.mxu0 0.0
    %4221 = vmatpush1.msra.mxu0 0.0
    %4222 = vmatprep.subr.mxu0 0.0
    %4223 = vmatpush1.msra.mxu0 0.0
    %4224 = vmatprep.subr.mxu0 0.0
    %4225 = vmatpush1.msra.mxu0 0.0
    %4226 = vmatprep.subr.mxu0 0.0
    %4227 = vmatpush1.msra.mxu0 0.0
    %4228 = vmatprep.subr.mxu0 0.0
    %4229 = vmatpush1.msra.mxu0 0.0
    %4230 = vmatprep.mubr.f32.mxu0 0.0
    %4231 = vmatmul.mubr.f32.gmra.mrb[0].mxu0 %v4164
    %v4232 = vpop.f32.mrb[0].mxu0
    %v4233 = vadd.f32 0.0, %v4232
    %v4234 = vpop.f32.mrb[0].mxu0
    %4235 = vdwg.mxu0
    %v4237 = vsel %vm1195, %v4009, 0
    %4239 = vmatprep.subr.mxu0 0.0
    %4240 = vmatpush1.msra.mxu0 %v4016
    %4241 = vmatprep.subr.mxu0 0.0
    %4242 = vmatpush1.msra.mxu0 0.0
    %4243 = vmatprep.subr.mxu0 0.0
    %4244 = vmatpush1.msra.mxu0 0.0
    %4245 = vmatprep.subr.mxu0 0.0
    %4246 = vmatpush1.msra.mxu0 0.0
    %4247 = vmatprep.subr.mxu0 0.0
    %4248 = vmatpush1.msra.mxu0 0.0
    %4249 = vmatprep.subr.mxu0 0.0
    %4250 = vmatpush1.msra.mxu0 0.0
    %4251 = vmatprep.subr.mxu0 0.0
    %4252 = vmatpush1.msra.mxu0 0.0
    %4253 = vmatprep.subr.mxu0 0.0
    %4254 = vmatpush1.msra.mxu0 0.0
    %4255 = vmatprep.subr.mxu0 0.0
    %4256 = vmatpush1.msra.mxu0 0.0
    %4257 = vmatprep.subr.mxu0 0.0
    %4258 = vmatpush1.msra.mxu0 0.0
    %4259 = vmatprep.subr.mxu0 0.0
    %4260 = vmatpush1.msra.mxu0 0.0
    %4261 = vmatprep.subr.mxu0 0.0
    %4262 = vmatpush1.msra.mxu0 0.0
    %4263 = vmatprep.subr.mxu0 0.0
    %4264 = vmatpush1.msra.mxu0 0.0
    %4265 = vmatprep.subr.mxu0 0.0
    %4266 = vmatpush1.msra.mxu0 0.0
    %4267 = vmatprep.subr.mxu0 0.0
    %4268 = vmatpush1.msra.mxu0 0.0
    %4269 = vmatprep.subr.mxu0 0.0
    %4270 = vmatpush1.msra.mxu0 0.0
    %4271 = vmatprep.subr.mxu0 0.0
    %4272 = vmatpush1.msra.mxu0 0.0
    %4273 = vmatprep.subr.mxu0 0.0
    %4274 = vmatpush1.msra.mxu0 0.0
    %4275 = vmatprep.subr.mxu0 0.0
    %4276 = vmatpush1.msra.mxu0 0.0
    %4277 = vmatprep.subr.mxu0 0.0
    %4278 = vmatpush1.msra.mxu0 0.0
    %4279 = vmatprep.subr.mxu0 0.0
    %4280 = vmatpush1.msra.mxu0 0.0
    %4281 = vmatprep.subr.mxu0 0.0
    %4282 = vmatpush1.msra.mxu0 0.0
    %4283 = vmatprep.subr.mxu0 0.0
    %4284 = vmatpush1.msra.mxu0 0.0
    %4285 = vmatprep.subr.mxu0 0.0
    %4286 = vmatpush1.msra.mxu0 0.0
    %4287 = vmatprep.subr.mxu0 0.0
    %4288 = vmatpush1.msra.mxu0 0.0
    %4289 = vmatprep.subr.mxu0 0.0
    %4290 = vmatpush1.msra.mxu0 0.0
    %4291 = vmatprep.subr.mxu0 0.0
    %4292 = vmatpush1.msra.mxu0 0.0
    %4293 = vmatprep.subr.mxu0 0.0
    %4294 = vmatpush1.msra.mxu0 0.0
    %4295 = vmatprep.subr.mxu0 0.0
    %4296 = vmatpush1.msra.mxu0 0.0
    %4297 = vmatprep.subr.mxu0 0.0
    %4298 = vmatpush1.msra.mxu0 0.0
    %4299 = vmatprep.subr.mxu0 0.0
    %4300 = vmatpush1.msra.mxu0 0.0
    %4301 = vmatprep.subr.mxu0 0.0
    %4302 = vmatpush1.msra.mxu0 0.0
    %4303 = vmatprep.mubr.f32.mxu0 0.0
    %4304 = vmatmul.mubr.f32.gmra.mrb[0].mxu0 %v4237
    %v4305 = vpop.f32.mrb[0].mxu0
    %v4306 = vadd.f32 0.0, %v4305
    %v4307 = vpop.f32.mrb[0].mxu0
    %4308 = vdwg.mxu0
    %v4309 = vsel %vm191, %v4087, 0.0
    %v4310 = vsel %vm191, %v4160, 0.0
    %v4311 = vadd.f32 %v4309, %v4310
    %v4312 = vsel %vm191, %v4233, 0.0
    %v4313 = vadd.f32 %v4311, %v4312
    %v4314 = vsel %vm191, %v4306, 0.0
    %v4315 = vadd.f32 %v4313, %v4314
    %v4316 = vadd.f32 %v2359, %v4315
    %s4317 = scalar_lea.vmem %s14, 1
    %v4318 = vld [vmem:[%s4317] sm:$0x1]
    %v4320 = vlaneseq
    %v4321 = vshrl.u32 %v4320, 7
    %v4322 = vsub.s32 0, %v4321
    %v4323 = vrot.slane %v4318, %v4322
    %v4325 = vadd.f32 %v4316, %v4323
    %s4326 = scalar_lea.vmem %s15, 1
    %v4327 = vld [vmem:[%s4326] sm:$0x1]
    %s4328 = scalar_lea.vmem %s16, 1
    %v4329 = vld [vmem:[%s4328] sm:$0x1]
    %v4330 = vsel %vm191, %v4325, 0.0
    %4331 = vadd.xlane.f32.xlu0 %v4330
    %v4332 = vpop.xlane.xlu0 %4331
    %v4333 = vmul.f32 %v4332, %v195
    %v4334 = vsub.f32 %v4325, %v4333
    %v4335 = vmul.f32 %v4334, %v4334
    %v4336 = vsel %vm191, %v4335, 0.0
    %4337 = vadd.xlane.f32.xlu0 %v4336
    %v4338 = vpop.xlane.xlu0 %4337
    %v4339 = vmul.f32 %v4338, %v195
    %v4340 = vadd.f32 %v4339, 1e-06
    %v4341 = vrsqrt.pop %v4340
    %v4342 = vmul.f32 %v4334, %v4341
    %v4344 = vlaneseq
    %v4345 = vshrl.u32 %v4344, 7
    %v4346 = vsub.s32 0, %v4345
    %v4347 = vrot.slane %v4327, %v4346
    %v4349 = vmul.f32 %v4342, %v4347
    %v4351 = vlaneseq
    %v4352 = vshrl.u32 %v4351, 7
    %v4353 = vsub.s32 0, %v4352
    %v4354 = vrot.slane %v4329, %v4353
    %v4356 = vadd.f32 %v4349, %v4354
    %s4357 = scalar_lea.vmem %s17, 32
    %v4358 = vld [vmem:[%s4357] sm:$0xff]
    %v4359 = vld [vmem:[%s4357 + $0x8] sm:$0xff]
    %v4360 = vld [vmem:[%s4357 + $0x10] sm:$0xff]
    %v4361 = vld [vmem:[%s4357 + $0x18] sm:$0xff]
    %s4362 = scalar_lea.vmem %s18, 1
    %v4363 = vld [vmem:[%s4362] sm:$0x1]
    %v4365 = vlaneseq
    %v4366 = vshrl.u32 %v4365, 7
    %v4367 = vsub.s32 0, %v4366
    %v4368 = vrot.slane %v4363, %v4367
    %v4371 = vsel %vm191, %v4356, 0
    %4373 = vmatprep.subr.mxu0 0.0
    %4374 = vmatpush1.msra.mxu0 %v4358
    %4375 = vmatprep.subr.mxu0 0.0
    %4376 = vmatpush1.msra.mxu0 %v4359
    %4377 = vmatprep.subr.mxu0 0.0
    %4378 = vmatpush1.msra.mxu0 %v4360
    %4379 = vmatprep.subr.mxu0 0.0
    %4380 = vmatpush1.msra.mxu0 %v4361
    %4381 = vmatprep.subr.mxu0 0.0
    %4382 = vmatpush1.msra.mxu0 0.0
    %4383 = vmatprep.subr.mxu0 0.0
    %4384 = vmatpush1.msra.mxu0 0.0
    %4385 = vmatprep.subr.mxu0 0.0
    %4386 = vmatpush1.msra.mxu0 0.0
    %4387 = vmatprep.subr.mxu0 0.0
    %4388 = vmatpush1.msra.mxu0 0.0
    %4389 = vmatprep.subr.mxu0 0.0
    %4390 = vmatpush1.msra.mxu0 0.0
    %4391 = vmatprep.subr.mxu0 0.0
    %4392 = vmatpush1.msra.mxu0 0.0
    %4393 = vmatprep.subr.mxu0 0.0
    %4394 = vmatpush1.msra.mxu0 0.0
    %4395 = vmatprep.subr.mxu0 0.0
    %4396 = vmatpush1.msra.mxu0 0.0
    %4397 = vmatprep.subr.mxu0 0.0
    %4398 = vmatpush1.msra.mxu0 0.0
    %4399 = vmatprep.subr.mxu0 0.0
    %4400 = vmatpush1.msra.mxu0 0.0
    %4401 = vmatprep.subr.mxu0 0.0
    %4402 = vmatpush1.msra.mxu0 0.0
    %4403 = vmatprep.subr.mxu0 0.0
    %4404 = vmatpush1.msra.mxu0 0.0
    %4405 = vmatprep.subr.mxu0 0.0
    %4406 = vmatpush1.msra.mxu0 0.0
    %4407 = vmatprep.subr.mxu0 0.0
    %4408 = vmatpush1.msra.mxu0 0.0
    %4409 = vmatprep.subr.mxu0 0.0
    %4410 = vmatpush1.msra.mxu0 0.0
    %4411 = vmatprep.subr.mxu0 0.0
    %4412 = vmatpush1.msra.mxu0 0.0
    %4413 = vmatprep.subr.mxu0 0.0
    %4414 = vmatpush1.msra.mxu0 0.0
    %4415 = vmatprep.subr.mxu0 0.0
    %4416 = vmatpush1.msra.mxu0 0.0
    %4417 = vmatprep.subr.mxu0 0.0
    %4418 = vmatpush1.msra.mxu0 0.0
    %4419 = vmatprep.subr.mxu0 0.0
    %4420 = vmatpush1.msra.mxu0 0.0
    %4421 = vmatprep.subr.mxu0 0.0
    %4422 = vmatpush1.msra.mxu0 0.0
    %4423 = vmatprep.subr.mxu0 0.0
    %4424 = vmatpush1.msra.mxu0 0.0
    %4425 = vmatprep.subr.mxu0 0.0
    %4426 = vmatpush1.msra.mxu0 0.0
    %4427 = vmatprep.subr.mxu0 0.0
    %4428 = vmatpush1.msra.mxu0 0.0
    %4429 = vmatprep.subr.mxu0 0.0
    %4430 = vmatpush1.msra.mxu0 0.0
    %4431 = vmatprep.subr.mxu0 0.0
    %4432 = vmatpush1.msra.mxu0 0.0
    %4433 = vmatprep.subr.mxu0 0.0
    %4434 = vmatpush1.msra.mxu0 0.0
    %4435 = vmatprep.subr.mxu0 0.0
    %4436 = vmatpush1.msra.mxu0 0.0
    %4437 = vmatprep.mubr.f32.mxu0 0.0
    %4438 = vmatmul.mubr.f32.gmra.mrb[0].mxu0 %v4371
    %v4439 = vpop.f32.mrb[0].mxu0
    %v4440 = vadd.f32 %v4368, %v4439
    %v4441 = vpop.f32.mrb[0].mxu0
    %4442 = vdwg.mxu0
    %v4443 = vmul.f32 %v4440, 0.5
    %v4444 = vmul.f32 %v4440, 0.044715
    %v4445 = vmul.f32 %v4444, %v4440
    %v4446 = vmul.f32 %v4445, %v4440
    %v4447 = vadd.f32 %v4440, %v4446
    %v4448 = vmul.f32 %v4447, 0.7978846
    %v4449 = vtanh.pop %v4448
    %v4450 = vadd.f32 %v4449, 1.0
    %v4451 = vmul.f32 %v4443, %v4450
    %s4452 = scalar_lea.vmem %s19, 64
    %v4453 = vld [vmem:[%s4452] sm:$0xff]
    %v4454 = vld [vmem:[%s4452 + $0x8] sm:$0xff]
    %v4455 = vld [vmem:[%s4452 + $0x10] sm:$0xff]
    %v4456 = vld [vmem:[%s4452 + $0x18] sm:$0xff]
    %v4457 = vld [vmem:[%s4452 + $0x20] sm:$0xff]
    %v4458 = vld [vmem:[%s4452 + $0x28] sm:$0xff]
    %v4459 = vld [vmem:[%s4452 + $0x30] sm:$0xff]
    %v4460 = vld [vmem:[%s4452 + $0x38] sm:$0xff]
    %s4461 = scalar_lea.vmem %s20, 1
    %v4462 = vld [vmem:[%s4461] sm:$0x1]
    %v4464 = vlaneseq
    %v4465 = vshrl.u32 %v4464, 7
    %v4466 = vsub.s32 0, %v4465
    %v4467 = vrot.slane %v4462, %v4466
    %v4470 = vsel %vm2285, %v4451, 0
    %4472 = vmatprep.subr.mxu0 0.0
    %4473 = vmatpush1.msra.mxu0 %v4453
    %4474 = vmatprep.subr.mxu0 0.0
    %4475 = vmatpush1.msra.mxu0 %v4454
    %4476 = vmatprep.subr.mxu0 0.0
    %4477 = vmatpush1.msra.mxu0 %v4455
    %4478 = vmatprep.subr.mxu0 0.0
    %4479 = vmatpush1.msra.mxu0 %v4456
    %4480 = vmatprep.subr.mxu0 0.0
    %4481 = vmatpush1.msra.mxu0 %v4457
    %4482 = vmatprep.subr.mxu0 0.0
    %4483 = vmatpush1.msra.mxu0 %v4458
    %4484 = vmatprep.subr.mxu0 0.0
    %4485 = vmatpush1.msra.mxu0 %v4459
    %4486 = vmatprep.subr.mxu0 0.0
    %4487 = vmatpush1.msra.mxu0 %v4460
    %4488 = vmatprep.subr.mxu0 0.0
    %4489 = vmatpush1.msra.mxu0 0.0
    %4490 = vmatprep.subr.mxu0 0.0
    %4491 = vmatpush1.msra.mxu0 0.0
    %4492 = vmatprep.subr.mxu0 0.0
    %4493 = vmatpush1.msra.mxu0 0.0
    %4494 = vmatprep.subr.mxu0 0.0
    %4495 = vmatpush1.msra.mxu0 0.0
    %4496 = vmatprep.subr.mxu0 0.0
    %4497 = vmatpush1.msra.mxu0 0.0
    %4498 = vmatprep.subr.mxu0 0.0
    %4499 = vmatpush1.msra.mxu0 0.0
    %4500 = vmatprep.subr.mxu0 0.0
    %4501 = vmatpush1.msra.mxu0 0.0
    %4502 = vmatprep.subr.mxu0 0.0
    %4503 = vmatpush1.msra.mxu0 0.0
    %4504 = vmatprep.subr.mxu0 0.0
    %4505 = vmatpush1.msra.mxu0 0.0
    %4506 = vmatprep.subr.mxu0 0.0
    %4507 = vmatpush1.msra.mxu0 0.0
    %4508 = vmatprep.subr.mxu0 0.0
    %4509 = vmatpush1.msra.mxu0 0.0
    %4510 = vmatprep.subr.mxu0 0.0
    %4511 = vmatpush1.msra.mxu0 0.0
    %4512 = vmatprep.subr.mxu0 0.0
    %4513 = vmatpush1.msra.mxu0 0.0
    %4514 = vmatprep.subr.mxu0 0.0
    %4515 = vmatpush1.msra.mxu0 0.0
    %4516 = vmatprep.subr.mxu0 0.0
    %4517 = vmatpush1.msra.mxu0 0.0
    %4518 = vmatprep.subr.mxu0 0.0
    %4519 = vmatpush1.msra.mxu0 0.0
    %4520 = vmatprep.subr.mxu0 0.0
    %4521 = vmatpush1.msra.mxu0 0.0
    %4522 = vmatprep.subr.mxu0 0.0
    %4523 = vmatpush1.msra.mxu0 0.0
    %4524 = vmatprep.subr.mxu0 0.0
    %4525 = vmatpush1.msra.mxu0 0.0
    %4526 = vmatprep.subr.mxu0 0.0
    %4527 = vmatpush1.msra.mxu0 0.0
    %4528 = vmatprep.subr.mxu0 0.0
    %4529 = vmatpush1.msra.mxu0 0.0
    %4530 = vmatprep.subr.mxu0 0.0
    %4531 = vmatpush1.msra.mxu0 0.0
    %4532 = vmatprep.subr.mxu0 0.0
    %4533 = vmatpush1.msra.mxu0 0.0
    %4534 = vmatprep.subr.mxu0 0.0
    %4535 = vmatpush1.msra.mxu0 0.0
    %4536 = vmatprep.mubr.f32.mxu0 0.0
    %4537 = vmatmul.mubr.f32.gmra.mrb[0].mxu0 %v4470
    %v4538 = vpop.f32.mrb[0].mxu0
    %v4539 = vadd.f32 %v4467, %v4538
    %v4540 = vpop.f32.mrb[0].mxu0
    %4541 = vdwg.mxu0
    %v4542 = vadd.f32 %v4325, %v4539
    %v4543 = vld [vmem:[%s21] sm:$0x1]
    %v4544 = vld [vmem:[%s22] sm:$0x1]
    %v4545 = vsel %vm191, %v4542, 0.0
    %4546 = vadd.xlane.f32.xlu0 %v4545
    %v4547 = vpop.xlane.xlu0 %4546
    %v4548 = vmul.f32 %v4547, %v195
    %v4549 = vsub.f32 %v4542, %v4548
    %v4550 = vmul.f32 %v4549, %v4549
    %v4551 = vsel %vm191, %v4550, 0.0
    %4552 = vadd.xlane.f32.xlu0 %v4551
    %v4553 = vpop.xlane.xlu0 %4552
    %v4554 = vmul.f32 %v4553, %v195
    %v4555 = vadd.f32 %v4554, 1e-06
    %v4556 = vrsqrt.pop %v4555
    %v4557 = vmul.f32 %v4549, %v4556
    %v4559 = vlaneseq
    %v4560 = vshrl.u32 %v4559, 7
    %v4561 = vsub.s32 0, %v4560
    %v4562 = vrot.slane %v4543, %v4561
    %v4564 = vmul.f32 %v4557, %v4562
    %v4566 = vlaneseq
    %v4567 = vshrl.u32 %v4566, 7
    %v4568 = vsub.s32 0, %v4567
    %v4569 = vrot.slane %v4544, %v4568
    %v4571 = vadd.f32 %v4564, %v4569
    %4572 = vst.msk [vmem:[#allocation2] sm:$0xff] %vm191, %v4571
    // Predicated region
    $region94: #{_lambda_.1} parent=1 // pred_check
      _
    $region95: #{_lambda_.1} parent=1 // pred_check_branch
      %4574 = sbr.rel (0) target = $region97
    $region96: #{_lambda_.1} parent=1 // pred_region
      %s4576 = ssub.s32 128, 128
      %4577 = vsyncadd [#allocation3], %s4576
      %s4579 = sshll.u32 [#allocation2], 4
      %s4580 = int_to_ptr.vmem [resolvable:$true] %s4579
      %4582 = dma.vmem_to_hbm [thread:$0]  %s4580, 128, %s23, [#allocation3]
    $region97: #{_lambda_.1} parent=1 // pred_fallthru
      _
    // Predicated region
    $region98: #{_lambda_.1} parent=1 // pred_check
      _
    $region99: #{_lambda_.1} parent=1 // pred_check_branch
      %4584 = sbr.rel (0) target = $region101
    $region100: #{_lambda_.1} parent=1 // pred_region
      %4585 = dma.done [#allocation3], 128
    $region101: #{_lambda_.1} parent=1 // pred_fallthru
      _
    %4586 = vsyncpa [#allocation3], 1

</llo_original>
